<compile_context>
chip_gen: v5e
topology: v5e:2x2
jax: 0.10.0
libtpu: 0.0.40
codegen_flags: <defaults>
</compile_context>

<pallas_src>
import math
from functools import partial

import jax
import jax.numpy as jnp
from jax import lax
from jax.experimental import pallas as pl
from jax.experimental.pallas import tpu as pltpu


# ---------------------------------------------------------------------------
# Tiling helpers
# ---------------------------------------------------------------------------
def _pick_tile(total, target, align):
    """Largest t <= target with t % align == 0 and total % t == 0, else total."""
    if total <= target:
        return total
    t = (min(target, total) // align) * align
    while t >= align:
        if total % t == 0:
            return t
        t -= align
    return total


def _pick_k_tile(K):
    # 256-aligned K tiles match the 2x256x256 MXU (v6e/v7x) and are a clean
    # multiple of 128 for v5e; tiny-K layers (e.g. K=27) use the full K.
    return 256 if K % 256 == 0 else K


def _im2col(x, kh, kw, stride, pad):
    """(N,C,H,W) -> (N, C*kh*kw, Ho*Wo); K ordering matches
    torch Conv2d weight.reshape(Cout, Cin*kh*kw)."""
    xp = jnp.pad(x, ((0, 0), (0, 0), (pad, pad), (pad, pad)))
    N, C, Hp, Wp = xp.shape
    Ho = (Hp - kh) // stride + 1
    Wo = (Wp - kw) // stride + 1
    cols = []
    for i in range(kh):
        for j in range(kw):
            cols.append(xp[:, :, i:i + stride * Ho:stride,
                           j:j + stride * Wo:stride])
    patches = jnp.stack(cols, axis=2)                  # (N, C, kh*kw, Ho, Wo)
    return patches.reshape(N, C * kh * kw, Ho * Wo), Ho, Wo


# ---------------------------------------------------------------------------
# Kernel 1: tiled conv GEMM (+bias) that also emits per-channel sum / sumsq
# partials for the later InstanceNorm pass.
# ---------------------------------------------------------------------------
def _conv_gemm_kernel(p_ref, w_ref, b_ref, y_ref, sum_ref, sq_ref, acc_ref):
    # p_ref  : (1, Kt, Pt)  bf16 im2col patch tile
    # w_ref  : (Cout, Kt)   bf16 flattened conv weight tile
    # b_ref  : (Cout, 1)    f32 conv bias
    # y_ref  : (1, Cout, Pt) pre-norm conv output tile (bf16)
    # sum_ref/sq_ref: (1, Cout, 1) per-(n, p-tile) partial stats (f32)
    # acc_ref: (Cout, Pt) f32 VMEM accumulator (persists across the K axis)
    k = pl.program_id(2)

    @pl.when(k == 0)
    def _():
        acc_ref[...] = jnp.zeros_like(acc_ref)

    acc_ref[...] += jnp.dot(w_ref[...], p_ref[0],
                            preferred_element_type=jnp.float32)

    @pl.when(k == pl.num_programs(2) - 1)
    def _():
        y = acc_ref[...] + b_ref[...]                  # (Cout, Pt) f32
        y_ref[0] = y.astype(y_ref.dtype)
        sum_ref[0] = jnp.sum(y, axis=1, keepdims=True)       # lane-reduce
        sq_ref[0] = jnp.sum(y * y, axis=1, keepdims=True)


def conv2d_bias_stats(x, w, b, *, stride, padding, out_dtype=jnp.bfloat16):
    """Tiled im2col-GEMM Conv2d + bias.  Returns the pre-norm output
    (N, Cout, Ho*Wo) plus per-(image, channel) sum / sum-of-squares."""
    N, Cin, H, W = x.shape
    Cout, _, KH, KW = w.shape
    patches, Ho, Wo = _im2col(x.astype(jnp.bfloat16), KH, KW, stride, padding)
    K, P = Cin * KH * KW, Ho * Wo

    kt = _pick_k_tile(K)
    target_p = 2048 if Cout > 256 else 4096            # keep f32 acc <= ~4 MB
    pt = _pick_tile(P, target_p, 128)
    n_p, n_k = P // pt, K // kt

    wf = w.reshape(Cout, K).astype(jnp.bfloat16)
    bf = b.reshape(Cout, 1).astype(jnp.float32)

    y, s1, s2 = pl.pallas_call(
        _conv_gemm_kernel,
        out_shape=(
            jax.ShapeDtypeStruct((N, Cout, P), out_dtype),
            jax.ShapeDtypeStruct((N * n_p, Cout, 1), jnp.float32),
            jax.ShapeDtypeStruct((N * n_p, Cout, 1), jnp.float32),
        ),
        grid=(N, n_p, n_k),
        in_specs=[
            pl.BlockSpec((1, kt, pt), lambda n, p, k: (n, k, p)),
            pl.BlockSpec((Cout, kt), lambda n, p, k: (0, k)),
            pl.BlockSpec((Cout, 1), lambda n, p, k: (0, 0)),
        ],
        out_specs=(
            pl.BlockSpec((1, Cout, pt), lambda n, p, k: (n, 0, p)),
            pl.BlockSpec((1, Cout, 1), lambda n, p, k: (n * n_p + p, 0, 0)),
            pl.BlockSpec((1, Cout, 1), lambda n, p, k: (n * n_p + p, 0, 0)),
        ),
        scratch_shapes=[pltpu.VMEM((Cout, pt), jnp.float32)],
        compiler_params=pltpu.CompilerParams(
            dimension_semantics=("parallel", "parallel", "arbitrary"),
            vmem_limit_bytes=32 * 1024 * 1024),
    )(patches, wf, bf)

    # Tiny (N*n_p, Cout) reduction of the per-tile partials in XLA.
    s1 = s1.reshape(N, n_p, Cout).sum(axis=1)          # (N, Cout)
    s2 = s2.reshape(N, n_p, Cout).sum(axis=1)
    return y, s1, s2, Ho, Wo


# ---------------------------------------------------------------------------
# Kernel 2: lightweight P-tiled InstanceNorm(affine) + LeakyReLU finalize
# ---------------------------------------------------------------------------
def _inorm_lrelu_kernel(y_ref, sc_ref, sh_ref, o_ref, *, slope):
    # y_ref: (1, C, Pt) bf16 pre-norm conv output
    # sc_ref/sh_ref: (1, C, 1) f32 per-channel scale / shift
    z = y_ref[0].astype(jnp.float32) * sc_ref[0] + sh_ref[0]
    o_ref[0] = jnp.where(z >= 0.0, z, slope * z).astype(o_ref.dtype)


def instance_norm_lrelu(y, s1, s2, gamma, beta, *, eps=1e-5, slope=0.2,
                        out_dtype=jnp.bfloat16):
    N, C, P = y.shape
    mean = s1 / P                                        # (N, C) f32
    var = jnp.maximum(s2 / P - mean * mean, 0.0)
    rstd = lax.rsqrt(var + eps)
    scale = (gamma[None, :] * rstd).reshape(N, C, 1).astype(jnp.float32)
    shift = (beta[None, :] - mean * gamma[None, :] * rstd
             ).reshape(N, C, 1).astype(jnp.float32)

    pt = _pick_tile(P, 4096, 128)
    n_p = P // pt
    return pl.pallas_call(
        partial(_inorm_lrelu_kernel, slope=slope),
        out_shape=jax.ShapeDtypeStruct((N, C, P), out_dtype),
        grid=(N, n_p),
        in_specs=[
            pl.BlockSpec((1, C, pt), lambda n, p: (n, 0, p)),
            pl.BlockSpec((1, C, 1), lambda n, p: (n, 0, 0)),
            pl.BlockSpec((1, C, 1), lambda n, p: (n, 0, 0)),
        ],
        out_specs=pl.BlockSpec((1, C, pt), lambda n, p: (n, 0, p)),
        compiler_params=pltpu.CompilerParams(
            dimension_semantics=("parallel", "parallel"),
            vmem_limit_bytes=32 * 1024 * 1024),
    )(y, scale, shift)


# ---------------------------------------------------------------------------
# Kernel 3: final conv (token-major GEMM) fused with text_linear2 + alpha
# blend; writes the (b, n, c) output directly (context_dim on lanes).
# ---------------------------------------------------------------------------
def _final_merge_kernel(alpha_ref, p_ref, w6_ref, b6_ref, w2_ref, b2_ref,
                        tx_ref, o_ref, acc_ref):
    # alpha_ref: SMEM (1,) clamped alpha
    # p_ref  : (1, Pt, Kt) bf16 token-major patch tile
    # w6_ref : (Kt, C)     bf16 conv6 weight (transposed)
    # b6_ref : (1, C)      f32 conv6 bias
    # w2_ref : (Pt, S)     f32 text_linear2 weight tile
    # b2_ref : (Pt, 1)     f32 text_linear2 bias tile
    # tx_ref : (1, S, C)   f32 CLIP text features (b n c)
    # o_ref  : (1, Pt, C)  final (b, n, c) output tile
    # acc_ref: (Pt, C)     f32 VMEM accumulator (persists across the K axis)
    k = pl.program_id(2)

    @pl.when(k == 0)
    def _():
        acc_ref[...] = jnp.zeros_like(acc_ref)

    acc_ref[...] += jnp.dot(p_ref[0], w6_ref[...],
                            preferred_element_type=jnp.float32)

    @pl.when(k == pl.num_programs(2) - 1)
    def _():
        a = alpha_ref[0]
        sk = acc_ref[...] + b6_ref[...]                      # (Pt, C)
        tx = jnp.dot(w2_ref[...], tx_ref[0],
                     preferred_element_type=jnp.float32) + b2_ref[...]
        o_ref[0] = (a * sk + (1.0 - a) * tx).astype(o_ref.dtype)


def final_conv_merge(x, w6, b6, w2, b2, text_feat, alpha, *, stride, padding):
    N, Cin, H, W = x.shape
    Cout, _, KH, KW = w6.shape
    patches, Ho, Wo = _im2col(x.astype(jnp.bfloat16), KH, KW, stride, padding)
    K, P = Cin * KH * KW, Ho * Wo
    patches = jnp.transpose(patches, (0, 2, 1))        # (N, P, K) token-major

    S = text_feat.shape[1]
    assert w2.shape == (P, S), (w2.shape, (P, S))

    kt = _pick_k_tile(K)
    pt = _pick_tile(P, 512, 8)
    n_p, n_k = P // pt, K // kt

    w6t = w6.reshape(Cout, K).T.astype(jnp.bfloat16)   # (K, Cout)
    b6f = b6.reshape(1, Cout).astype(jnp.float32)
    b2f = b2.reshape(P, 1).astype(jnp.float32)
    w2f = w2.astype(jnp.float32)
    txf = text_feat.astype(jnp.float32)
    # forward-time clamp of alpha to [0.2, 0.8] (functional form of the
    # in-place nn.Parameter reassignment in the torch module)
    alpha_c = jnp.clip(alpha, 0.2, 0.8).astype(jnp.float32).reshape((1,))

    return pl.pallas_call(
        _final_merge_kernel,
        out_shape=jax.ShapeDtypeStruct((N, P, Cout), jnp.float32),
        grid=(N, n_p, n_k),
        in_specs=[
            pl.BlockSpec(memory_space=pltpu.MemorySpace.SMEM),       # alpha
            pl.BlockSpec((1, pt, kt), lambda n, p, k: (n, p, k)),
            pl.BlockSpec((kt, Cout), lambda n, p, k: (k, 0)),
            pl.BlockSpec((1, Cout), lambda n, p, k: (0, 0)),
            pl.BlockSpec((pt, S), lambda n, p, k: (p, 0)),
            pl.BlockSpec((pt, 1), lambda n, p, k: (p, 0)),
            pl.BlockSpec((1, S, Cout), lambda n, p, k: (n, 0, 0)),
        ],
        out_specs=pl.BlockSpec((1, pt, Cout), lambda n, p, k: (n, p, 0)),
        scratch_shapes=[pltpu.VMEM((pt, Cout), jnp.float32)],
        compiler_params=pltpu.CompilerParams(
            dimension_semantics=("parallel", "parallel", "arbitrary"),
            vmem_limit_bytes=32 * 1024 * 1024),
    )(alpha_c, patches, w6t, b6f, w2f, b2f, txf)


# ---------------------------------------------------------------------------
# Module
# ---------------------------------------------------------------------------
class MergeModalityEncoderWithRegularization:
    """JAX/Pallas port of the PyTorch module's forward pass (main branch)."""

    # (kernel, stride, padding, apply_norm_act) for the 6 sketch-encoder convs
    _CONV_CFG = [
        (3, 1, 1, True),
        (4, 2, 1, True),
        (4, 2, 1, True),
        (4, 2, 1, True),
        (4, 2, 1, True),
        (3, 1, 1, False),
    ]

    def __init__(self, context_dim, sketch_hw=(512, 512), seq_len=77,
                 in_channels=3, key=None):
        # sketch_hw=(512,512) & seq_len=77 reproduce the hardcoded torch
        # module (Linear(77, 1024)); smaller values keep the same structure.
        self.context_dim = context_dim
        self.seq_len = seq_len
        H, W = sketch_hw
        assert H % 16 == 0 and W % 16 == 0
        self.n_tokens = (H // 16) * (W // 16)
        key = key if key is not None else jax.random.PRNGKey(0)

        # ModifiedPITISketchEncoder(context_dim * 2): last conv outputs
        # (context_dim*2)//2 == context_dim channels.
        chans = [in_channels, 32, 64, 128, 256, 512, context_dim]
        keys = jax.random.split(key, 2 * len(self._CONV_CFG) + 2)
        ki = 0
        self.conv_params = []
        for li, (k, s, p, norm_act) in enumerate(self._CONV_CFG):
            cin, cout = chans[li], chans[li + 1]
            bound = 1.0 / math.sqrt(cin * k * k)
            w = jax.random.uniform(keys[ki], (cout, cin, k, k),
                                   minval=-bound, maxval=bound,
                                   dtype=jnp.float32); ki += 1
            b = jax.random.uniform(keys[ki], (cout,), minval=-bound,
                                   maxval=bound, dtype=jnp.float32); ki += 1
            self.conv_params.append(dict(
                w=w, b=b,
                gamma=jnp.ones((cout,), jnp.float32),
                beta=jnp.zeros((cout,), jnp.float32),
                stride=s, padding=p, norm_act=norm_act))

        # text_linear2: Linear(seq_len -> n_tokens)
        bound = 1.0 / math.sqrt(seq_len)
        self.w2 = jax.random.uniform(keys[ki], (self.n_tokens, seq_len),
                                     minval=-bound, maxval=bound,
                                     dtype=jnp.float32); ki += 1
        self.b2 = jax.random.uniform(keys[ki], (self.n_tokens,),
                                     minval=-bound, maxval=bound,
                                     dtype=jnp.float32); ki += 1
        # NOTE: text_linear1 is declared in the torch module but never used
        # in forward(), so it is omitted here.
        self.alpha = jnp.array(0.2, dtype=jnp.float32)

    def __call__(self, sketch, text_feat):
        # TODO(synk): FrozenCLIPEmbedder is not translatable; `text_feat` is
        # its precomputed last_hidden_state of shape (B, seq_len, context_dim).
        x = sketch
        for p in self.conv_params[:-1]:
            y, s1, s2, Ho, Wo = conv2d_bias_stats(
                x, p["w"], p["b"], stride=p["stride"], padding=p["padding"])
            a = instance_norm_lrelu(y, s1, s2, p["gamma"], p["beta"])
            x = a.reshape(a.shape[0], a.shape[1], Ho, Wo)
        p = self.conv_params[-1]
        # conv6 + text_linear2 + alpha blend fused; output is (B, n_tokens, C)
        return final_conv_merge(x, p["w"], p["b"], self.w2, self.b2,
                                text_feat, self.alpha,
                                stride=p["stride"], padding=p["padding"])


# ---------------------------------------------------------------------------
# Pure-JAX reference (numerical sanity check, all f32)
# ---------------------------------------------------------------------------
def _reference_forward(model, sketch, text_feat):
    x = sketch
    for p in model.conv_params:
        x = lax.conv_general_dilated(
            x, p["w"], window_strides=(p["stride"],) * 2,
            padding=[(p["padding"], p["padding"])] * 2,
            dimension_numbers=("NCHW", "OIHW", "NCHW"),
            precision=lax.Precision.HIGHEST)
        x = x + p["b"][None, :, None, None]
        if p["norm_act"]:
            mean = x.mean(axis=(2, 3), keepdims=True)
            var = ((x - mean) ** 2).mean(axis=(2, 3), keepdims=True)
            x = (x - mean) / jnp.sqrt(var + 1e-5)
            x = x * p["gamma"][None, :, None, None] + p["beta"][None, :, None, None]
            x = jnp.where(x >= 0.0, x, 0.2 * x)
    N, C, H, W = x.shape
    sk = x.reshape(N, C, H * W)
    tm = jnp.einsum("bsc,ps->bpc", text_feat, model.w2,
                    precision=lax.Precision.HIGHEST) + model.b2[None, :, None]
    a = jnp.clip(model.alpha, 0.2, 0.8)
    return a * jnp.transpose(sk, (0, 2, 1)) + (1.0 - a) * tm


if __name__ == "__main__":
    key = jax.random.PRNGKey(0)
    k_model, k_sketch, k_text = jax.random.split(key, 3)

    batch, context_dim, seq_len = 2, 64, 77
    Hs = Ws = 64                                      # small stand-in for 512
    n_tokens = (Hs // 16) * (Ws // 16)

    model = MergeModalityEncoderWithRegularization(
        context_dim=context_dim, sketch_hw=(Hs, Ws), seq_len=seq_len,
        key=k_model)

    sketch = jax.random.normal(k_sketch, (batch, 3, Hs, Ws), dtype=jnp.float32)
    text_feat = jax.random.normal(k_text, (batch, seq_len, context_dim),
                                  dtype=jnp.float32)

    out = model(sketch, text_feat)
    jax.block_until_ready(out)
    assert out.shape == (batch, n_tokens, context_dim), out.shape
    assert out.dtype == jnp.float32

    ref = _reference_forward(model, sketch, text_feat)
    err = float(jnp.max(jnp.abs(out - ref)))
    scale = float(jnp.max(jnp.abs(ref))) + 1e-6
    # bf16 MXU inputs / bf16 inter-layer activations vs. an all-f32 reference:
    # allow a few percent relative deviation.
    assert err / scale < 5e-2, (err, scale)

    print("KERNEL_OK")
</pallas_src>

<mosaic_0001>
module attributes {stable_mosaic.version = 11 : i64} {
  func.func @_conv_gemm_kernel(%arg0: i32, %arg1: i32, %arg2: i32, %arg3: memref<1x27x4096xbf16, #tpu.memory_space<vmem>>, %arg4: memref<32x27xbf16, #tpu.memory_space<vmem>>, %arg5: memref<32x1xf32, #tpu.memory_space<vmem>>, %arg6: memref<1x32x4096xbf16, #tpu.memory_space<vmem>>, %arg7: memref<1x32x1xf32, #tpu.memory_space<vmem>>, %arg8: memref<1x32x1xf32, #tpu.memory_space<vmem>>, %arg9: memref<32x4096xf32, #tpu.memory_space<vmem>>) attributes {dimension_semantics = [#tpu.dimension_semantics<parallel>, #tpu.dimension_semantics<parallel>, #tpu.dimension_semantics<arbitrary>], iteration_bounds = array<i64: 2, 1, 1>, scalar_prefetch = 0 : i64, scratch_operands = 1 : i64, tpu.core_type = #tpu.core_type<tc>, window_params = [{transform_indices = @transform_0, window_bounds = array<i64: 1, 27, 4096>}, {transform_indices = @transform_1, window_bounds = array<i64: 32, 27>}, {pipeline_mode = #tpu.pipeline_mode<synchronous>, transform_indices = @transform_2, window_bounds = array<i64: 32, 1>}, {transform_indices = @transform_3, window_bounds = array<i64: 1, 32, 4096>}, {transform_indices = @transform_4, window_bounds = array<i64: 1, 32, 1>}, {transform_indices = @transform_5, window_bounds = array<i64: 1, 32, 1>}]} {
    %c0_i32 = arith.constant 0 : i32
    %0 = arith.cmpi eq, %arg2, %c0_i32 : i32
    %1 = arith.extui %0 : i1 to i32
    %c0_i32_0 = arith.constant 0 : i32
    %2 = arith.cmpi ne, %1, %c0_i32_0 : i32
    scf.if %2 {
      %cst_11 = arith.constant 0.000000e+00 : f32
      %13 = vector.broadcast %cst_11 : f32 to vector<32x4096xf32>
      %c0_12 = arith.constant 0 : index
      %c0_13 = arith.constant 0 : index
      %14 = vector.load %arg9[%c0_12, %c0_13] : memref<32x4096xf32, #tpu.memory_space<vmem>>, vector<32x4096xf32>
      tpu.vector_store %arg9[%c0_12, %c0_13], %13 {strides = array<i32>} : memref<32x4096xf32, #tpu.memory_space<vmem>>, vector<32x4096xf32>,
    } else {
    }
    %c0 = arith.constant 0 : index
    %c0_1 = arith.constant 0 : index
    %3 = vector.load %arg9[%c0, %c0_1] : memref<32x4096xf32, #tpu.memory_space<vmem>>, vector<32x4096xf32>
    %c0_2 = arith.constant 0 : index
    %c0_3 = arith.constant 0 : index
    %4 = vector.load %arg4[%c0_2, %c0_3] : memref<32x27xbf16, #tpu.memory_space<vmem>>, vector<32x27xbf16>
    %c0_4 = arith.constant 0 : index
    %c0_5 = arith.constant 0 : index
    %c0_6 = arith.constant 0 : index
    %5 = vector.load %arg3[%c0_4, %c0_5, %c0_6] : memref<1x27x4096xbf16, #tpu.memory_space<vmem>>, vector<1x27x4096xbf16>
    %6 = vector.shape_cast %5 : vector<1x27x4096xbf16> to vector<27x4096xbf16>
    %cst = arith.constant dense<0.000000e+00> : vector<32x4096xf32>
    %7 = tpu.matmul %4, %6, %cst {dimension_numbers = #tpu.dot_dimension_numbers<[1], [0], [0], [1], [0, 0, 1, 1], [], []>} : vector<32x27xbf16>, vector<27x4096xbf16>, vector<32x4096xf32> -> vector<32x4096xf32>
    %8 = arith.addf %3, %7 : vector<32x4096xf32>
    %c0_7 = arith.constant 0 : index
    %c0_8 = arith.constant 0 : index
    %9 = vector.load %arg9[%c0_7, %c0_8] : memref<32x4096xf32, #tpu.memory_space<vmem>>, vector<32x4096xf32>
    tpu.vector_store %arg9[%c0_7, %c0_8], %8 {strides = array<i32>} : memref<32x4096xf32, #tpu.memory_space<vmem>>, vector<32x4096xf32>,
    %c0_i32_9 = arith.constant 0 : i32
    %10 = arith.cmpi eq, %arg2, %c0_i32_9 : i32
    %11 = arith.extui %10 : i1 to i32
    %c0_i32_10 = arith.constant 0 : i32
    %12 = arith.cmpi ne, %11, %c0_i32_10 : i32
    scf.if %12 {
      %c0_11 = arith.constant 0 : index
      %c0_12 = arith.constant 0 : index
      %13 = vector.load %arg9[%c0_11, %c0_12] : memref<32x4096xf32, #tpu.memory_space<vmem>>, vector<32x4096xf32>
      %c0_13 = arith.constant 0 : index
      %c0_14 = arith.constant 0 : index
      %14 = vector.load %arg5[%c0_13, %c0_14] : memref<32x1xf32, #tpu.memory_space<vmem>>, vector<32x1xf32>
      %15 = vector.broadcast %14 : vector<32x1xf32> to vector<32x4096xf32>
      %16 = arith.addf %13, %15 : vector<32x4096xf32>
      %17 = arith.truncf %16 : vector<32x4096xf32> to vector<32x4096xbf16>
      %c0_15 = arith.constant 0 : index
      %c0_16 = arith.constant 0 : index
      %c0_17 = arith.constant 0 : index
      %18 = vector.load %arg6[%c0_15, %c0_16, %c0_17] : memref<1x32x4096xbf16, #tpu.memory_space<vmem>>, vector<1x32x4096xbf16>
      %19 = vector.shape_cast %18 : vector<1x32x4096xbf16> to vector<32x4096xbf16>
      %20 = vector.shape_cast %17 : vector<32x4096xbf16> to vector<1x32x4096xbf16>
      tpu.vector_store %arg6[%c0_15, %c0_16, %c0_17], %20 {strides = array<i32>} : memref<1x32x4096xbf16, #tpu.memory_space<vmem>>, vector<1x32x4096xbf16>,
      %cst_18 = arith.constant dense<0.000000e+00> : vector<32xf32>
      %21 = vector.multi_reduction <add>, %16, %cst_18 [1] : vector<32x4096xf32> to vector<32xf32>
      %22 = vector.shape_cast %21 : vector<32xf32> to vector<32x1xf32>
      %c0_19 = arith.constant 0 : index
      %c0_20 = arith.constant 0 : index
      %c0_21 = arith.constant 0 : index
      %23 = vector.load %arg7[%c0_19, %c0_20, %c0_21] : memref<1x32x1xf32, #tpu.memory_space<vmem>>, vector<1x32x1xf32>
      %24 = vector.shape_cast %23 : vector<1x32x1xf32> to vector<32x1xf32>
      %25 = vector.shape_cast %22 : vector<32x1xf32> to vector<1x32x1xf32>
      tpu.vector_store %arg7[%c0_19, %c0_20, %c0_21], %25 {strides = array<i32>} : memref<1x32x1xf32, #tpu.memory_space<vmem>>, vector<1x32x1xf32>,
      %26 = arith.mulf %16, %16 : vector<32x4096xf32>
      %cst_22 = arith.constant dense<0.000000e+00> : vector<32xf32>
      %27 = vector.multi_reduction <add>, %26, %cst_22 [1] : vector<32x4096xf32> to vector<32xf32>
      %28 = vector.shape_cast %27 : vector<32xf32> to vector<32x1xf32>
      %c0_23 = arith.constant 0 : index
      %c0_24 = arith.constant 0 : index
      %c0_25 = arith.constant 0 : index
      %29 = vector.load %arg8[%c0_23, %c0_24, %c0_25] : memref<1x32x1xf32, #tpu.memory_space<vmem>>, vector<1x32x1xf32>
      %30 = vector.shape_cast %29 : vector<1x32x1xf32> to vector<32x1xf32>
      %31 = vector.shape_cast %28 : vector<32x1xf32> to vector<1x32x1xf32>
      tpu.vector_store %arg8[%c0_23, %c0_24, %c0_25], %31 {strides = array<i32>} : memref<1x32x1xf32, #tpu.memory_space<vmem>>, vector<1x32x1xf32>,
    } else {
    }
    return
  }
  func.func @transform_0(%arg0: i32, %arg1: i32, %arg2: i32) -> (i32, i32, i32) {
    %c0_i32 = arith.constant 0 : i32
    return %arg0, %arg2, %arg1 : i32, i32, i32
  }
  func.func @transform_1(%arg0: i32, %arg1: i32, %arg2: i32) -> (i32, i32) {
    %c0_i32 = arith.constant 0 : i32
    %c0_i32_0 = arith.constant 0 : i32
    return %c0_i32, %arg2 : i32, i32
  }
  func.func @transform_2(%arg0: i32, %arg1: i32, %arg2: i32) -> (i32, i32) {
    %c0_i32 = arith.constant 0 : i32
    %c0_i32_0 = arith.constant 0 : i32
    %c0_i32_1 = arith.constant 0 : i32
    return %c0_i32, %c0_i32_0 : i32, i32
  }
  func.func @transform_3(%arg0: i32, %arg1: i32, %arg2: i32) -> (i32, i32, i32) {
    %c0_i32 = arith.constant 0 : i32
    %c0_i32_0 = arith.constant 0 : i32
    return %arg0, %c0_i32, %arg1 : i32, i32, i32
  }
  func.func @transform_4(%arg0: i32, %arg1: i32, %arg2: i32) -> (i32, i32, i32) {
    %c1_i32 = arith.constant 1 : i32
    %0 = arith.muli %arg0, %c1_i32 : i32
    %1 = arith.addi %0, %arg1 : i32
    %c0_i32 = arith.constant 0 : i32
    %c0_i32_0 = arith.constant 0 : i32
    %c0_i32_1 = arith.constant 0 : i32
    return %1, %c0_i32, %c0_i32_0 : i32, i32, i32
  }
  func.func @transform_5(%arg0: i32, %arg1: i32, %arg2: i32) -> (i32, i32, i32) {
    %c1_i32 = arith.constant 1 : i32
    %0 = arith.muli %arg0, %c1_i32 : i32
    %1 = arith.addi %0, %arg1 : i32
    %c0_i32 = arith.constant 0 : i32
    %c0_i32_0 = arith.constant 0 : i32
    %c0_i32_1 = arith.constant 0 : i32
    return %1, %c0_i32, %c0_i32_0 : i32, i32, i32
  }
}

</mosaic_0001>

<llo_original>
// kernel: tpu_custom_call.1
$region0: #{tpu_custom_call.1}
  #allocation0 [shape = 'u32[]', space=smem, size = 0x4, offset = 0x4, fixed_abs, tag = 'smem constant byte address 0x4 - core index']
  #allocation1 [shape = 'u32[72,128]{1,0:T(1,128)}', space=vmem, size = 0x9000, scoped, tag = 'internal scratch']
  #allocation2 [shape = 'f32[32,4096]{1,0:T(8,128)}', space=vmem, size = 0x80000, scoped, tag = 'scratch operand']
  %s0 = inlined_call_operand.vmem [shape: bf16[2,27,4096], index: 0, kind: input, shape index: {}]
  %s1 = inlined_call_operand.vmem [shape: bf16[32,27], index: 1, kind: input, shape index: {}]
  %s2 = inlined_call_operand.vmem [shape: f32[32,1], index: 2, kind: input, shape index: {}]
  %s3 = inlined_call_operand.hbm [shape: bf16[2,32,4096], index: 3, kind: output, shape index: {0}]
  %s4 = inlined_call_operand.vmem [shape: f32[2,32,1], index: 4, kind: output, shape index: {1}]
  %s5 = inlined_call_operand.vmem [shape: f32[2,32,1], index: 5, kind: output, shape index: {2}]
  %6 = xla_tuple %s3, %s4, %s5
  %s7 = sld [smem:[#allocation0]]
  $region69: #{tpu_custom_call.1} parent=0
    _
  %s9 = ssub.s32 1, %s7
  %s10 = scalar_select 0, %s9, %s7
  $region1: #{tpu_custom_call.1} parent=0
    #allocation3 [shape = 'u8[524288]{0}', space=vmem, size = 0x80000, scoped, tag = 'output window, operand 0']
    #allocation4 [shape = 's32[2]{0}', space=sflag, size = 0x8, scoped, tag = 'scoped memory for tpu_custom_call.1']
    %11 = vsyncpa [#allocation4], 0
    %s12 = scalar_lea.sflag [#allocation4], 1
    %13 = vsyncpa %s12, 0
    loop: start=0, step=1, limit=4
    $region2: #{tpu_custom_call.1} parent=1 // loop_pre_header
      _
    $region3: #{tpu_custom_call.1} parent=1 // loop_header
      %s15 = sphi 0, %s19
      %p16 = scmp.ge.s32.totalorder %s15, 4
      %s22 = sphi 0, %s41
      %s23 = sphi 0, %s37
      %s24 = sphi 0, %s33
      %s25 = sphi 0, %s22
      %s26 = sphi 0, %s23
      %s27 = sphi 0, %s24
      %s28 = sphi 0, %s25
      %s29 = sphi 0, %s26
      %s30 = sphi 0, %s27
      %s48 = sphi 0, %s50
      %s51 = sphi 0, %s48
      %s52 = sphi 0, %s51
      %s68 = sphi 0, %s52
      %s74 = sphi 0, %s76
      %s77 = sphi 0, %s74
      %s78 = sphi 0, %s77
      %s94 = sphi 0, %s78
      %s98 = sphi 0, %s98
      %s100 = sphi 0, %s98
      %s101 = sphi 0, %s100
      %s115 = sphi 0, %s101
      %s123 = sphi 0, %s125
      %s126 = sphi 0, %s123
      %s127 = sphi 0, %s126
      %s143 = sphi 0, %s127
      %s151 = sphi 0, %s153
      %s154 = sphi 0, %s151
      %s155 = sphi 0, %s154
      %s171 = sphi 0, %s155
      %s179 = sphi 0, %s181
      %s182 = sphi 0, %s179
      %s183 = sphi 0, %s182
      %s199 = sphi 0, %s183
    $region4: #{tpu_custom_call.1} parent=1 // loop_header_branch
      %18 = sbr.rel (%p16) target = $region8
    $region5: #{tpu_custom_call.1} parent=1 // loop_body
      %s20 = ssub.s32 %s15, 1
      %s21 = ssub.s32 %s15, 2
      %s31 = sadd.s32 1, %s24
      %p32 = scmp.ge.s32.totalorder %s31, 1
      %s33 = scalar_select %p32, 0, %s31
      %s34 = sadd.s32 1, %s23
      %s35 = scalar_select %p32, %s34, %s23
      %p36 = scmp.ge.s32.totalorder %s35, 1
      %s37 = scalar_select %p36, 0, %s35
      %s38 = sadd.s32 1, %s22
      %s39 = scalar_select %p36, %s38, %s22
      %p40 = scmp.ge.s32.totalorder %s39, 2
      %s41 = scalar_select %p40, 0, %s39
      %s42 = ssub.s32 %s22, %s41
      %s43 = ssub.s32 %s24, %s33
      %s44 = sor.u32 %s42, %s43
      %s45 = ssub.s32 %s23, %s37
      %s46 = sor.u32 %s44, %s45
      %p47 = scmp.eq.s32.totalorder %s46, 0
      %s49 = sadd.s32 %s48, 1
      %s50 = scalar_select %p47, %s48, %s49
      %p53 = pneg %p47
      %p54 = scmp.eq.s32.totalorder %s15, 1
      %p55 = por %p53, %p54
      %p56 = scmp.ne.s32.totalorder %s48, %s51
      %p57 = scmp.eq.s32.totalorder %s15, 0
      %p58 = por %p56, %p57
      %p59 = scmp.ne.s32.totalorder %s48, %s51
      %p60 = scmp.eq.s32.totalorder %s20, 1
      %p61 = por %p59, %p60
      %p62 = scmp.ne.s32.totalorder %s51, %s52
      %p63 = scmp.eq.s32.totalorder %s20, 0
      %p64 = por %p62, %p63
      %p65 = scmp.ne.s32.totalorder %s51, %s52
      %p66 = scmp.eq.s32.totalorder %s21, 1
      %p67 = por %p65, %p66
      %p69 = scmp.ne.s32.totalorder %s52, %s68
      %p70 = scmp.eq.s32.totalorder %s21, 0
      %p71 = por %p69, %p70
      %s72 = ssub.s32 %s24, %s33
      %p73 = scmp.eq.s32.totalorder %s72, 0
      %s75 = sadd.s32 %s74, 1
      %s76 = scalar_select %p73, %s74, %s75
      %p79 = pneg %p73
      %p80 = scmp.eq.s32.totalorder %s15, 1
      %p81 = por %p79, %p80
      %p82 = scmp.ne.s32.totalorder %s74, %s77
      %p83 = scmp.eq.s32.totalorder %s15, 0
      %p84 = por %p82, %p83
      %p85 = scmp.ne.s32.totalorder %s74, %s77
      %p86 = scmp.eq.s32.totalorder %s20, 1
      %p87 = por %p85, %p86
      %p88 = scmp.ne.s32.totalorder %s77, %s78
      %p89 = scmp.eq.s32.totalorder %s20, 0
      %p90 = por %p88, %p89
      %p91 = scmp.ne.s32.totalorder %s77, %s78
      %p92 = scmp.eq.s32.totalorder %s21, 1
      %p93 = por %p91, %p92
      %p95 = scmp.ne.s32.totalorder %s78, %s94
      %p96 = scmp.eq.s32.totalorder %s21, 0
      %p97 = por %p95, %p96
      %s99 = sadd.s32 %s98, 1
      %p102 = scmp.eq.s32.totalorder %s15, 1
      %p103 = scmp.ne.s32.totalorder %s98, %s100
      %p104 = scmp.eq.s32.totalorder %s15, 0
      %p105 = por %p103, %p104
      %p106 = scmp.ne.s32.totalorder %s98, %s100
      %p107 = scmp.eq.s32.totalorder %s20, 1
      %p108 = por %p106, %p107
      %p109 = scmp.ne.s32.totalorder %s100, %s101
      %p110 = scmp.eq.s32.totalorder %s20, 0
      %p111 = por %p109, %p110
      %p112 = scmp.ne.s32.totalorder %s100, %s101
      %p113 = scmp.eq.s32.totalorder %s21, 1
      %p114 = por %p112, %p113
      %p116 = scmp.ne.s32.totalorder %s101, %s115
      %p117 = scmp.eq.s32.totalorder %s21, 0
      %p118 = por %p116, %p117
      %s119 = ssub.s32 %s22, %s41
      %s120 = ssub.s32 %s23, %s37
      %s121 = sor.u32 %s119, %s120
      %p122 = scmp.eq.s32.totalorder %s121, 0
      %s124 = sadd.s32 %s123, 1
      %s125 = scalar_select %p122, %s123, %s124
      %p128 = pneg %p122
      %p129 = scmp.eq.s32.totalorder %s15, 1
      %p130 = por %p128, %p129
      %p131 = scmp.ne.s32.totalorder %s123, %s126
      %p132 = scmp.eq.s32.totalorder %s15, 0
      %p133 = por %p131, %p132
      %p134 = scmp.ne.s32.totalorder %s123, %s126
      %p135 = scmp.eq.s32.totalorder %s20, 1
      %p136 = por %p134, %p135
      %p137 = scmp.ne.s32.totalorder %s126, %s127
      %p138 = scmp.eq.s32.totalorder %s20, 0
      %p139 = por %p137, %p138
      %p140 = scmp.ne.s32.totalorder %s126, %s127
      %p141 = scmp.eq.s32.totalorder %s21, 1
      %p142 = por %p140, %p141
      %p144 = scmp.ne.s32.totalorder %s127, %s143
      %p145 = scmp.eq.s32.totalorder %s21, 0
      %p146 = por %p144, %p145
      %s147 = sadd.s32 %s22, %s23
      %s148 = sadd.s32 %s41, %s37
      %s149 = ssub.s32 %s147, %s148
      %p150 = scmp.eq.s32.totalorder %s149, 0
      %s152 = sadd.s32 %s151, 1
      %s153 = scalar_select %p150, %s151, %s152
      %p156 = pneg %p150
      %p157 = scmp.eq.s32.totalorder %s15, 1
      %p158 = por %p156, %p157
      %p159 = scmp.ne.s32.totalorder %s151, %s154
      %p160 = scmp.eq.s32.totalorder %s15, 0
      %p161 = por %p159, %p160
      %p162 = scmp.ne.s32.totalorder %s151, %s154
      %p163 = scmp.eq.s32.totalorder %s20, 1
      %p164 = por %p162, %p163
      %p165 = scmp.ne.s32.totalorder %s154, %s155
      %p166 = scmp.eq.s32.totalorder %s20, 0
      %p167 = por %p165, %p166
      %p168 = scmp.ne.s32.totalorder %s154, %s155
      %p169 = scmp.eq.s32.totalorder %s21, 1
      %p170 = por %p168, %p169
      %p172 = scmp.ne.s32.totalorder %s155, %s171
      %p173 = scmp.eq.s32.totalorder %s21, 0
      %p174 = por %p172, %p173
      %s175 = sadd.s32 %s22, %s23
      %s176 = sadd.s32 %s41, %s37
      %s177 = ssub.s32 %s175, %s176
      %p178 = scmp.eq.s32.totalorder %s177, 0
      %s180 = sadd.s32 %s179, 1
      %s181 = scalar_select %p178, %s179, %s180
      %p184 = pneg %p178
      %p185 = scmp.eq.s32.totalorder %s15, 1
      %p186 = por %p184, %p185
      %p187 = scmp.ne.s32.totalorder %s179, %s182
      %p188 = scmp.eq.s32.totalorder %s15, 0
      %p189 = por %p187, %p188
      %p190 = scmp.ne.s32.totalorder %s179, %s182
      %p191 = scmp.eq.s32.totalorder %s20, 1
      %p192 = por %p190, %p191
      %p193 = scmp.ne.s32.totalorder %s182, %s183
      %p194 = scmp.eq.s32.totalorder %s20, 0
      %p195 = por %p193, %p194
      %p196 = scmp.ne.s32.totalorder %s182, %s183
      %p197 = scmp.eq.s32.totalorder %s21, 1
      %p198 = por %p196, %p197
      %p200 = scmp.ne.s32.totalorder %s183, %s199
      %p201 = scmp.eq.s32.totalorder %s21, 0
      %p202 = por %p200, %p201
      %p203 = scmp.le.s32.totalorder 1, %s15
      %p204 = scmp.lt.s32.totalorder %s15, 3
      %p205 = pnand %p203, %p204
      %p206 = pneg %p205
      // Predicated region
      $region9: #{tpu_custom_call.1} parent=5 // pred_check
        _
      $region10: #{tpu_custom_call.1} parent=5 // pred_check_branch
        %208 = sbr.rel (%p205) target = $region12
      $region11: #{tpu_custom_call.1} parent=5 // pred_region
        %s209 = ssub.s32 %s15, 1
        // Predicated region
        $region13: #{tpu_custom_call.1} parent=11 // pred_check
          %p210 = pneg %p90
        $region14: #{tpu_custom_call.1} parent=11 // pred_check_branch
          %212 = sbr.rel (%p210) target = $region16
        $region15: #{tpu_custom_call.1} parent=11 // pred_region
          %p213 = scmp.lt.s32.totalorder %s27, 0
          %s214 = scalar_select %p213, %s27, 0
          %s215 = smul.addr %s214, 4
          %s216 = scalar_lea.vmem %s1, %s215
        $region16: #{tpu_custom_call.1} parent=11 // pred_fallthru
          _
        // Predicated region
        $region17: #{tpu_custom_call.1} parent=11 // pred_check
          %p217 = pneg %p111
        $region18: #{tpu_custom_call.1} parent=11 // pred_check_branch
          %219 = sbr.rel (%p217) target = $region20
        $region19: #{tpu_custom_call.1} parent=11 // pred_region
          _
        $region20: #{tpu_custom_call.1} parent=11 // pred_fallthru
          _
      $region12: #{tpu_custom_call.1} parent=5 // pred_fallthru
        _
      %p220 = scmp.lt.s32.totalorder %s15, 2
      // Predicated region
      $region21: #{tpu_custom_call.1} parent=5 // pred_check
        %p221 = pneg %p220
      $region22: #{tpu_custom_call.1} parent=5 // pred_check_branch
        %223 = sbr.rel (%p221) target = $region24
      $region23: #{tpu_custom_call.1} parent=5 // pred_region
        // Predicated region
        $region25: #{tpu_custom_call.1} parent=23 // pred_check
          %p224 = pneg %p58
        $region26: #{tpu_custom_call.1} parent=23 // pred_check_branch
          %226 = sbr.rel (%p224) target = $region28
        $region27: #{tpu_custom_call.1} parent=23 // pred_region
          %s227 = smul.u32 4, %s24
          %s228 = smul.u32 32, %s23
          %p229 = scmp.lt.s32.totalorder %s22, 1
          %s230 = scalar_select %p229, %s22, 1
          %p231 = scmp.lt.s32.totalorder %s227, 3
          %s232 = scalar_select %p231, %s227, 3
          %p233 = scmp.lt.s32.totalorder %s228, 31
          %s234 = scalar_select %p233, %s228, 31
          %s235 = smul.addr %s232, 32
          %s236 = sadd.s32 %s234, %s235
          %s237 = smul.addr %s230, 128
          %s238 = sadd.s32 %s236, %s237
          %s239 = smul.addr %s238, 4
          %s240 = scalar_lea.vmem %s0, %s239
          %s241 = smul.u32 4, %s24
          %s242 = smul.u32 32, %s23
        $region28: #{tpu_custom_call.1} parent=23 // pred_fallthru
          _
      $region24: #{tpu_custom_call.1} parent=5 // pred_fallthru
        _
      %p243 = scmp.le.s32.totalorder 1, %s15
      %p244 = scmp.lt.s32.totalorder %s15, 3
      %p245 = pnand %p243, %p244
      %p246 = pneg %p245
      // Predicated region
      $region29: #{tpu_custom_call.1} parent=5 // pred_check
        _
      $region30: #{tpu_custom_call.1} parent=5 // pred_check_branch
        %248 = sbr.rel (%p245) target = $region32
      $region31: #{tpu_custom_call.1} parent=5 // pred_region
        %s249 = ssub.s32 %s15, 1
        %s250 = smul.u32 4, %s27
        %s251 = smul.u32 32, %s26
        %p252 = scmp.lt.s32.totalorder %s25, 1
        %s253 = scalar_select %p252, %s25, 1
        %p254 = scmp.lt.s32.totalorder %s250, 3
        %s255 = scalar_select %p254, %s250, 3
        %p256 = scmp.lt.s32.totalorder %s251, 31
        %s257 = scalar_select %p256, %s251, 31
        %s258 = smul.addr %s255, 32
        %s259 = sadd.s32 %s257, %s258
        %s260 = smul.addr %s253, 128
        %s261 = sadd.s32 %s259, %s260
        %s262 = smul.addr %s261, 4
        %s263 = scalar_lea.vmem %s0, %s262
        %p264 = pneg %p64
        %p265 = pneg %p61
        %p266 = scmp.lt.s32.totalorder %s27, 0
        %s267 = scalar_select %p266, %s27, 0
        %s268 = smul.addr %s267, 4
        %s269 = scalar_lea.vmem %s1, %s268
        %p270 = pneg %p90
        %p271 = pneg %p87
        %p272 = pneg %p111
        %p273 = pneg %p108
        %p274 = pneg %p139
        %p275 = pneg %p136
        %s276 = sand.u32 %s126, 1
        %s277 = scalar_lea.sflag [#allocation4], %s276
        %s278 = sand.u32 %s126, 1
        %s279 = smul.addr %s278, 512
        %s280 = scalar_lea.vmem [#allocation3], %s279
        %p281 = pneg %p167
        %p282 = pneg %p164
        %s283 = sadd.s32 %s25, %s26
        %p284 = scmp.lt.s32.totalorder %s283, 1
        %s285 = scalar_select %p284, %s283, 1
        %s286 = smul.addr %s285, 4
        %s287 = smul.addr %s286, 8
        %s288 = scalar_lea.vmem %s4, %s287
        %p289 = pneg %p195
        %p290 = pneg %p192
        %s291 = sadd.s32 %s25, %s26
        %p292 = scmp.lt.s32.totalorder %s291, 1
        %s293 = scalar_select %p292, %s291, 1
        %s294 = smul.addr %s293, 4
        %s295 = smul.addr %s294, 8
        %s296 = scalar_lea.vmem %s5, %s295
        %s297 = smul.u32 4, %s27
        %s298 = smul.u32 32, %s26
        %p299 = scmp.lt.s32.totalorder %s25, 1
        %s300 = scalar_select %p299, %s25, 1
        %p301 = scmp.lt.s32.totalorder %s297, 3
        %s302 = scalar_select %p301, %s297, 3
        %p303 = scmp.lt.s32.totalorder %s298, 31
        %s304 = scalar_select %p303, %s298, 31
        %s305 = smul.addr %s302, 32
        %s306 = sadd.s32 %s304, %s305
        %s307 = smul.addr %s300, 128
        %s308 = sadd.s32 %s306, %s307
        %s309 = smul.addr %s308, 4
        %s310 = scalar_lea.vmem %s0, %s309
        %s311 = smul.u32 4, %s27
        %s312 = smul.u32 32, %s26
        %p313 = scmp.lt.s32.totalorder %s27, 0
        %s314 = scalar_select %p313, %s27, 0
        %s315 = smul.addr %s314, 4
        %s316 = scalar_lea.vmem %s1, %s315
        %s317 = smul.u32 32, %s26
        %s318 = sadd.s32 %s25, %s26
        %p319 = scmp.lt.s32.totalorder %s318, 1
        %s320 = scalar_select %p319, %s318, 1
        %s321 = smul.addr %s320, 4
        %s322 = smul.addr %s321, 8
        %s323 = scalar_lea.vmem %s4, %s322
        %s324 = sadd.s32 %s25, %s26
        %s325 = sadd.s32 %s25, %s26
        %p326 = scmp.lt.s32.totalorder %s325, 1
        %s327 = scalar_select %p326, %s325, 1
        %s328 = smul.addr %s327, 4
        %s329 = smul.addr %s328, 8
        %s330 = scalar_lea.vmem %s5, %s329
        %s331 = sadd.s32 %s25, %s26
        %p333 = scmp.eq.s32.totalorder %s27, 0
        // Predicated region
        $region33: #{tpu_custom_call.1} parent=31 // pred_check
          %p334 = pneg %p333
        $region34: #{tpu_custom_call.1} parent=31 // pred_check_branch
          %336 = sbr.rel (%p334) target = $region36
        $region35: #{tpu_custom_call.1} parent=31 // pred_region
          %337 = vst [vmem:[#allocation2] sm:$0xff] 0.0
          %338 = vst [vmem:[#allocation2 + $0x8] sm:$0xff] 0.0
          %339 = vst [vmem:[#allocation2 + $0x10] sm:$0xff] 0.0
          %340 = vst [vmem:[#allocation2 + $0x18] sm:$0xff] 0.0
          %341 = vst [vmem:[#allocation2 + $0x20] sm:$0xff] 0.0
          %342 = vst [vmem:[#allocation2 + $0x28] sm:$0xff] 0.0
          %343 = vst [vmem:[#allocation2 + $0x30] sm:$0xff] 0.0
          %344 = vst [vmem:[#allocation2 + $0x38] sm:$0xff] 0.0
          %345 = vst [vmem:[#allocation2 + $0x40] sm:$0xff] 0.0
          %346 = vst [vmem:[#allocation2 + $0x48] sm:$0xff] 0.0
          %347 = vst [vmem:[#allocation2 + $0x50] sm:$0xff] 0.0
          %348 = vst [vmem:[#allocation2 + $0x58] sm:$0xff] 0.0
          %349 = vst [vmem:[#allocation2 + $0x60] sm:$0xff] 0.0
          %350 = vst [vmem:[#allocation2 + $0x68] sm:$0xff] 0.0
          %351 = vst [vmem:[#allocation2 + $0x70] sm:$0xff] 0.0
          %352 = vst [vmem:[#allocation2 + $0x78] sm:$0xff] 0.0
          %353 = vst [vmem:[#allocation2 + $0x80] sm:$0xff] 0.0
          %354 = vst [vmem:[#allocation2 + $0x88] sm:$0xff] 0.0
          %355 = vst [vmem:[#allocation2 + $0x90] sm:$0xff] 0.0
          %356 = vst [vmem:[#allocation2 + $0x98] sm:$0xff] 0.0
          %357 = vst [vmem:[#allocation2 + $0xa0] sm:$0xff] 0.0
          %358 = vst [vmem:[#allocation2 + $0xa8] sm:$0xff] 0.0
          %359 = vst [vmem:[#allocation2 + $0xb0] sm:$0xff] 0.0
          %360 = vst [vmem:[#allocation2 + $0xb8] sm:$0xff] 0.0
          %361 = vst [vmem:[#allocation2 + $0xc0] sm:$0xff] 0.0
          %362 = vst [vmem:[#allocation2 + $0xc8] sm:$0xff] 0.0
          %363 = vst [vmem:[#allocation2 + $0xd0] sm:$0xff] 0.0
          %364 = vst [vmem:[#allocation2 + $0xd8] sm:$0xff] 0.0
          %365 = vst [vmem:[#allocation2 + $0xe0] sm:$0xff] 0.0
          %366 = vst [vmem:[#allocation2 + $0xe8] sm:$0xff] 0.0
          %367 = vst [vmem:[#allocation2 + $0xf0] sm:$0xff] 0.0
          %368 = vst [vmem:[#allocation2 + $0xf8] sm:$0xff] 0.0
          %369 = vst [vmem:[#allocation2 + $0x100] sm:$0xff] 0.0
          %370 = vst [vmem:[#allocation2 + $0x108] sm:$0xff] 0.0
          %371 = vst [vmem:[#allocation2 + $0x110] sm:$0xff] 0.0
          %372 = vst [vmem:[#allocation2 + $0x118] sm:$0xff] 0.0
          %373 = vst [vmem:[#allocation2 + $0x120] sm:$0xff] 0.0
          %374 = vst [vmem:[#allocation2 + $0x128] sm:$0xff] 0.0
          %375 = vst [vmem:[#allocation2 + $0x130] sm:$0xff] 0.0
          %376 = vst [vmem:[#allocation2 + $0x138] sm:$0xff] 0.0
          %377 = vst [vmem:[#allocation2 + $0x140] sm:$0xff] 0.0
          %378 = vst [vmem:[#allocation2 + $0x148] sm:$0xff] 0.0
          %379 = vst [vmem:[#allocation2 + $0x150] sm:$0xff] 0.0
          %380 = vst [vmem:[#allocation2 + $0x158] sm:$0xff] 0.0
          %381 = vst [vmem:[#allocation2 + $0x160] sm:$0xff] 0.0
          %382 = vst [vmem:[#allocation2 + $0x168] sm:$0xff] 0.0
          %383 = vst [vmem:[#allocation2 + $0x170] sm:$0xff] 0.0
          %384 = vst [vmem:[#allocation2 + $0x178] sm:$0xff] 0.0
          %385 = vst [vmem:[#allocation2 + $0x180] sm:$0xff] 0.0
          %386 = vst [vmem:[#allocation2 + $0x188] sm:$0xff] 0.0
          %387 = vst [vmem:[#allocation2 + $0x190] sm:$0xff] 0.0
          %388 = vst [vmem:[#allocation2 + $0x198] sm:$0xff] 0.0
          %389 = vst [vmem:[#allocation2 + $0x1a0] sm:$0xff] 0.0
          %390 = vst [vmem:[#allocation2 + $0x1a8] sm:$0xff] 0.0
          %391 = vst [vmem:[#allocation2 + $0x1b0] sm:$0xff] 0.0
          %392 = vst [vmem:[#allocation2 + $0x1b8] sm:$0xff] 0.0
          %393 = vst [vmem:[#allocation2 + $0x1c0] sm:$0xff] 0.0
          %394 = vst [vmem:[#allocation2 + $0x1c8] sm:$0xff] 0.0
          %395 = vst [vmem:[#allocation2 + $0x1d0] sm:$0xff] 0.0
          %396 = vst [vmem:[#allocation2 + $0x1d8] sm:$0xff] 0.0
          %397 = vst [vmem:[#allocation2 + $0x1e0] sm:$0xff] 0.0
          %398 = vst [vmem:[#allocation2 + $0x1e8] sm:$0xff] 0.0
          %399 = vst [vmem:[#allocation2 + $0x1f0] sm:$0xff] 0.0
          %400 = vst [vmem:[#allocation2 + $0x1f8] sm:$0xff] 0.0
          %401 = vst [vmem:[#allocation2 + $0x200] sm:$0xff] 0.0
          %402 = vst [vmem:[#allocation2 + $0x208] sm:$0xff] 0.0
          %403 = vst [vmem:[#allocation2 + $0x210] sm:$0xff] 0.0
          %404 = vst [vmem:[#allocation2 + $0x218] sm:$0xff] 0.0
          %405 = vst [vmem:[#allocation2 + $0x220] sm:$0xff] 0.0
          %406 = vst [vmem:[#allocation2 + $0x228] sm:$0xff] 0.0
          %407 = vst [vmem:[#allocation2 + $0x230] sm:$0xff] 0.0
          %408 = vst [vmem:[#allocation2 + $0x238] sm:$0xff] 0.0
          %409 = vst [vmem:[#allocation2 + $0x240] sm:$0xff] 0.0
          %410 = vst [vmem:[#allocation2 + $0x248] sm:$0xff] 0.0
          %411 = vst [vmem:[#allocation2 + $0x250] sm:$0xff] 0.0
          %412 = vst [vmem:[#allocation2 + $0x258] sm:$0xff] 0.0
          %413 = vst [vmem:[#allocation2 + $0x260] sm:$0xff] 0.0
          %414 = vst [vmem:[#allocation2 + $0x268] sm:$0xff] 0.0
          %415 = vst [vmem:[#allocation2 + $0x270] sm:$0xff] 0.0
          %416 = vst [vmem:[#allocation2 + $0x278] sm:$0xff] 0.0
          %417 = vst [vmem:[#allocation2 + $0x280] sm:$0xff] 0.0
          %418 = vst [vmem:[#allocation2 + $0x288] sm:$0xff] 0.0
          %419 = vst [vmem:[#allocation2 + $0x290] sm:$0xff] 0.0
          %420 = vst [vmem:[#allocation2 + $0x298] sm:$0xff] 0.0
          %421 = vst [vmem:[#allocation2 + $0x2a0] sm:$0xff] 0.0
          %422 = vst [vmem:[#allocation2 + $0x2a8] sm:$0xff] 0.0
          %423 = vst [vmem:[#allocation2 + $0x2b0] sm:$0xff] 0.0
          %424 = vst [vmem:[#allocation2 + $0x2b8] sm:$0xff] 0.0
          %425 = vst [vmem:[#allocation2 + $0x2c0] sm:$0xff] 0.0
          %426 = vst [vmem:[#allocation2 + $0x2c8] sm:$0xff] 0.0
          %427 = vst [vmem:[#allocation2 + $0x2d0] sm:$0xff] 0.0
          %428 = vst [vmem:[#allocation2 + $0x2d8] sm:$0xff] 0.0
          %429 = vst [vmem:[#allocation2 + $0x2e0] sm:$0xff] 0.0
          %430 = vst [vmem:[#allocation2 + $0x2e8] sm:$0xff] 0.0
          %431 = vst [vmem:[#allocation2 + $0x2f0] sm:$0xff] 0.0
          %432 = vst [vmem:[#allocation2 + $0x2f8] sm:$0xff] 0.0
          %433 = vst [vmem:[#allocation2 + $0x300] sm:$0xff] 0.0
          %434 = vst [vmem:[#allocation2 + $0x308] sm:$0xff] 0.0
          %435 = vst [vmem:[#allocation2 + $0x310] sm:$0xff] 0.0
          %436 = vst [vmem:[#allocation2 + $0x318] sm:$0xff] 0.0
          %437 = vst [vmem:[#allocation2 + $0x320] sm:$0xff] 0.0
          %438 = vst [vmem:[#allocation2 + $0x328] sm:$0xff] 0.0
          %439 = vst [vmem:[#allocation2 + $0x330] sm:$0xff] 0.0
          %440 = vst [vmem:[#allocation2 + $0x338] sm:$0xff] 0.0
          %441 = vst [vmem:[#allocation2 + $0x340] sm:$0xff] 0.0
          %442 = vst [vmem:[#allocation2 + $0x348] sm:$0xff] 0.0
          %443 = vst [vmem:[#allocation2 + $0x350] sm:$0xff] 0.0
          %444 = vst [vmem:[#allocation2 + $0x358] sm:$0xff] 0.0
          %445 = vst [vmem:[#allocation2 + $0x360] sm:$0xff] 0.0
          %446 = vst [vmem:[#allocation2 + $0x368] sm:$0xff] 0.0
          %447 = vst [vmem:[#allocation2 + $0x370] sm:$0xff] 0.0
          %448 = vst [vmem:[#allocation2 + $0x378] sm:$0xff] 0.0
          %449 = vst [vmem:[#allocation2 + $0x380] sm:$0xff] 0.0
          %450 = vst [vmem:[#allocation2 + $0x388] sm:$0xff] 0.0
          %451 = vst [vmem:[#allocation2 + $0x390] sm:$0xff] 0.0
          %452 = vst [vmem:[#allocation2 + $0x398] sm:$0xff] 0.0
          %453 = vst [vmem:[#allocation2 + $0x3a0] sm:$0xff] 0.0
          %454 = vst [vmem:[#allocation2 + $0x3a8] sm:$0xff] 0.0
          %455 = vst [vmem:[#allocation2 + $0x3b0] sm:$0xff] 0.0
          %456 = vst [vmem:[#allocation2 + $0x3b8] sm:$0xff] 0.0
          %457 = vst [vmem:[#allocation2 + $0x3c0] sm:$0xff] 0.0
          %458 = vst [vmem:[#allocation2 + $0x3c8] sm:$0xff] 0.0
          %459 = vst [vmem:[#allocation2 + $0x3d0] sm:$0xff] 0.0
          %460 = vst [vmem:[#allocation2 + $0x3d8] sm:$0xff] 0.0
          %461 = vst [vmem:[#allocation2 + $0x3e0] sm:$0xff] 0.0
          %462 = vst [vmem:[#allocation2 + $0x3e8] sm:$0xff] 0.0
          %463 = vst [vmem:[#allocation2 + $0x3f0] sm:$0xff] 0.0
          %464 = vst [vmem:[#allocation2 + $0x3f8] sm:$0xff] 0.0
        $region36: #{tpu_custom_call.1} parent=31 // pred_fallthru
          _
        %v465 = vld [vmem:[#allocation2] sm:$0xff]
        %v466 = vld [vmem:[#allocation2 + $0x8] sm:$0xff]
        %v467 = vld [vmem:[#allocation2 + $0x10] sm:$0xff]
        %v468 = vld [vmem:[#allocation2 + $0x18] sm:$0xff]
        %v469 = vld [vmem:[#allocation2 + $0x20] sm:$0xff]
        %v470 = vld [vmem:[#allocation2 + $0x28] sm:$0xff]
        %v471 = vld [vmem:[#allocation2 + $0x30] sm:$0xff]
        %v472 = vld [vmem:[#allocation2 + $0x38] sm:$0xff]
        %v473 = vld [vmem:[#allocation2 + $0x40] sm:$0xff]
        %v474 = vld [vmem:[#allocation2 + $0x48] sm:$0xff]
        %v475 = vld [vmem:[#allocation2 + $0x50] sm:$0xff]
        %v476 = vld [vmem:[#allocation2 + $0x58] sm:$0xff]
        %v477 = vld [vmem:[#allocation2 + $0x60] sm:$0xff]
        %v478 = vld [vmem:[#allocation2 + $0x68] sm:$0xff]
        %v479 = vld [vmem:[#allocation2 + $0x70] sm:$0xff]
        %v480 = vld [vmem:[#allocation2 + $0x78] sm:$0xff]
        %v481 = vld [vmem:[#allocation2 + $0x80] sm:$0xff]
        %v482 = vld [vmem:[#allocation2 + $0x88] sm:$0xff]
        %v483 = vld [vmem:[#allocation2 + $0x90] sm:$0xff]
        %v484 = vld [vmem:[#allocation2 + $0x98] sm:$0xff]
        %v485 = vld [vmem:[#allocation2 + $0xa0] sm:$0xff]
        %v486 = vld [vmem:[#allocation2 + $0xa8] sm:$0xff]
        %v487 = vld [vmem:[#allocation2 + $0xb0] sm:$0xff]
        %v488 = vld [vmem:[#allocation2 + $0xb8] sm:$0xff]
        %v489 = vld [vmem:[#allocation2 + $0xc0] sm:$0xff]
        %v490 = vld [vmem:[#allocation2 + $0xc8] sm:$0xff]
        %v491 = vld [vmem:[#allocation2 + $0xd0] sm:$0xff]
        %v492 = vld [vmem:[#allocation2 + $0xd8] sm:$0xff]
        %v493 = vld [vmem:[#allocation2 + $0xe0] sm:$0xff]
        %v494 = vld [vmem:[#allocation2 + $0xe8] sm:$0xff]
        %v495 = vld [vmem:[#allocation2 + $0xf0] sm:$0xff]
        %v496 = vld [vmem:[#allocation2 + $0xf8] sm:$0xff]
        %v497 = vld [vmem:[#allocation2 + $0x100] sm:$0xff]
        %v498 = vld [vmem:[#allocation2 + $0x108] sm:$0xff]
        %v499 = vld [vmem:[#allocation2 + $0x110] sm:$0xff]
        %v500 = vld [vmem:[#allocation2 + $0x118] sm:$0xff]
        %v501 = vld [vmem:[#allocation2 + $0x120] sm:$0xff]
        %v502 = vld [vmem:[#allocation2 + $0x128] sm:$0xff]
        %v503 = vld [vmem:[#allocation2 + $0x130] sm:$0xff]
        %v504 = vld [vmem:[#allocation2 + $0x138] sm:$0xff]
        %v505 = vld [vmem:[#allocation2 + $0x140] sm:$0xff]
        %v506 = vld [vmem:[#allocation2 + $0x148] sm:$0xff]
        %v507 = vld [vmem:[#allocation2 + $0x150] sm:$0xff]
        %v508 = vld [vmem:[#allocation2 + $0x158] sm:$0xff]
        %v509 = vld [vmem:[#allocation2 + $0x160] sm:$0xff]
        %v510 = vld [vmem:[#allocation2 + $0x168] sm:$0xff]
        %v511 = vld [vmem:[#allocation2 + $0x170] sm:$0xff]
        %v512 = vld [vmem:[#allocation2 + $0x178] sm:$0xff]
        %v513 = vld [vmem:[#allocation2 + $0x180] sm:$0xff]
        %v514 = vld [vmem:[#allocation2 + $0x188] sm:$0xff]
        %v515 = vld [vmem:[#allocation2 + $0x190] sm:$0xff]
        %v516 = vld [vmem:[#allocation2 + $0x198] sm:$0xff]
        %v517 = vld [vmem:[#allocation2 + $0x1a0] sm:$0xff]
        %v518 = vld [vmem:[#allocation2 + $0x1a8] sm:$0xff]
        %v519 = vld [vmem:[#allocation2 + $0x1b0] sm:$0xff]
        %v520 = vld [vmem:[#allocation2 + $0x1b8] sm:$0xff]
        %v521 = vld [vmem:[#allocation2 + $0x1c0] sm:$0xff]
        %v522 = vld [vmem:[#allocation2 + $0x1c8] sm:$0xff]
        %v523 = vld [vmem:[#allocation2 + $0x1d0] sm:$0xff]
        %v524 = vld [vmem:[#allocation2 + $0x1d8] sm:$0xff]
        %v525 = vld [vmem:[#allocation2 + $0x1e0] sm:$0xff]
        %v526 = vld [vmem:[#allocation2 + $0x1e8] sm:$0xff]
        %v527 = vld [vmem:[#allocation2 + $0x1f0] sm:$0xff]
        %v528 = vld [vmem:[#allocation2 + $0x1f8] sm:$0xff]
        %v529 = vld [vmem:[#allocation2 + $0x200] sm:$0xff]
        %v530 = vld [vmem:[#allocation2 + $0x208] sm:$0xff]
        %v531 = vld [vmem:[#allocation2 + $0x210] sm:$0xff]
        %v532 = vld [vmem:[#allocation2 + $0x218] sm:$0xff]
        %v533 = vld [vmem:[#allocation2 + $0x220] sm:$0xff]
        %v534 = vld [vmem:[#allocation2 + $0x228] sm:$0xff]
        %v535 = vld [vmem:[#allocation2 + $0x230] sm:$0xff]
        %v536 = vld [vmem:[#allocation2 + $0x238] sm:$0xff]
        %v537 = vld [vmem:[#allocation2 + $0x240] sm:$0xff]
        %v538 = vld [vmem:[#allocation2 + $0x248] sm:$0xff]
        %v539 = vld [vmem:[#allocation2 + $0x250] sm:$0xff]
        %v540 = vld [vmem:[#allocation2 + $0x258] sm:$0xff]
        %v541 = vld [vmem:[#allocation2 + $0x260] sm:$0xff]
        %v542 = vld [vmem:[#allocation2 + $0x268] sm:$0xff]
        %v543 = vld [vmem:[#allocation2 + $0x270] sm:$0xff]
        %v544 = vld [vmem:[#allocation2 + $0x278] sm:$0xff]
        %v545 = vld [vmem:[#allocation2 + $0x280] sm:$0xff]
        %v546 = vld [vmem:[#allocation2 + $0x288] sm:$0xff]
        %v547 = vld [vmem:[#allocation2 + $0x290] sm:$0xff]
        %v548 = vld [vmem:[#allocation2 + $0x298] sm:$0xff]
        %v549 = vld [vmem:[#allocation2 + $0x2a0] sm:$0xff]
        %v550 = vld [vmem:[#allocation2 + $0x2a8] sm:$0xff]
        %v551 = vld [vmem:[#allocation2 + $0x2b0] sm:$0xff]
        %v552 = vld [vmem:[#allocation2 + $0x2b8] sm:$0xff]
        %v553 = vld [vmem:[#allocation2 + $0x2c0] sm:$0xff]
        %v554 = vld [vmem:[#allocation2 + $0x2c8] sm:$0xff]
        %v555 = vld [vmem:[#allocation2 + $0x2d0] sm:$0xff]
        %v556 = vld [vmem:[#allocation2 + $0x2d8] sm:$0xff]
        %v557 = vld [vmem:[#allocation2 + $0x2e0] sm:$0xff]
        %v558 = vld [vmem:[#allocation2 + $0x2e8] sm:$0xff]
        %v559 = vld [vmem:[#allocation2 + $0x2f0] sm:$0xff]
        %v560 = vld [vmem:[#allocation2 + $0x2f8] sm:$0xff]
        %v561 = vld [vmem:[#allocation2 + $0x300] sm:$0xff]
        %v562 = vld [vmem:[#allocation2 + $0x308] sm:$0xff]
        %v563 = vld [vmem:[#allocation2 + $0x310] sm:$0xff]
        %v564 = vld [vmem:[#allocation2 + $0x318] sm:$0xff]
        %v565 = vld [vmem:[#allocation2 + $0x320] sm:$0xff]
        %v566 = vld [vmem:[#allocation2 + $0x328] sm:$0xff]
        %v567 = vld [vmem:[#allocation2 + $0x330] sm:$0xff]
        %v568 = vld [vmem:[#allocation2 + $0x338] sm:$0xff]
        %v569 = vld [vmem:[#allocation2 + $0x340] sm:$0xff]
        %v570 = vld [vmem:[#allocation2 + $0x348] sm:$0xff]
        %v571 = vld [vmem:[#allocation2 + $0x350] sm:$0xff]
        %v572 = vld [vmem:[#allocation2 + $0x358] sm:$0xff]
        %v573 = vld [vmem:[#allocation2 + $0x360] sm:$0xff]
        %v574 = vld [vmem:[#allocation2 + $0x368] sm:$0xff]
        %v575 = vld [vmem:[#allocation2 + $0x370] sm:$0xff]
        %v576 = vld [vmem:[#allocation2 + $0x378] sm:$0xff]
        %v577 = vld [vmem:[#allocation2 + $0x380] sm:$0xff]
        %v578 = vld [vmem:[#allocation2 + $0x388] sm:$0xff]
        %v579 = vld [vmem:[#allocation2 + $0x390] sm:$0xff]
        %v580 = vld [vmem:[#allocation2 + $0x398] sm:$0xff]
        %v581 = vld [vmem:[#allocation2 + $0x3a0] sm:$0xff]
        %v582 = vld [vmem:[#allocation2 + $0x3a8] sm:$0xff]
        %v583 = vld [vmem:[#allocation2 + $0x3b0] sm:$0xff]
        %v584 = vld [vmem:[#allocation2 + $0x3b8] sm:$0xff]
        %v585 = vld [vmem:[#allocation2 + $0x3c0] sm:$0xff]
        %v586 = vld [vmem:[#allocation2 + $0x3c8] sm:$0xff]
        %v587 = vld [vmem:[#allocation2 + $0x3d0] sm:$0xff]
        %v588 = vld [vmem:[#allocation2 + $0x3d8] sm:$0xff]
        %v589 = vld [vmem:[#allocation2 + $0x3e0] sm:$0xff]
        %v590 = vld [vmem:[#allocation2 + $0x3e8] sm:$0xff]
        %v591 = vld [vmem:[#allocation2 + $0x3f0] sm:$0xff]
        %v592 = vld [vmem:[#allocation2 + $0x3f8] sm:$0xff]
        %v593 = vld [vmem:[%s316] sm:$0xf]
        %v594 = vld [vmem:[%s316 + $0x4] sm:$0xf]
        %v595 = vld [vmem:[%s316 + $0x8] sm:$0xf]
        %v596 = vld [vmem:[%s316 + $0xc] sm:$0xf]
        %v597 = vld [vmem:[%s310] sm:$0xff]
        %v598 = vld [vmem:[%s310 + $0x8] sm:$0xff]
        %v599 = vld [vmem:[%s310 + $0x10] sm:$0xff]
        %v600 = vld [vmem:[%s310 + $0x18] sm:$0xff]
        %v601 = vld [vmem:[%s310 + $0x20] sm:$0xff]
        %v602 = vld [vmem:[%s310 + $0x28] sm:$0xff]
        %v603 = vld [vmem:[%s310 + $0x30] sm:$0xff]
        %v604 = vld [vmem:[%s310 + $0x38] sm:$0xff]
        %v605 = vld [vmem:[%s310 + $0x40] sm:$0xff]
        %v606 = vld [vmem:[%s310 + $0x48] sm:$0xff]
        %v607 = vld [vmem:[%s310 + $0x50] sm:$0xff]
        %v608 = vld [vmem:[%s310 + $0x58] sm:$0xff]
        %v609 = vld [vmem:[%s310 + $0x60] sm:$0xff]
        %v610 = vld [vmem:[%s310 + $0x68] sm:$0xff]
        %v611 = vld [vmem:[%s310 + $0x70] sm:$0xff]
        %v612 = vld [vmem:[%s310 + $0x78] sm:$0xff]
        %v613 = vld [vmem:[%s310 + $0x80] sm:$0xff]
        %v614 = vld [vmem:[%s310 + $0x88] sm:$0xff]
        %v615 = vld [vmem:[%s310 + $0x90] sm:$0xff]
        %v616 = vld [vmem:[%s310 + $0x98] sm:$0xff]
        %v617 = vld [vmem:[%s310 + $0xa0] sm:$0xff]
        %v618 = vld [vmem:[%s310 + $0xa8] sm:$0xff]
        %v619 = vld [vmem:[%s310 + $0xb0] sm:$0xff]
        %v620 = vld [vmem:[%s310 + $0xb8] sm:$0xff]
        %v621 = vld [vmem:[%s310 + $0xc0] sm:$0xff]
        %v622 = vld [vmem:[%s310 + $0xc8] sm:$0xff]
        %v623 = vld [vmem:[%s310 + $0xd0] sm:$0xff]
        %v624 = vld [vmem:[%s310 + $0xd8] sm:$0xff]
        %v625 = vld [vmem:[%s310 + $0xe0] sm:$0xff]
        %v626 = vld [vmem:[%s310 + $0xe8] sm:$0xff]
        %v627 = vld [vmem:[%s310 + $0xf0] sm:$0xff]
        %v628 = vld [vmem:[%s310 + $0xf8] sm:$0xff]
        %v629 = vld [vmem:[%s310 + $0x100] sm:$0xff]
        %v630 = vld [vmem:[%s310 + $0x108] sm:$0xff]
        %v631 = vld [vmem:[%s310 + $0x110] sm:$0xff]
        %v632 = vld [vmem:[%s310 + $0x118] sm:$0xff]
        %v633 = vld [vmem:[%s310 + $0x120] sm:$0xff]
        %v634 = vld [vmem:[%s310 + $0x128] sm:$0xff]
        %v635 = vld [vmem:[%s310 + $0x130] sm:$0xff]
        %v636 = vld [vmem:[%s310 + $0x138] sm:$0xff]
        %v637 = vld [vmem:[%s310 + $0x140] sm:$0xff]
        %v638 = vld [vmem:[%s310 + $0x148] sm:$0xff]
        %v639 = vld [vmem:[%s310 + $0x150] sm:$0xff]
        %v640 = vld [vmem:[%s310 + $0x158] sm:$0xff]
        %v641 = vld [vmem:[%s310 + $0x160] sm:$0xff]
        %v642 = vld [vmem:[%s310 + $0x168] sm:$0xff]
        %v643 = vld [vmem:[%s310 + $0x170] sm:$0xff]
        %v644 = vld [vmem:[%s310 + $0x178] sm:$0xff]
        %v645 = vld [vmem:[%s310 + $0x180] sm:$0x33]
        %v646 = vld [vmem:[%s310 + $0x188] sm:$0x33]
        %v647 = vld [vmem:[%s310 + $0x190] sm:$0x33]
        %v648 = vld [vmem:[%s310 + $0x198] sm:$0x33]
        %v649 = vld [vmem:[%s310 + $0x1a0] sm:$0x33]
        %v650 = vld [vmem:[%s310 + $0x1a8] sm:$0x33]
        %v651 = vld [vmem:[%s310 + $0x1b0] sm:$0x33]
        %v652 = vld [vmem:[%s310 + $0x1b8] sm:$0x33]
        %v653 = vld [vmem:[%s310 + $0x1c0] sm:$0x33]
        %v654 = vld [vmem:[%s310 + $0x1c8] sm:$0x33]
        %v655 = vld [vmem:[%s310 + $0x1d0] sm:$0x33]
        %v656 = vld [vmem:[%s310 + $0x1d8] sm:$0x33]
        %v657 = vld [vmem:[%s310 + $0x1e0] sm:$0x33]
        %v658 = vld [vmem:[%s310 + $0x1e8] sm:$0x33]
        %v659 = vld [vmem:[%s310 + $0x1f0] sm:$0x33]
        %v660 = vld [vmem:[%s310 + $0x1f8] sm:$0x33]
        %v665 = vunpack.c.l.b16 %v593
        %v666 = vunpack.c.l.b16 %v594
        %v667 = vunpack.c.l.b16 %v595
        %v668 = vunpack.c.l.b16 %v596
        %v669 = vpack.c.b16 %v666, %v665
        %v670 = vpack.c.b16 %v668, %v667
        %v735 = vunpack.c.l.b16 %v597
        %v736 = vunpack.c.h.b16 %v597
        %v737 = vunpack.c.l.b16 %v598
        %v738 = vunpack.c.h.b16 %v598
        %v739 = vunpack.c.l.b16 %v599
        %v740 = vunpack.c.h.b16 %v599
        %v741 = vunpack.c.l.b16 %v600
        %v742 = vunpack.c.h.b16 %v600
        %v743 = vunpack.c.l.b16 %v601
        %v744 = vunpack.c.h.b16 %v601
        %v745 = vunpack.c.l.b16 %v602
        %v746 = vunpack.c.h.b16 %v602
        %v747 = vunpack.c.l.b16 %v603
        %v748 = vunpack.c.h.b16 %v603
        %v749 = vunpack.c.l.b16 %v604
        %v750 = vunpack.c.h.b16 %v604
        %v751 = vunpack.c.l.b16 %v605
        %v752 = vunpack.c.h.b16 %v605
        %v753 = vunpack.c.l.b16 %v606
        %v754 = vunpack.c.h.b16 %v606
        %v755 = vunpack.c.l.b16 %v607
        %v756 = vunpack.c.h.b16 %v607
        %v757 = vunpack.c.l.b16 %v608
        %v758 = vunpack.c.h.b16 %v608
        %v759 = vunpack.c.l.b16 %v609
        %v760 = vunpack.c.h.b16 %v609
        %v761 = vunpack.c.l.b16 %v610
        %v762 = vunpack.c.h.b16 %v610
        %v763 = vunpack.c.l.b16 %v611
        %v764 = vunpack.c.h.b16 %v611
        %v765 = vunpack.c.l.b16 %v612
        %v766 = vunpack.c.h.b16 %v612
        %v767 = vunpack.c.l.b16 %v613
        %v768 = vunpack.c.h.b16 %v613
        %v769 = vunpack.c.l.b16 %v614
        %v770 = vunpack.c.h.b16 %v614
        %v771 = vunpack.c.l.b16 %v615
        %v772 = vunpack.c.h.b16 %v615
        %v773 = vunpack.c.l.b16 %v616
        %v774 = vunpack.c.h.b16 %v616
        %v775 = vunpack.c.l.b16 %v617
        %v776 = vunpack.c.h.b16 %v617
        %v777 = vunpack.c.l.b16 %v618
        %v778 = vunpack.c.h.b16 %v618
        %v779 = vunpack.c.l.b16 %v619
        %v780 = vunpack.c.h.b16 %v619
        %v781 = vunpack.c.l.b16 %v620
        %v782 = vunpack.c.h.b16 %v620
        %v783 = vunpack.c.l.b16 %v621
        %v784 = vunpack.c.h.b16 %v621
        %v785 = vunpack.c.l.b16 %v622
        %v786 = vunpack.c.h.b16 %v622
        %v787 = vunpack.c.l.b16 %v623
        %v788 = vunpack.c.h.b16 %v623
        %v789 = vunpack.c.l.b16 %v624
        %v790 = vunpack.c.h.b16 %v624
        %v791 = vunpack.c.l.b16 %v625
        %v792 = vunpack.c.h.b16 %v625
        %v793 = vunpack.c.l.b16 %v626
        %v794 = vunpack.c.h.b16 %v626
        %v795 = vunpack.c.l.b16 %v627
        %v796 = vunpack.c.h.b16 %v627
        %v797 = vunpack.c.l.b16 %v628
        %v798 = vunpack.c.h.b16 %v628
        %v799 = vunpack.c.l.b16 %v629
        %v800 = vunpack.c.h.b16 %v629
        %v801 = vunpack.c.l.b16 %v630
        %v802 = vunpack.c.h.b16 %v630
        %v803 = vunpack.c.l.b16 %v631
        %v804 = vunpack.c.h.b16 %v631
        %v805 = vunpack.c.l.b16 %v632
        %v806 = vunpack.c.h.b16 %v632
        %v807 = vunpack.c.l.b16 %v633
        %v808 = vunpack.c.h.b16 %v633
        %v809 = vunpack.c.l.b16 %v634
        %v810 = vunpack.c.h.b16 %v634
        %v811 = vunpack.c.l.b16 %v635
        %v812 = vunpack.c.h.b16 %v635
        %v813 = vunpack.c.l.b16 %v636
        %v814 = vunpack.c.h.b16 %v636
        %v815 = vunpack.c.l.b16 %v637
        %v816 = vunpack.c.h.b16 %v637
        %v817 = vunpack.c.l.b16 %v638
        %v818 = vunpack.c.h.b16 %v638
        %v819 = vunpack.c.l.b16 %v639
        %v820 = vunpack.c.h.b16 %v639
        %v821 = vunpack.c.l.b16 %v640
        %v822 = vunpack.c.h.b16 %v640
        %v823 = vunpack.c.l.b16 %v641
        %v824 = vunpack.c.h.b16 %v641
        %v825 = vunpack.c.l.b16 %v642
        %v826 = vunpack.c.h.b16 %v642
        %v827 = vunpack.c.l.b16 %v643
        %v828 = vunpack.c.h.b16 %v643
        %v829 = vunpack.c.l.b16 %v644
        %v830 = vunpack.c.h.b16 %v644
        %v831 = vunpack.c.l.b16 %v645
        %v832 = vunpack.c.h.b16 %v645
        %v833 = vunpack.c.l.b16 %v646
        %v834 = vunpack.c.h.b16 %v646
        %v835 = vunpack.c.l.b16 %v647
        %v836 = vunpack.c.h.b16 %v647
        %v837 = vunpack.c.l.b16 %v648
        %v838 = vunpack.c.h.b16 %v648
        %v839 = vunpack.c.l.b16 %v649
        %v840 = vunpack.c.h.b16 %v649
        %v841 = vunpack.c.l.b16 %v650
        %v842 = vunpack.c.h.b16 %v650
        %v843 = vunpack.c.l.b16 %v651
        %v844 = vunpack.c.h.b16 %v651
        %v845 = vunpack.c.l.b16 %v652
        %v846 = vunpack.c.h.b16 %v652
        %v847 = vunpack.c.l.b16 %v653
        %v848 = vunpack.c.h.b16 %v653
        %v849 = vunpack.c.l.b16 %v654
        %v850 = vunpack.c.h.b16 %v654
        %v851 = vunpack.c.l.b16 %v655
        %v852 = vunpack.c.h.b16 %v655
        %v853 = vunpack.c.l.b16 %v656
        %v854 = vunpack.c.h.b16 %v656
        %v855 = vunpack.c.l.b16 %v657
        %v856 = vunpack.c.h.b16 %v657
        %v857 = vunpack.c.l.b16 %v658
        %v858 = vunpack.c.h.b16 %v658
        %v859 = vunpack.c.l.b16 %v659
        %v860 = vunpack.c.h.b16 %v659
        %v861 = vunpack.c.l.b16 %v660
        %v862 = vunpack.c.h.b16 %v660
        %v863 = vpack.c.b16 %v767, %v735
        %v864 = vpack.c.b16 %v768, %v736
        %v865 = vpack.c.b16 %v769, %v737
        %v866 = vpack.c.b16 %v770, %v738
        %v867 = vpack.c.b16 %v771, %v739
        %v868 = vpack.c.b16 %v772, %v740
        %v869 = vpack.c.b16 %v773, %v741
        %v870 = vpack.c.b16 %v774, %v742
        %v871 = vpack.c.b16 %v775, %v743
        %v872 = vpack.c.b16 %v776, %v744
        %v873 = vpack.c.b16 %v777, %v745
        %v874 = vpack.c.b16 %v778, %v746
        %v875 = vpack.c.b16 %v779, %v747
        %v876 = vpack.c.b16 %v780, %v748
        %v877 = vpack.c.b16 %v781, %v749
        %v878 = vpack.c.b16 %v782, %v750
        %v879 = vpack.c.b16 %v783, %v751
        %v880 = vpack.c.b16 %v784, %v752
        %v881 = vpack.c.b16 %v785, %v753
        %v882 = vpack.c.b16 %v786, %v754
        %v883 = vpack.c.b16 %v787, %v755
        %v884 = vpack.c.b16 %v788, %v756
        %v885 = vpack.c.b16 %v789, %v757
        %v886 = vpack.c.b16 %v790, %v758
        %v887 = vpack.c.b16 %v791, %v759
        %v888 = vpack.c.b16 %v792, %v760
        %v889 = vpack.c.b16 %v793, %v761
        %v890 = vpack.c.b16 %v794, %v762
        %v891 = vpack.c.b16 %v795, %v763
        %v892 = vpack.c.b16 %v796, %v764
        %v893 = vpack.c.b16 %v797, %v765
        %v894 = vpack.c.b16 %v798, %v766
        %v895 = vpack.c.b16 %v831, %v799
        %v896 = vpack.c.b16 %v832, %v800
        %v897 = vpack.c.b16 %v833, %v801
        %v898 = vpack.c.b16 %v834, %v802
        %v899 = vpack.c.b16 %v835, %v803
        %v900 = vpack.c.b16 %v836, %v804
        %v901 = vpack.c.b16 %v837, %v805
        %v902 = vpack.c.b16 %v838, %v806
        %v903 = vpack.c.b16 %v839, %v807
        %v904 = vpack.c.b16 %v840, %v808
        %v905 = vpack.c.b16 %v841, %v809
        %v906 = vpack.c.b16 %v842, %v810
        %v907 = vpack.c.b16 %v843, %v811
        %v908 = vpack.c.b16 %v844, %v812
        %v909 = vpack.c.b16 %v845, %v813
        %v910 = vpack.c.b16 %v846, %v814
        %v911 = vpack.c.b16 %v847, %v815
        %v912 = vpack.c.b16 %v848, %v816
        %v913 = vpack.c.b16 %v849, %v817
        %v914 = vpack.c.b16 %v850, %v818
        %v915 = vpack.c.b16 %v851, %v819
        %v916 = vpack.c.b16 %v852, %v820
        %v917 = vpack.c.b16 %v853, %v821
        %v918 = vpack.c.b16 %v854, %v822
        %v919 = vpack.c.b16 %v855, %v823
        %v920 = vpack.c.b16 %v856, %v824
        %v921 = vpack.c.b16 %v857, %v825
        %v922 = vpack.c.b16 %v858, %v826
        %v923 = vpack.c.b16 %v859, %v827
        %v924 = vpack.c.b16 %v860, %v828
        %v925 = vpack.c.b16 %v861, %v829
        %v926 = vpack.c.b16 %v862, %v830
        %vm959 = vcmask 220160
        %v961 = vsel %vm959, %v669, 0
        %v964 = vsel %vm959, %v670, 0
        %vm966 = vcmask 1044480
        %vm967 = vcmask 1045504
        %v968 = vsel %vm966, 4294967295, 65535
        %v969 = vsel %vm967, %v968, 0
        %v971 = vand.u32 %v895, %v969
        %v974 = vand.u32 %v896, %v969
        %v977 = vand.u32 %v897, %v969
        %v980 = vand.u32 %v898, %v969
        %v983 = vand.u32 %v899, %v969
        %v986 = vand.u32 %v900, %v969
        %v989 = vand.u32 %v901, %v969
        %v992 = vand.u32 %v902, %v969
        %v995 = vand.u32 %v903, %v969
        %v998 = vand.u32 %v904, %v969
        %v1001 = vand.u32 %v905, %v969
        %v1004 = vand.u32 %v906, %v969
        %v1007 = vand.u32 %v907, %v969
        %v1010 = vand.u32 %v908, %v969
        %v1013 = vand.u32 %v909, %v969
        %v1016 = vand.u32 %v910, %v969
        %v1019 = vand.u32 %v911, %v969
        %v1022 = vand.u32 %v912, %v969
        %v1025 = vand.u32 %v913, %v969
        %v1028 = vand.u32 %v914, %v969
        %v1031 = vand.u32 %v915, %v969
        %v1034 = vand.u32 %v916, %v969
        %v1037 = vand.u32 %v917, %v969
        %v1040 = vand.u32 %v918, %v969
        %v1043 = vand.u32 %v919, %v969
        %v1046 = vand.u32 %v920, %v969
        %v1049 = vand.u32 %v921, %v969
        %v1052 = vand.u32 %v922, %v969
        %v1055 = vand.u32 %v923, %v969
        %v1058 = vand.u32 %v924, %v969
        %v1061 = vand.u32 %v925, %v969
        %v1064 = vand.u32 %v926, %v969
        %1066 = vmatpush.bf16.msra.mxu0 0
        %1067 = vmatpush.bf16.msra.mxu0 0
        %1068 = vmatpush.bf16.msra.mxu0 0
        %1069 = vmatpush.bf16.msra.mxu0 0
        %1070 = vmatpush.bf16.msra.mxu0 0
        %1071 = vmatpush.bf16.msra.mxu0 0
        %1072 = vmatpush.bf16.msra.mxu0 %v971
        %1073 = vmatpush.bf16.msra.mxu0 %v863
        %1074 = vmatmul.bf16.gmra.mxu0 %v961
        %v1075 = vpop.f32.mrf.mxu0
        %v1076 = vadd.f32 0.0, %v1075
        %v1077 = vpop.f32.mrf.mxu0
        %v1078 = vadd.f32 0.0, %v1077
        %1079 = vmatmul.bf16.gmra.mxu0 %v964
        %v1080 = vpop.f32.mrf.mxu0
        %v1081 = vadd.f32 0.0, %v1080
        %v1082 = vpop.f32.mrf.mxu0
        %v1083 = vadd.f32 0.0, %v1082
        %1084 = vdwg.mxu0
        %1085 = vmatpush.bf16.msra.mxu0 0
        %1086 = vmatpush.bf16.msra.mxu0 0
        %1087 = vmatpush.bf16.msra.mxu0 0
        %1088 = vmatpush.bf16.msra.mxu0 0
        %1089 = vmatpush.bf16.msra.mxu0 0
        %1090 = vmatpush.bf16.msra.mxu0 0
        %1091 = vmatpush.bf16.msra.mxu0 %v974
        %1092 = vmatpush.bf16.msra.mxu0 %v864
        %1093 = vmatmul.bf16.gmra.mxu0 %v961
        %v1094 = vpop.f32.mrf.mxu0
        %v1095 = vadd.f32 0.0, %v1094
        %v1096 = vpop.f32.mrf.mxu0
        %v1097 = vadd.f32 0.0, %v1096
        %1098 = vmatmul.bf16.gmra.mxu0 %v964
        %v1099 = vpop.f32.mrf.mxu0
        %v1100 = vadd.f32 0.0, %v1099
        %v1101 = vpop.f32.mrf.mxu0
        %v1102 = vadd.f32 0.0, %v1101
        %1103 = vdwg.mxu0
        %1104 = vmatpush.bf16.msra.mxu0 0
        %1105 = vmatpush.bf16.msra.mxu0 0
        %1106 = vmatpush.bf16.msra.mxu0 0
        %1107 = vmatpush.bf16.msra.mxu0 0
        %1108 = vmatpush.bf16.msra.mxu0 0
        %1109 = vmatpush.bf16.msra.mxu0 0
        %1110 = vmatpush.bf16.msra.mxu0 %v977
        %1111 = vmatpush.bf16.msra.mxu0 %v865
        %1112 = vmatmul.bf16.gmra.mxu0 %v961
        %v1113 = vpop.f32.mrf.mxu0
        %v1114 = vadd.f32 0.0, %v1113
        %v1115 = vpop.f32.mrf.mxu0
        %v1116 = vadd.f32 0.0, %v1115
        %1117 = vmatmul.bf16.gmra.mxu0 %v964
        %v1118 = vpop.f32.mrf.mxu0
        %v1119 = vadd.f32 0.0, %v1118
        %v1120 = vpop.f32.mrf.mxu0
        %v1121 = vadd.f32 0.0, %v1120
        %1122 = vdwg.mxu0
        %1123 = vmatpush.bf16.msra.mxu0 0
        %1124 = vmatpush.bf16.msra.mxu0 0
        %1125 = vmatpush.bf16.msra.mxu0 0
        %1126 = vmatpush.bf16.msra.mxu0 0
        %1127 = vmatpush.bf16.msra.mxu0 0
        %1128 = vmatpush.bf16.msra.mxu0 0
        %1129 = vmatpush.bf16.msra.mxu0 %v980
        %1130 = vmatpush.bf16.msra.mxu0 %v866
        %1131 = vmatmul.bf16.gmra.mxu0 %v961
        %v1132 = vpop.f32.mrf.mxu0
        %v1133 = vadd.f32 0.0, %v1132
        %v1134 = vpop.f32.mrf.mxu0
        %v1135 = vadd.f32 0.0, %v1134
        %1136 = vmatmul.bf16.gmra.mxu0 %v964
        %v1137 = vpop.f32.mrf.mxu0
        %v1138 = vadd.f32 0.0, %v1137
        %v1139 = vpop.f32.mrf.mxu0
        %v1140 = vadd.f32 0.0, %v1139
        %1141 = vdwg.mxu0
        %1142 = vmatpush.bf16.msra.mxu0 0
        %1143 = vmatpush.bf16.msra.mxu0 0
        %1144 = vmatpush.bf16.msra.mxu0 0
        %1145 = vmatpush.bf16.msra.mxu0 0
        %1146 = vmatpush.bf16.msra.mxu0 0
        %1147 = vmatpush.bf16.msra.mxu0 0
        %1148 = vmatpush.bf16.msra.mxu0 %v983
        %1149 = vmatpush.bf16.msra.mxu0 %v867
        %1150 = vmatmul.bf16.gmra.mxu0 %v961
        %v1151 = vpop.f32.mrf.mxu0
        %v1152 = vadd.f32 0.0, %v1151
        %v1153 = vpop.f32.mrf.mxu0
        %v1154 = vadd.f32 0.0, %v1153
        %1155 = vmatmul.bf16.gmra.mxu0 %v964
        %v1156 = vpop.f32.mrf.mxu0
        %v1157 = vadd.f32 0.0, %v1156
        %v1158 = vpop.f32.mrf.mxu0
        %v1159 = vadd.f32 0.0, %v1158
        %1160 = vdwg.mxu0
        %1161 = vmatpush.bf16.msra.mxu0 0
        %1162 = vmatpush.bf16.msra.mxu0 0
        %1163 = vmatpush.bf16.msra.mxu0 0
        %1164 = vmatpush.bf16.msra.mxu0 0
        %1165 = vmatpush.bf16.msra.mxu0 0
        %1166 = vmatpush.bf16.msra.mxu0 0
        %1167 = vmatpush.bf16.msra.mxu0 %v986
        %1168 = vmatpush.bf16.msra.mxu0 %v868
        %1169 = vmatmul.bf16.gmra.mxu0 %v961
        %v1170 = vpop.f32.mrf.mxu0
        %v1171 = vadd.f32 0.0, %v1170
        %v1172 = vpop.f32.mrf.mxu0
        %v1173 = vadd.f32 0.0, %v1172
        %1174 = vmatmul.bf16.gmra.mxu0 %v964
        %v1175 = vpop.f32.mrf.mxu0
        %v1176 = vadd.f32 0.0, %v1175
        %v1177 = vpop.f32.mrf.mxu0
        %v1178 = vadd.f32 0.0, %v1177
        %1179 = vdwg.mxu0
        %1180 = vmatpush.bf16.msra.mxu0 0
        %1181 = vmatpush.bf16.msra.mxu0 0
        %1182 = vmatpush.bf16.msra.mxu0 0
        %1183 = vmatpush.bf16.msra.mxu0 0
        %1184 = vmatpush.bf16.msra.mxu0 0
        %1185 = vmatpush.bf16.msra.mxu0 0
        %1186 = vmatpush.bf16.msra.mxu0 %v989
        %1187 = vmatpush.bf16.msra.mxu0 %v869
        %1188 = vmatmul.bf16.gmra.mxu0 %v961
        %v1189 = vpop.f32.mrf.mxu0
        %v1190 = vadd.f32 0.0, %v1189
        %v1191 = vpop.f32.mrf.mxu0
        %v1192 = vadd.f32 0.0, %v1191
        %1193 = vmatmul.bf16.gmra.mxu0 %v964
        %v1194 = vpop.f32.mrf.mxu0
        %v1195 = vadd.f32 0.0, %v1194
        %v1196 = vpop.f32.mrf.mxu0
        %v1197 = vadd.f32 0.0, %v1196
        %1198 = vdwg.mxu0
        %1199 = vmatpush.bf16.msra.mxu0 0
        %1200 = vmatpush.bf16.msra.mxu0 0
        %1201 = vmatpush.bf16.msra.mxu0 0
        %1202 = vmatpush.bf16.msra.mxu0 0
        %1203 = vmatpush.bf16.msra.mxu0 0
        %1204 = vmatpush.bf16.msra.mxu0 0
        %1205 = vmatpush.bf16.msra.mxu0 %v992
        %1206 = vmatpush.bf16.msra.mxu0 %v870
        %1207 = vmatmul.bf16.gmra.mxu0 %v961
        %v1208 = vpop.f32.mrf.mxu0
        %v1209 = vadd.f32 0.0, %v1208
        %v1210 = vpop.f32.mrf.mxu0
        %v1211 = vadd.f32 0.0, %v1210
        %1212 = vmatmul.bf16.gmra.mxu0 %v964
        %v1213 = vpop.f32.mrf.mxu0
        %v1214 = vadd.f32 0.0, %v1213
        %v1215 = vpop.f32.mrf.mxu0
        %v1216 = vadd.f32 0.0, %v1215
        %1217 = vdwg.mxu0
        %1218 = vmatpush.bf16.msra.mxu0 0
        %1219 = vmatpush.bf16.msra.mxu0 0
        %1220 = vmatpush.bf16.msra.mxu0 0
        %1221 = vmatpush.bf16.msra.mxu0 0
        %1222 = vmatpush.bf16.msra.mxu0 0
        %1223 = vmatpush.bf16.msra.mxu0 0
        %1224 = vmatpush.bf16.msra.mxu0 %v995
        %1225 = vmatpush.bf16.msra.mxu0 %v871
        %1226 = vmatmul.bf16.gmra.mxu0 %v961
        %v1227 = vpop.f32.mrf.mxu0
        %v1228 = vadd.f32 0.0, %v1227
        %v1229 = vpop.f32.mrf.mxu0
        %v1230 = vadd.f32 0.0, %v1229
        %1231 = vmatmul.bf16.gmra.mxu0 %v964
        %v1232 = vpop.f32.mrf.mxu0
        %v1233 = vadd.f32 0.0, %v1232
        %v1234 = vpop.f32.mrf.mxu0
        %v1235 = vadd.f32 0.0, %v1234
        %1236 = vdwg.mxu0
        %1237 = vmatpush.bf16.msra.mxu0 0
        %1238 = vmatpush.bf16.msra.mxu0 0
        %1239 = vmatpush.bf16.msra.mxu0 0
        %1240 = vmatpush.bf16.msra.mxu0 0
        %1241 = vmatpush.bf16.msra.mxu0 0
        %1242 = vmatpush.bf16.msra.mxu0 0
        %1243 = vmatpush.bf16.msra.mxu0 %v998
        %1244 = vmatpush.bf16.msra.mxu0 %v872
        %1245 = vmatmul.bf16.gmra.mxu0 %v961
        %v1246 = vpop.f32.mrf.mxu0
        %v1247 = vadd.f32 0.0, %v1246
        %v1248 = vpop.f32.mrf.mxu0
        %v1249 = vadd.f32 0.0, %v1248
        %1250 = vmatmul.bf16.gmra.mxu0 %v964
        %v1251 = vpop.f32.mrf.mxu0
        %v1252 = vadd.f32 0.0, %v1251
        %v1253 = vpop.f32.mrf.mxu0
        %v1254 = vadd.f32 0.0, %v1253
        %1255 = vdwg.mxu0
        %1256 = vmatpush.bf16.msra.mxu0 0
        %1257 = vmatpush.bf16.msra.mxu0 0
        %1258 = vmatpush.bf16.msra.mxu0 0
        %1259 = vmatpush.bf16.msra.mxu0 0
        %1260 = vmatpush.bf16.msra.mxu0 0
        %1261 = vmatpush.bf16.msra.mxu0 0
        %1262 = vmatpush.bf16.msra.mxu0 %v1001
        %1263 = vmatpush.bf16.msra.mxu0 %v873
        %1264 = vmatmul.bf16.gmra.mxu0 %v961
        %v1265 = vpop.f32.mrf.mxu0
        %v1266 = vadd.f32 0.0, %v1265
        %v1267 = vpop.f32.mrf.mxu0
        %v1268 = vadd.f32 0.0, %v1267
        %1269 = vmatmul.bf16.gmra.mxu0 %v964
        %v1270 = vpop.f32.mrf.mxu0
        %v1271 = vadd.f32 0.0, %v1270
        %v1272 = vpop.f32.mrf.mxu0
        %v1273 = vadd.f32 0.0, %v1272
        %1274 = vdwg.mxu0
        %1275 = vmatpush.bf16.msra.mxu0 0
        %1276 = vmatpush.bf16.msra.mxu0 0
        %1277 = vmatpush.bf16.msra.mxu0 0
        %1278 = vmatpush.bf16.msra.mxu0 0
        %1279 = vmatpush.bf16.msra.mxu0 0
        %1280 = vmatpush.bf16.msra.mxu0 0
        %1281 = vmatpush.bf16.msra.mxu0 %v1004
        %1282 = vmatpush.bf16.msra.mxu0 %v874
        %1283 = vmatmul.bf16.gmra.mxu0 %v961
        %v1284 = vpop.f32.mrf.mxu0
        %v1285 = vadd.f32 0.0, %v1284
        %v1286 = vpop.f32.mrf.mxu0
        %v1287 = vadd.f32 0.0, %v1286
        %1288 = vmatmul.bf16.gmra.mxu0 %v964
        %v1289 = vpop.f32.mrf.mxu0
        %v1290 = vadd.f32 0.0, %v1289
        %v1291 = vpop.f32.mrf.mxu0
        %v1292 = vadd.f32 0.0, %v1291
        %1293 = vdwg.mxu0
        %1294 = vmatpush.bf16.msra.mxu0 0
        %1295 = vmatpush.bf16.msra.mxu0 0
        %1296 = vmatpush.bf16.msra.mxu0 0
        %1297 = vmatpush.bf16.msra.mxu0 0
        %1298 = vmatpush.bf16.msra.mxu0 0
        %1299 = vmatpush.bf16.msra.mxu0 0
        %1300 = vmatpush.bf16.msra.mxu0 %v1007
        %1301 = vmatpush.bf16.msra.mxu0 %v875
        %1302 = vmatmul.bf16.gmra.mxu0 %v961
        %v1303 = vpop.f32.mrf.mxu0
        %v1304 = vadd.f32 0.0, %v1303
        %v1305 = vpop.f32.mrf.mxu0
        %v1306 = vadd.f32 0.0, %v1305
        %1307 = vmatmul.bf16.gmra.mxu0 %v964
        %v1308 = vpop.f32.mrf.mxu0
        %v1309 = vadd.f32 0.0, %v1308
        %v1310 = vpop.f32.mrf.mxu0
        %v1311 = vadd.f32 0.0, %v1310
        %1312 = vdwg.mxu0
        %1313 = vmatpush.bf16.msra.mxu0 0
        %1314 = vmatpush.bf16.msra.mxu0 0
        %1315 = vmatpush.bf16.msra.mxu0 0
        %1316 = vmatpush.bf16.msra.mxu0 0
        %1317 = vmatpush.bf16.msra.mxu0 0
        %1318 = vmatpush.bf16.msra.mxu0 0
        %1319 = vmatpush.bf16.msra.mxu0 %v1010
        %1320 = vmatpush.bf16.msra.mxu0 %v876
        %1321 = vmatmul.bf16.gmra.mxu0 %v961
        %v1322 = vpop.f32.mrf.mxu0
        %v1323 = vadd.f32 0.0, %v1322
        %v1324 = vpop.f32.mrf.mxu0
        %v1325 = vadd.f32 0.0, %v1324
        %1326 = vmatmul.bf16.gmra.mxu0 %v964
        %v1327 = vpop.f32.mrf.mxu0
        %v1328 = vadd.f32 0.0, %v1327
        %v1329 = vpop.f32.mrf.mxu0
        %v1330 = vadd.f32 0.0, %v1329
        %1331 = vdwg.mxu0
        %1332 = vmatpush.bf16.msra.mxu0 0
        %1333 = vmatpush.bf16.msra.mxu0 0
        %1334 = vmatpush.bf16.msra.mxu0 0
        %1335 = vmatpush.bf16.msra.mxu0 0
        %1336 = vmatpush.bf16.msra.mxu0 0
        %1337 = vmatpush.bf16.msra.mxu0 0
        %1338 = vmatpush.bf16.msra.mxu0 %v1013
        %1339 = vmatpush.bf16.msra.mxu0 %v877
        %1340 = vmatmul.bf16.gmra.mxu0 %v961
        %v1341 = vpop.f32.mrf.mxu0
        %v1342 = vadd.f32 0.0, %v1341
        %v1343 = vpop.f32.mrf.mxu0
        %v1344 = vadd.f32 0.0, %v1343
        %1345 = vmatmul.bf16.gmra.mxu0 %v964
        %v1346 = vpop.f32.mrf.mxu0
        %v1347 = vadd.f32 0.0, %v1346
        %v1348 = vpop.f32.mrf.mxu0
        %v1349 = vadd.f32 0.0, %v1348
        %1350 = vdwg.mxu0
        %1351 = vmatpush.bf16.msra.mxu0 0
        %1352 = vmatpush.bf16.msra.mxu0 0
        %1353 = vmatpush.bf16.msra.mxu0 0
        %1354 = vmatpush.bf16.msra.mxu0 0
        %1355 = vmatpush.bf16.msra.mxu0 0
        %1356 = vmatpush.bf16.msra.mxu0 0
        %1357 = vmatpush.bf16.msra.mxu0 %v1016
        %1358 = vmatpush.bf16.msra.mxu0 %v878
        %1359 = vmatmul.bf16.gmra.mxu0 %v961
        %v1360 = vpop.f32.mrf.mxu0
        %v1361 = vadd.f32 0.0, %v1360
        %v1362 = vpop.f32.mrf.mxu0
        %v1363 = vadd.f32 0.0, %v1362
        %1364 = vmatmul.bf16.gmra.mxu0 %v964
        %v1365 = vpop.f32.mrf.mxu0
        %v1366 = vadd.f32 0.0, %v1365
        %v1367 = vpop.f32.mrf.mxu0
        %v1368 = vadd.f32 0.0, %v1367
        %1369 = vdwg.mxu0
        %1370 = vmatpush.bf16.msra.mxu0 0
        %1371 = vmatpush.bf16.msra.mxu0 0
        %1372 = vmatpush.bf16.msra.mxu0 0
        %1373 = vmatpush.bf16.msra.mxu0 0
        %1374 = vmatpush.bf16.msra.mxu0 0
        %1375 = vmatpush.bf16.msra.mxu0 0
        %1376 = vmatpush.bf16.msra.mxu0 %v1019
        %1377 = vmatpush.bf16.msra.mxu0 %v879
        %1378 = vmatmul.bf16.gmra.mxu0 %v961
        %v1379 = vpop.f32.mrf.mxu0
        %v1380 = vadd.f32 0.0, %v1379
        %v1381 = vpop.f32.mrf.mxu0
        %v1382 = vadd.f32 0.0, %v1381
        %1383 = vmatmul.bf16.gmra.mxu0 %v964
        %v1384 = vpop.f32.mrf.mxu0
        %v1385 = vadd.f32 0.0, %v1384
        %v1386 = vpop.f32.mrf.mxu0
        %v1387 = vadd.f32 0.0, %v1386
        %1388 = vdwg.mxu0
        %1389 = vmatpush.bf16.msra.mxu0 0
        %1390 = vmatpush.bf16.msra.mxu0 0
        %1391 = vmatpush.bf16.msra.mxu0 0
        %1392 = vmatpush.bf16.msra.mxu0 0
        %1393 = vmatpush.bf16.msra.mxu0 0
        %1394 = vmatpush.bf16.msra.mxu0 0
        %1395 = vmatpush.bf16.msra.mxu0 %v1022
        %1396 = vmatpush.bf16.msra.mxu0 %v880
        %1397 = vmatmul.bf16.gmra.mxu0 %v961
        %v1398 = vpop.f32.mrf.mxu0
        %v1399 = vadd.f32 0.0, %v1398
        %v1400 = vpop.f32.mrf.mxu0
        %v1401 = vadd.f32 0.0, %v1400
        %1402 = vmatmul.bf16.gmra.mxu0 %v964
        %v1403 = vpop.f32.mrf.mxu0
        %v1404 = vadd.f32 0.0, %v1403
        %v1405 = vpop.f32.mrf.mxu0
        %v1406 = vadd.f32 0.0, %v1405
        %1407 = vdwg.mxu0
        %1408 = vmatpush.bf16.msra.mxu0 0
        %1409 = vmatpush.bf16.msra.mxu0 0
        %1410 = vmatpush.bf16.msra.mxu0 0
        %1411 = vmatpush.bf16.msra.mxu0 0
        %1412 = vmatpush.bf16.msra.mxu0 0
        %1413 = vmatpush.bf16.msra.mxu0 0
        %1414 = vmatpush.bf16.msra.mxu0 %v1025
        %1415 = vmatpush.bf16.msra.mxu0 %v881
        %1416 = vmatmul.bf16.gmra.mxu0 %v961
        %v1417 = vpop.f32.mrf.mxu0
        %v1418 = vadd.f32 0.0, %v1417
        %v1419 = vpop.f32.mrf.mxu0
        %v1420 = vadd.f32 0.0, %v1419
        %1421 = vmatmul.bf16.gmra.mxu0 %v964
        %v1422 = vpop.f32.mrf.mxu0
        %v1423 = vadd.f32 0.0, %v1422
        %v1424 = vpop.f32.mrf.mxu0
        %v1425 = vadd.f32 0.0, %v1424
        %1426 = vdwg.mxu0
        %1427 = vmatpush.bf16.msra.mxu0 0
        %1428 = vmatpush.bf16.msra.mxu0 0
        %1429 = vmatpush.bf16.msra.mxu0 0
        %1430 = vmatpush.bf16.msra.mxu0 0
        %1431 = vmatpush.bf16.msra.mxu0 0
        %1432 = vmatpush.bf16.msra.mxu0 0
        %1433 = vmatpush.bf16.msra.mxu0 %v1028
        %1434 = vmatpush.bf16.msra.mxu0 %v882
        %1435 = vmatmul.bf16.gmra.mxu0 %v961
        %v1436 = vpop.f32.mrf.mxu0
        %v1437 = vadd.f32 0.0, %v1436
        %v1438 = vpop.f32.mrf.mxu0
        %v1439 = vadd.f32 0.0, %v1438
        %1440 = vmatmul.bf16.gmra.mxu0 %v964
        %v1441 = vpop.f32.mrf.mxu0
        %v1442 = vadd.f32 0.0, %v1441
        %v1443 = vpop.f32.mrf.mxu0
        %v1444 = vadd.f32 0.0, %v1443
        %1445 = vdwg.mxu0
        %1446 = vmatpush.bf16.msra.mxu0 0
        %1447 = vmatpush.bf16.msra.mxu0 0
        %1448 = vmatpush.bf16.msra.mxu0 0
        %1449 = vmatpush.bf16.msra.mxu0 0
        %1450 = vmatpush.bf16.msra.mxu0 0
        %1451 = vmatpush.bf16.msra.mxu0 0
        %1452 = vmatpush.bf16.msra.mxu0 %v1031
        %1453 = vmatpush.bf16.msra.mxu0 %v883
        %1454 = vmatmul.bf16.gmra.mxu0 %v961
        %v1455 = vpop.f32.mrf.mxu0
        %v1456 = vadd.f32 0.0, %v1455
        %v1457 = vpop.f32.mrf.mxu0
        %v1458 = vadd.f32 0.0, %v1457
        %1459 = vmatmul.bf16.gmra.mxu0 %v964
        %v1460 = vpop.f32.mrf.mxu0
        %v1461 = vadd.f32 0.0, %v1460
        %v1462 = vpop.f32.mrf.mxu0
        %v1463 = vadd.f32 0.0, %v1462
        %1464 = vdwg.mxu0
        %1465 = vmatpush.bf16.msra.mxu0 0
        %1466 = vmatpush.bf16.msra.mxu0 0
        %1467 = vmatpush.bf16.msra.mxu0 0
        %1468 = vmatpush.bf16.msra.mxu0 0
        %1469 = vmatpush.bf16.msra.mxu0 0
        %1470 = vmatpush.bf16.msra.mxu0 0
        %1471 = vmatpush.bf16.msra.mxu0 %v1034
        %1472 = vmatpush.bf16.msra.mxu0 %v884
        %1473 = vmatmul.bf16.gmra.mxu0 %v961
        %v1474 = vpop.f32.mrf.mxu0
        %v1475 = vadd.f32 0.0, %v1474
        %v1476 = vpop.f32.mrf.mxu0
        %v1477 = vadd.f32 0.0, %v1476
        %1478 = vmatmul.bf16.gmra.mxu0 %v964
        %v1479 = vpop.f32.mrf.mxu0
        %v1480 = vadd.f32 0.0, %v1479
        %v1481 = vpop.f32.mrf.mxu0
        %v1482 = vadd.f32 0.0, %v1481
        %1483 = vdwg.mxu0
        %1484 = vmatpush.bf16.msra.mxu0 0
        %1485 = vmatpush.bf16.msra.mxu0 0
        %1486 = vmatpush.bf16.msra.mxu0 0
        %1487 = vmatpush.bf16.msra.mxu0 0
        %1488 = vmatpush.bf16.msra.mxu0 0
        %1489 = vmatpush.bf16.msra.mxu0 0
        %1490 = vmatpush.bf16.msra.mxu0 %v1037
        %1491 = vmatpush.bf16.msra.mxu0 %v885
        %1492 = vmatmul.bf16.gmra.mxu0 %v961
        %v1493 = vpop.f32.mrf.mxu0
        %v1494 = vadd.f32 0.0, %v1493
        %v1495 = vpop.f32.mrf.mxu0
        %v1496 = vadd.f32 0.0, %v1495
        %1497 = vmatmul.bf16.gmra.mxu0 %v964
        %v1498 = vpop.f32.mrf.mxu0
        %v1499 = vadd.f32 0.0, %v1498
        %v1500 = vpop.f32.mrf.mxu0
        %v1501 = vadd.f32 0.0, %v1500
        %1502 = vdwg.mxu0
        %1503 = vmatpush.bf16.msra.mxu0 0
        %1504 = vmatpush.bf16.msra.mxu0 0
        %1505 = vmatpush.bf16.msra.mxu0 0
        %1506 = vmatpush.bf16.msra.mxu0 0
        %1507 = vmatpush.bf16.msra.mxu0 0
        %1508 = vmatpush.bf16.msra.mxu0 0
        %1509 = vmatpush.bf16.msra.mxu0 %v1040
        %1510 = vmatpush.bf16.msra.mxu0 %v886
        %1511 = vmatmul.bf16.gmra.mxu0 %v961
        %v1512 = vpop.f32.mrf.mxu0
        %v1513 = vadd.f32 0.0, %v1512
        %v1514 = vpop.f32.mrf.mxu0
        %v1515 = vadd.f32 0.0, %v1514
        %1516 = vmatmul.bf16.gmra.mxu0 %v964
        %v1517 = vpop.f32.mrf.mxu0
        %v1518 = vadd.f32 0.0, %v1517
        %v1519 = vpop.f32.mrf.mxu0
        %v1520 = vadd.f32 0.0, %v1519
        %1521 = vdwg.mxu0
        %1522 = vmatpush.bf16.msra.mxu0 0
        %1523 = vmatpush.bf16.msra.mxu0 0
        %1524 = vmatpush.bf16.msra.mxu0 0
        %1525 = vmatpush.bf16.msra.mxu0 0
        %1526 = vmatpush.bf16.msra.mxu0 0
        %1527 = vmatpush.bf16.msra.mxu0 0
        %1528 = vmatpush.bf16.msra.mxu0 %v1043
        %1529 = vmatpush.bf16.msra.mxu0 %v887
        %1530 = vmatmul.bf16.gmra.mxu0 %v961
        %v1531 = vpop.f32.mrf.mxu0
        %v1532 = vadd.f32 0.0, %v1531
        %v1533 = vpop.f32.mrf.mxu0
        %v1534 = vadd.f32 0.0, %v1533
        %1535 = vmatmul.bf16.gmra.mxu0 %v964
        %v1536 = vpop.f32.mrf.mxu0
        %v1537 = vadd.f32 0.0, %v1536
        %v1538 = vpop.f32.mrf.mxu0
        %v1539 = vadd.f32 0.0, %v1538
        %1540 = vdwg.mxu0
        %1541 = vmatpush.bf16.msra.mxu0 0
        %1542 = vmatpush.bf16.msra.mxu0 0
        %1543 = vmatpush.bf16.msra.mxu0 0
        %1544 = vmatpush.bf16.msra.mxu0 0
        %1545 = vmatpush.bf16.msra.mxu0 0
        %1546 = vmatpush.bf16.msra.mxu0 0
        %1547 = vmatpush.bf16.msra.mxu0 %v1046
        %1548 = vmatpush.bf16.msra.mxu0 %v888
        %1549 = vmatmul.bf16.gmra.mxu0 %v961
        %v1550 = vpop.f32.mrf.mxu0
        %v1551 = vadd.f32 0.0, %v1550
        %v1552 = vpop.f32.mrf.mxu0
        %v1553 = vadd.f32 0.0, %v1552
        %1554 = vmatmul.bf16.gmra.mxu0 %v964
        %v1555 = vpop.f32.mrf.mxu0
        %v1556 = vadd.f32 0.0, %v1555
        %v1557 = vpop.f32.mrf.mxu0
        %v1558 = vadd.f32 0.0, %v1557
        %1559 = vdwg.mxu0
        %1560 = vmatpush.bf16.msra.mxu0 0
        %1561 = vmatpush.bf16.msra.mxu0 0
        %1562 = vmatpush.bf16.msra.mxu0 0
        %1563 = vmatpush.bf16.msra.mxu0 0
        %1564 = vmatpush.bf16.msra.mxu0 0
        %1565 = vmatpush.bf16.msra.mxu0 0
        %1566 = vmatpush.bf16.msra.mxu0 %v1049
        %1567 = vmatpush.bf16.msra.mxu0 %v889
        %1568 = vmatmul.bf16.gmra.mxu0 %v961
        %v1569 = vpop.f32.mrf.mxu0
        %v1570 = vadd.f32 0.0, %v1569
        %v1571 = vpop.f32.mrf.mxu0
        %v1572 = vadd.f32 0.0, %v1571
        %1573 = vmatmul.bf16.gmra.mxu0 %v964
        %v1574 = vpop.f32.mrf.mxu0
        %v1575 = vadd.f32 0.0, %v1574
        %v1576 = vpop.f32.mrf.mxu0
        %v1577 = vadd.f32 0.0, %v1576
        %1578 = vdwg.mxu0
        %1579 = vmatpush.bf16.msra.mxu0 0
        %1580 = vmatpush.bf16.msra.mxu0 0
        %1581 = vmatpush.bf16.msra.mxu0 0
        %1582 = vmatpush.bf16.msra.mxu0 0
        %1583 = vmatpush.bf16.msra.mxu0 0
        %1584 = vmatpush.bf16.msra.mxu0 0
        %1585 = vmatpush.bf16.msra.mxu0 %v1052
        %1586 = vmatpush.bf16.msra.mxu0 %v890
        %1587 = vmatmul.bf16.gmra.mxu0 %v961
        %v1588 = vpop.f32.mrf.mxu0
        %v1589 = vadd.f32 0.0, %v1588
        %v1590 = vpop.f32.mrf.mxu0
        %v1591 = vadd.f32 0.0, %v1590
        %1592 = vmatmul.bf16.gmra.mxu0 %v964
        %v1593 = vpop.f32.mrf.mxu0
        %v1594 = vadd.f32 0.0, %v1593
        %v1595 = vpop.f32.mrf.mxu0
        %v1596 = vadd.f32 0.0, %v1595
        %1597 = vdwg.mxu0
        %1598 = vmatpush.bf16.msra.mxu0 0
        %1599 = vmatpush.bf16.msra.mxu0 0
        %1600 = vmatpush.bf16.msra.mxu0 0
        %1601 = vmatpush.bf16.msra.mxu0 0
        %1602 = vmatpush.bf16.msra.mxu0 0
        %1603 = vmatpush.bf16.msra.mxu0 0
        %1604 = vmatpush.bf16.msra.mxu0 %v1055
        %1605 = vmatpush.bf16.msra.mxu0 %v891
        %1606 = vmatmul.bf16.gmra.mxu0 %v961
        %v1607 = vpop.f32.mrf.mxu0
        %v1608 = vadd.f32 0.0, %v1607
        %v1609 = vpop.f32.mrf.mxu0
        %v1610 = vadd.f32 0.0, %v1609
        %1611 = vmatmul.bf16.gmra.mxu0 %v964
        %v1612 = vpop.f32.mrf.mxu0
        %v1613 = vadd.f32 0.0, %v1612
        %v1614 = vpop.f32.mrf.mxu0
        %v1615 = vadd.f32 0.0, %v1614
        %1616 = vdwg.mxu0
        %1617 = vmatpush.bf16.msra.mxu0 0
        %1618 = vmatpush.bf16.msra.mxu0 0
        %1619 = vmatpush.bf16.msra.mxu0 0
        %1620 = vmatpush.bf16.msra.mxu0 0
        %1621 = vmatpush.bf16.msra.mxu0 0
        %1622 = vmatpush.bf16.msra.mxu0 0
        %1623 = vmatpush.bf16.msra.mxu0 %v1058
        %1624 = vmatpush.bf16.msra.mxu0 %v892
        %1625 = vmatmul.bf16.gmra.mxu0 %v961
        %v1626 = vpop.f32.mrf.mxu0
        %v1627 = vadd.f32 0.0, %v1626
        %v1628 = vpop.f32.mrf.mxu0
        %v1629 = vadd.f32 0.0, %v1628
        %1630 = vmatmul.bf16.gmra.mxu0 %v964
        %v1631 = vpop.f32.mrf.mxu0
        %v1632 = vadd.f32 0.0, %v1631
        %v1633 = vpop.f32.mrf.mxu0
        %v1634 = vadd.f32 0.0, %v1633
        %1635 = vdwg.mxu0
        %1636 = vmatpush.bf16.msra.mxu0 0
        %1637 = vmatpush.bf16.msra.mxu0 0
        %1638 = vmatpush.bf16.msra.mxu0 0
        %1639 = vmatpush.bf16.msra.mxu0 0
        %1640 = vmatpush.bf16.msra.mxu0 0
        %1641 = vmatpush.bf16.msra.mxu0 0
        %1642 = vmatpush.bf16.msra.mxu0 %v1061
        %1643 = vmatpush.bf16.msra.mxu0 %v893
        %1644 = vmatmul.bf16.gmra.mxu0 %v961
        %v1645 = vpop.f32.mrf.mxu0
        %v1646 = vadd.f32 0.0, %v1645
        %v1647 = vpop.f32.mrf.mxu0
        %v1648 = vadd.f32 0.0, %v1647
        %1649 = vmatmul.bf16.gmra.mxu0 %v964
        %v1650 = vpop.f32.mrf.mxu0
        %v1651 = vadd.f32 0.0, %v1650
        %v1652 = vpop.f32.mrf.mxu0
        %v1653 = vadd.f32 0.0, %v1652
        %1654 = vdwg.mxu0
        %1655 = vmatpush.bf16.msra.mxu0 0
        %1656 = vmatpush.bf16.msra.mxu0 0
        %1657 = vmatpush.bf16.msra.mxu0 0
        %1658 = vmatpush.bf16.msra.mxu0 0
        %1659 = vmatpush.bf16.msra.mxu0 0
        %1660 = vmatpush.bf16.msra.mxu0 0
        %1661 = vmatpush.bf16.msra.mxu0 %v1064
        %1662 = vmatpush.bf16.msra.mxu0 %v894
        %1663 = vmatmul.bf16.gmra.mxu0 %v961
        %v1664 = vpop.f32.mrf.mxu0
        %v1665 = vadd.f32 0.0, %v1664
        %v1666 = vpop.f32.mrf.mxu0
        %v1667 = vadd.f32 0.0, %v1666
        %1668 = vmatmul.bf16.gmra.mxu0 %v964
        %v1669 = vpop.f32.mrf.mxu0
        %v1670 = vadd.f32 0.0, %v1669
        %v1671 = vpop.f32.mrf.mxu0
        %v1672 = vadd.f32 0.0, %v1671
        %1673 = vdwg.mxu0
        %v1674 = vadd.f32 %v465, %v1076
        %v1675 = vadd.f32 %v466, %v1095
        %v1676 = vadd.f32 %v467, %v1114
        %v1677 = vadd.f32 %v468, %v1133
        %v1678 = vadd.f32 %v469, %v1152
        %v1679 = vadd.f32 %v470, %v1171
        %v1680 = vadd.f32 %v471, %v1190
        %v1681 = vadd.f32 %v472, %v1209
        %v1682 = vadd.f32 %v473, %v1228
        %v1683 = vadd.f32 %v474, %v1247
        %v1684 = vadd.f32 %v475, %v1266
        %v1685 = vadd.f32 %v476, %v1285
        %v1686 = vadd.f32 %v477, %v1304
        %v1687 = vadd.f32 %v478, %v1323
        %v1688 = vadd.f32 %v479, %v1342
        %v1689 = vadd.f32 %v480, %v1361
        %v1690 = vadd.f32 %v481, %v1380
        %v1691 = vadd.f32 %v482, %v1399
        %v1692 = vadd.f32 %v483, %v1418
        %v1693 = vadd.f32 %v484, %v1437
        %v1694 = vadd.f32 %v485, %v1456
        %v1695 = vadd.f32 %v486, %v1475
        %v1696 = vadd.f32 %v487, %v1494
        %v1697 = vadd.f32 %v488, %v1513
        %v1698 = vadd.f32 %v489, %v1532
        %v1699 = vadd.f32 %v490, %v1551
        %v1700 = vadd.f32 %v491, %v1570
        %v1701 = vadd.f32 %v492, %v1589
        %v1702 = vadd.f32 %v493, %v1608
        %v1703 = vadd.f32 %v494, %v1627
        %v1704 = vadd.f32 %v495, %v1646
        %v1705 = vadd.f32 %v496, %v1665
        %v1706 = vadd.f32 %v497, %v1078
        %v1707 = vadd.f32 %v498, %v1097
        %v1708 = vadd.f32 %v499, %v1116
        %v1709 = vadd.f32 %v500, %v1135
        %v1710 = vadd.f32 %v501, %v1154
        %v1711 = vadd.f32 %v502, %v1173
        %v1712 = vadd.f32 %v503, %v1192
        %v1713 = vadd.f32 %v504, %v1211
        %v1714 = vadd.f32 %v505, %v1230
        %v1715 = vadd.f32 %v506, %v1249
        %v1716 = vadd.f32 %v507, %v1268
        %v1717 = vadd.f32 %v508, %v1287
        %v1718 = vadd.f32 %v509, %v1306
        %v1719 = vadd.f32 %v510, %v1325
        %v1720 = vadd.f32 %v511, %v1344
        %v1721 = vadd.f32 %v512, %v1363
        %v1722 = vadd.f32 %v513, %v1382
        %v1723 = vadd.f32 %v514, %v1401
        %v1724 = vadd.f32 %v515, %v1420
        %v1725 = vadd.f32 %v516, %v1439
        %v1726 = vadd.f32 %v517, %v1458
        %v1727 = vadd.f32 %v518, %v1477
        %v1728 = vadd.f32 %v519, %v1496
        %v1729 = vadd.f32 %v520, %v1515
        %v1730 = vadd.f32 %v521, %v1534
        %v1731 = vadd.f32 %v522, %v1553
        %v1732 = vadd.f32 %v523, %v1572
        %v1733 = vadd.f32 %v524, %v1591
        %v1734 = vadd.f32 %v525, %v1610
        %v1735 = vadd.f32 %v526, %v1629
        %v1736 = vadd.f32 %v527, %v1648
        %v1737 = vadd.f32 %v528, %v1667
        %v1738 = vadd.f32 %v529, %v1081
        %v1739 = vadd.f32 %v530, %v1100
        %v1740 = vadd.f32 %v531, %v1119
        %v1741 = vadd.f32 %v532, %v1138
        %v1742 = vadd.f32 %v533, %v1157
        %v1743 = vadd.f32 %v534, %v1176
        %v1744 = vadd.f32 %v535, %v1195
        %v1745 = vadd.f32 %v536, %v1214
        %v1746 = vadd.f32 %v537, %v1233
        %v1747 = vadd.f32 %v538, %v1252
        %v1748 = vadd.f32 %v539, %v1271
        %v1749 = vadd.f32 %v540, %v1290
        %v1750 = vadd.f32 %v541, %v1309
        %v1751 = vadd.f32 %v542, %v1328
        %v1752 = vadd.f32 %v543, %v1347
        %v1753 = vadd.f32 %v544, %v1366
        %v1754 = vadd.f32 %v545, %v1385
        %v1755 = vadd.f32 %v546, %v1404
        %v1756 = vadd.f32 %v547, %v1423
        %v1757 = vadd.f32 %v548, %v1442
        %v1758 = vadd.f32 %v549, %v1461
        %v1759 = vadd.f32 %v550, %v1480
        %v1760 = vadd.f32 %v551, %v1499
        %v1761 = vadd.f32 %v552, %v1518
        %v1762 = vadd.f32 %v553, %v1537
        %v1763 = vadd.f32 %v554, %v1556
        %v1764 = vadd.f32 %v555, %v1575
        %v1765 = vadd.f32 %v556, %v1594
        %v1766 = vadd.f32 %v557, %v1613
        %v1767 = vadd.f32 %v558, %v1632
        %v1768 = vadd.f32 %v559, %v1651
        %v1769 = vadd.f32 %v560, %v1670
        %v1770 = vadd.f32 %v561, %v1083
        %v1771 = vadd.f32 %v562, %v1102
        %v1772 = vadd.f32 %v563, %v1121
        %v1773 = vadd.f32 %v564, %v1140
        %v1774 = vadd.f32 %v565, %v1159
        %v1775 = vadd.f32 %v566, %v1178
        %v1776 = vadd.f32 %v567, %v1197
        %v1777 = vadd.f32 %v568, %v1216
        %v1778 = vadd.f32 %v569, %v1235
        %v1779 = vadd.f32 %v570, %v1254
        %v1780 = vadd.f32 %v571, %v1273
        %v1781 = vadd.f32 %v572, %v1292
        %v1782 = vadd.f32 %v573, %v1311
        %v1783 = vadd.f32 %v574, %v1330
        %v1784 = vadd.f32 %v575, %v1349
        %v1785 = vadd.f32 %v576, %v1368
        %v1786 = vadd.f32 %v577, %v1387
        %v1787 = vadd.f32 %v578, %v1406
        %v1788 = vadd.f32 %v579, %v1425
        %v1789 = vadd.f32 %v580, %v1444
        %v1790 = vadd.f32 %v581, %v1463
        %v1791 = vadd.f32 %v582, %v1482
        %v1792 = vadd.f32 %v583, %v1501
        %v1793 = vadd.f32 %v584, %v1520
        %v1794 = vadd.f32 %v585, %v1539
        %v1795 = vadd.f32 %v586, %v1558
        %v1796 = vadd.f32 %v587, %v1577
        %v1797 = vadd.f32 %v588, %v1596
        %v1798 = vadd.f32 %v589, %v1615
        %v1799 = vadd.f32 %v590, %v1634
        %v1800 = vadd.f32 %v591, %v1653
        %v1801 = vadd.f32 %v592, %v1672
        %1802 = vst [vmem:[#allocation2] sm:$0xff] %v1674
        %1803 = vst [vmem:[#allocation2 + $0x8] sm:$0xff] %v1675
        %1804 = vst [vmem:[#allocation2 + $0x10] sm:$0xff] %v1676
        %1805 = vst [vmem:[#allocation2 + $0x18] sm:$0xff] %v1677
        %1806 = vst [vmem:[#allocation2 + $0x20] sm:$0xff] %v1678
        %1807 = vst [vmem:[#allocation2 + $0x28] sm:$0xff] %v1679
        %1808 = vst [vmem:[#allocation2 + $0x30] sm:$0xff] %v1680
        %1809 = vst [vmem:[#allocation2 + $0x38] sm:$0xff] %v1681
        %1810 = vst [vmem:[#allocation2 + $0x40] sm:$0xff] %v1682
        %1811 = vst [vmem:[#allocation2 + $0x48] sm:$0xff] %v1683
        %1812 = vst [vmem:[#allocation2 + $0x50] sm:$0xff] %v1684
        %1813 = vst [vmem:[#allocation2 + $0x58] sm:$0xff] %v1685
        %1814 = vst [vmem:[#allocation2 + $0x60] sm:$0xff] %v1686
        %1815 = vst [vmem:[#allocation2 + $0x68] sm:$0xff] %v1687
        %1816 = vst [vmem:[#allocation2 + $0x70] sm:$0xff] %v1688
        %1817 = vst [vmem:[#allocation2 + $0x78] sm:$0xff] %v1689
        %1818 = vst [vmem:[#allocation2 + $0x80] sm:$0xff] %v1690
        %1819 = vst [vmem:[#allocation2 + $0x88] sm:$0xff] %v1691
        %1820 = vst [vmem:[#allocation2 + $0x90] sm:$0xff] %v1692
        %1821 = vst [vmem:[#allocation2 + $0x98] sm:$0xff] %v1693
        %1822 = vst [vmem:[#allocation2 + $0xa0] sm:$0xff] %v1694
        %1823 = vst [vmem:[#allocation2 + $0xa8] sm:$0xff] %v1695
        %1824 = vst [vmem:[#allocation2 + $0xb0] sm:$0xff] %v1696
        %1825 = vst [vmem:[#allocation2 + $0xb8] sm:$0xff] %v1697
        %1826 = vst [vmem:[#allocation2 + $0xc0] sm:$0xff] %v1698
        %1827 = vst [vmem:[#allocation2 + $0xc8] sm:$0xff] %v1699
        %1828 = vst [vmem:[#allocation2 + $0xd0] sm:$0xff] %v1700
        %1829 = vst [vmem:[#allocation2 + $0xd8] sm:$0xff] %v1701
        %1830 = vst [vmem:[#allocation2 + $0xe0] sm:$0xff] %v1702
        %1831 = vst [vmem:[#allocation2 + $0xe8] sm:$0xff] %v1703
        %1832 = vst [vmem:[#allocation2 + $0xf0] sm:$0xff] %v1704
        %1833 = vst [vmem:[#allocation2 + $0xf8] sm:$0xff] %v1705
        %1834 = vst [vmem:[#allocation2 + $0x100] sm:$0xff] %v1706
        %1835 = vst [vmem:[#allocation2 + $0x108] sm:$0xff] %v1707
        %1836 = vst [vmem:[#allocation2 + $0x110] sm:$0xff] %v1708
        %1837 = vst [vmem:[#allocation2 + $0x118] sm:$0xff] %v1709
        %1838 = vst [vmem:[#allocation2 + $0x120] sm:$0xff] %v1710
        %1839 = vst [vmem:[#allocation2 + $0x128] sm:$0xff] %v1711
        %1840 = vst [vmem:[#allocation2 + $0x130] sm:$0xff] %v1712
        %1841 = vst [vmem:[#allocation2 + $0x138] sm:$0xff] %v1713
        %1842 = vst [vmem:[#allocation2 + $0x140] sm:$0xff] %v1714
        %1843 = vst [vmem:[#allocation2 + $0x148] sm:$0xff] %v1715
        %1844 = vst [vmem:[#allocation2 + $0x150] sm:$0xff] %v1716
        %1845 = vst [vmem:[#allocation2 + $0x158] sm:$0xff] %v1717
        %1846 = vst [vmem:[#allocation2 + $0x160] sm:$0xff] %v1718
        %1847 = vst [vmem:[#allocation2 + $0x168] sm:$0xff] %v1719
        %1848 = vst [vmem:[#allocation2 + $0x170] sm:$0xff] %v1720
        %1849 = vst [vmem:[#allocation2 + $0x178] sm:$0xff] %v1721
        %1850 = vst [vmem:[#allocation2 + $0x180] sm:$0xff] %v1722
        %1851 = vst [vmem:[#allocation2 + $0x188] sm:$0xff] %v1723
        %1852 = vst [vmem:[#allocation2 + $0x190] sm:$0xff] %v1724
        %1853 = vst [vmem:[#allocation2 + $0x198] sm:$0xff] %v1725
        %1854 = vst [vmem:[#allocation2 + $0x1a0] sm:$0xff] %v1726
        %1855 = vst [vmem:[#allocation2 + $0x1a8] sm:$0xff] %v1727
        %1856 = vst [vmem:[#allocation2 + $0x1b0] sm:$0xff] %v1728
        %1857 = vst [vmem:[#allocation2 + $0x1b8] sm:$0xff] %v1729
        %1858 = vst [vmem:[#allocation2 + $0x1c0] sm:$0xff] %v1730
        %1859 = vst [vmem:[#allocation2 + $0x1c8] sm:$0xff] %v1731
        %1860 = vst [vmem:[#allocation2 + $0x1d0] sm:$0xff] %v1732
        %1861 = vst [vmem:[#allocation2 + $0x1d8] sm:$0xff] %v1733
        %1862 = vst [vmem:[#allocation2 + $0x1e0] sm:$0xff] %v1734
        %1863 = vst [vmem:[#allocation2 + $0x1e8] sm:$0xff] %v1735
        %1864 = vst [vmem:[#allocation2 + $0x1f0] sm:$0xff] %v1736
        %1865 = vst [vmem:[#allocation2 + $0x1f8] sm:$0xff] %v1737
        %1866 = vst [vmem:[#allocation2 + $0x200] sm:$0xff] %v1738
        %1867 = vst [vmem:[#allocation2 + $0x208] sm:$0xff] %v1739
        %1868 = vst [vmem:[#allocation2 + $0x210] sm:$0xff] %v1740
        %1869 = vst [vmem:[#allocation2 + $0x218] sm:$0xff] %v1741
        %1870 = vst [vmem:[#allocation2 + $0x220] sm:$0xff] %v1742
        %1871 = vst [vmem:[#allocation2 + $0x228] sm:$0xff] %v1743
        %1872 = vst [vmem:[#allocation2 + $0x230] sm:$0xff] %v1744
        %1873 = vst [vmem:[#allocation2 + $0x238] sm:$0xff] %v1745
        %1874 = vst [vmem:[#allocation2 + $0x240] sm:$0xff] %v1746
        %1875 = vst [vmem:[#allocation2 + $0x248] sm:$0xff] %v1747
        %1876 = vst [vmem:[#allocation2 + $0x250] sm:$0xff] %v1748
        %1877 = vst [vmem:[#allocation2 + $0x258] sm:$0xff] %v1749
        %1878 = vst [vmem:[#allocation2 + $0x260] sm:$0xff] %v1750
        %1879 = vst [vmem:[#allocation2 + $0x268] sm:$0xff] %v1751
        %1880 = vst [vmem:[#allocation2 + $0x270] sm:$0xff] %v1752
        %1881 = vst [vmem:[#allocation2 + $0x278] sm:$0xff] %v1753
        %1882 = vst [vmem:[#allocation2 + $0x280] sm:$0xff] %v1754
        %1883 = vst [vmem:[#allocation2 + $0x288] sm:$0xff] %v1755
        %1884 = vst [vmem:[#allocation2 + $0x290] sm:$0xff] %v1756
        %1885 = vst [vmem:[#allocation2 + $0x298] sm:$0xff] %v1757
        %1886 = vst [vmem:[#allocation2 + $0x2a0] sm:$0xff] %v1758
        %1887 = vst [vmem:[#allocation2 + $0x2a8] sm:$0xff] %v1759
        %1888 = vst [vmem:[#allocation2 + $0x2b0] sm:$0xff] %v1760
        %1889 = vst [vmem:[#allocation2 + $0x2b8] sm:$0xff] %v1761
        %1890 = vst [vmem:[#allocation2 + $0x2c0] sm:$0xff] %v1762
        %1891 = vst [vmem:[#allocation2 + $0x2c8] sm:$0xff] %v1763
        %1892 = vst [vmem:[#allocation2 + $0x2d0] sm:$0xff] %v1764
        %1893 = vst [vmem:[#allocation2 + $0x2d8] sm:$0xff] %v1765
        %1894 = vst [vmem:[#allocation2 + $0x2e0] sm:$0xff] %v1766
        %1895 = vst [vmem:[#allocation2 + $0x2e8] sm:$0xff] %v1767
        %1896 = vst [vmem:[#allocation2 + $0x2f0] sm:$0xff] %v1768
        %1897 = vst [vmem:[#allocation2 + $0x2f8] sm:$0xff] %v1769
        %1898 = vst [vmem:[#allocation2 + $0x300] sm:$0xff] %v1770
        %1899 = vst [vmem:[#allocation2 + $0x308] sm:$0xff] %v1771
        %1900 = vst [vmem:[#allocation2 + $0x310] sm:$0xff] %v1772
        %1901 = vst [vmem:[#allocation2 + $0x318] sm:$0xff] %v1773
        %1902 = vst [vmem:[#allocation2 + $0x320] sm:$0xff] %v1774
        %1903 = vst [vmem:[#allocation2 + $0x328] sm:$0xff] %v1775
        %1904 = vst [vmem:[#allocation2 + $0x330] sm:$0xff] %v1776
        %1905 = vst [vmem:[#allocation2 + $0x338] sm:$0xff] %v1777
        %1906 = vst [vmem:[#allocation2 + $0x340] sm:$0xff] %v1778
        %1907 = vst [vmem:[#allocation2 + $0x348] sm:$0xff] %v1779
        %1908 = vst [vmem:[#allocation2 + $0x350] sm:$0xff] %v1780
        %1909 = vst [vmem:[#allocation2 + $0x358] sm:$0xff] %v1781
        %1910 = vst [vmem:[#allocation2 + $0x360] sm:$0xff] %v1782
        %1911 = vst [vmem:[#allocation2 + $0x368] sm:$0xff] %v1783
        %1912 = vst [vmem:[#allocation2 + $0x370] sm:$0xff] %v1784
        %1913 = vst [vmem:[#allocation2 + $0x378] sm:$0xff] %v1785
        %1914 = vst [vmem:[#allocation2 + $0x380] sm:$0xff] %v1786
        %1915 = vst [vmem:[#allocation2 + $0x388] sm:$0xff] %v1787
        %1916 = vst [vmem:[#allocation2 + $0x390] sm:$0xff] %v1788
        %1917 = vst [vmem:[#allocation2 + $0x398] sm:$0xff] %v1789
        %1918 = vst [vmem:[#allocation2 + $0x3a0] sm:$0xff] %v1790
        %1919 = vst [vmem:[#allocation2 + $0x3a8] sm:$0xff] %v1791
        %1920 = vst [vmem:[#allocation2 + $0x3b0] sm:$0xff] %v1792
        %1921 = vst [vmem:[#allocation2 + $0x3b8] sm:$0xff] %v1793
        %1922 = vst [vmem:[#allocation2 + $0x3c0] sm:$0xff] %v1794
        %1923 = vst [vmem:[#allocation2 + $0x3c8] sm:$0xff] %v1795
        %1924 = vst [vmem:[#allocation2 + $0x3d0] sm:$0xff] %v1796
        %1925 = vst [vmem:[#allocation2 + $0x3d8] sm:$0xff] %v1797
        %1926 = vst [vmem:[#allocation2 + $0x3e0] sm:$0xff] %v1798
        %1927 = vst [vmem:[#allocation2 + $0x3e8] sm:$0xff] %v1799
        %1928 = vst [vmem:[#allocation2 + $0x3f0] sm:$0xff] %v1800
        %1929 = vst [vmem:[#allocation2 + $0x3f8] sm:$0xff] %v1801
        // Predicated region
        $region37: #{tpu_custom_call.1} parent=31 // pred_check
          %p1930 = pneg %p333
        $region38: #{tpu_custom_call.1} parent=31 // pred_check_branch
          %1932 = sbr.rel (%p1930) target = $region40
        $region39: #{tpu_custom_call.1} parent=31 // pred_region
          %v1933 = vld [vmem:[#allocation2] sm:$0xff]
          %v1934 = vld [vmem:[#allocation2 + $0x8] sm:$0xff]
          %v1935 = vld [vmem:[#allocation2 + $0x10] sm:$0xff]
          %v1936 = vld [vmem:[#allocation2 + $0x18] sm:$0xff]
          %v1937 = vld [vmem:[#allocation2 + $0x20] sm:$0xff]
          %v1938 = vld [vmem:[#allocation2 + $0x28] sm:$0xff]
          %v1939 = vld [vmem:[#allocation2 + $0x30] sm:$0xff]
          %v1940 = vld [vmem:[#allocation2 + $0x38] sm:$0xff]
          %v1941 = vld [vmem:[#allocation2 + $0x40] sm:$0xff]
          %v1942 = vld [vmem:[#allocation2 + $0x48] sm:$0xff]
          %v1943 = vld [vmem:[#allocation2 + $0x50] sm:$0xff]
          %v1944 = vld [vmem:[#allocation2 + $0x58] sm:$0xff]
          %v1945 = vld [vmem:[#allocation2 + $0x60] sm:$0xff]
          %v1946 = vld [vmem:[#allocation2 + $0x68] sm:$0xff]
          %v1947 = vld [vmem:[#allocation2 + $0x70] sm:$0xff]
          %v1948 = vld [vmem:[#allocation2 + $0x78] sm:$0xff]
          %v1949 = vld [vmem:[#allocation2 + $0x80] sm:$0xff]
          %v1950 = vld [vmem:[#allocation2 + $0x88] sm:$0xff]
          %v1951 = vld [vmem:[#allocation2 + $0x90] sm:$0xff]
          %v1952 = vld [vmem:[#allocation2 + $0x98] sm:$0xff]
          %v1953 = vld [vmem:[#allocation2 + $0xa0] sm:$0xff]
          %v1954 = vld [vmem:[#allocation2 + $0xa8] sm:$0xff]
          %v1955 = vld [vmem:[#allocation2 + $0xb0] sm:$0xff]
          %v1956 = vld [vmem:[#allocation2 + $0xb8] sm:$0xff]
          %v1957 = vld [vmem:[#allocation2 + $0xc0] sm:$0xff]
          %v1958 = vld [vmem:[#allocation2 + $0xc8] sm:$0xff]
          %v1959 = vld [vmem:[#allocation2 + $0xd0] sm:$0xff]
          %v1960 = vld [vmem:[#allocation2 + $0xd8] sm:$0xff]
          %v1961 = vld [vmem:[#allocation2 + $0xe0] sm:$0xff]
          %v1962 = vld [vmem:[#allocation2 + $0xe8] sm:$0xff]
          %v1963 = vld [vmem:[#allocation2 + $0xf0] sm:$0xff]
          %v1964 = vld [vmem:[#allocation2 + $0xf8] sm:$0xff]
          %v1965 = vld [vmem:[#allocation2 + $0x100] sm:$0xff]
          %v1966 = vld [vmem:[#allocation2 + $0x108] sm:$0xff]
          %v1967 = vld [vmem:[#allocation2 + $0x110] sm:$0xff]
          %v1968 = vld [vmem:[#allocation2 + $0x118] sm:$0xff]
          %v1969 = vld [vmem:[#allocation2 + $0x120] sm:$0xff]
          %v1970 = vld [vmem:[#allocation2 + $0x128] sm:$0xff]
          %v1971 = vld [vmem:[#allocation2 + $0x130] sm:$0xff]
          %v1972 = vld [vmem:[#allocation2 + $0x138] sm:$0xff]
          %v1973 = vld [vmem:[#allocation2 + $0x140] sm:$0xff]
          %v1974 = vld [vmem:[#allocation2 + $0x148] sm:$0xff]
          %v1975 = vld [vmem:[#allocation2 + $0x150] sm:$0xff]
          %v1976 = vld [vmem:[#allocation2 + $0x158] sm:$0xff]
          %v1977 = vld [vmem:[#allocation2 + $0x160] sm:$0xff]
          %v1978 = vld [vmem:[#allocation2 + $0x168] sm:$0xff]
          %v1979 = vld [vmem:[#allocation2 + $0x170] sm:$0xff]
          %v1980 = vld [vmem:[#allocation2 + $0x178] sm:$0xff]
          %v1981 = vld [vmem:[#allocation2 + $0x180] sm:$0xff]
          %v1982 = vld [vmem:[#allocation2 + $0x188] sm:$0xff]
          %v1983 = vld [vmem:[#allocation2 + $0x190] sm:$0xff]
          %v1984 = vld [vmem:[#allocation2 + $0x198] sm:$0xff]
          %v1985 = vld [vmem:[#allocation2 + $0x1a0] sm:$0xff]
          %v1986 = vld [vmem:[#allocation2 + $0x1a8] sm:$0xff]
          %v1987 = vld [vmem:[#allocation2 + $0x1b0] sm:$0xff]
          %v1988 = vld [vmem:[#allocation2 + $0x1b8] sm:$0xff]
          %v1989 = vld [vmem:[#allocation2 + $0x1c0] sm:$0xff]
          %v1990 = vld [vmem:[#allocation2 + $0x1c8] sm:$0xff]
          %v1991 = vld [vmem:[#allocation2 + $0x1d0] sm:$0xff]
          %v1992 = vld [vmem:[#allocation2 + $0x1d8] sm:$0xff]
          %v1993 = vld [vmem:[#allocation2 + $0x1e0] sm:$0xff]
          %v1994 = vld [vmem:[#allocation2 + $0x1e8] sm:$0xff]
          %v1995 = vld [vmem:[#allocation2 + $0x1f0] sm:$0xff]
          %v1996 = vld [vmem:[#allocation2 + $0x1f8] sm:$0xff]
          %v1997 = vld [vmem:[#allocation2 + $0x200] sm:$0xff]
          %v1998 = vld [vmem:[#allocation2 + $0x208] sm:$0xff]
          %v1999 = vld [vmem:[#allocation2 + $0x210] sm:$0xff]
          %v2000 = vld [vmem:[#allocation2 + $0x218] sm:$0xff]
          %v2001 = vld [vmem:[#allocation2 + $0x220] sm:$0xff]
          %v2002 = vld [vmem:[#allocation2 + $0x228] sm:$0xff]
          %v2003 = vld [vmem:[#allocation2 + $0x230] sm:$0xff]
          %v2004 = vld [vmem:[#allocation2 + $0x238] sm:$0xff]
          %v2005 = vld [vmem:[#allocation2 + $0x240] sm:$0xff]
          %v2006 = vld [vmem:[#allocation2 + $0x248] sm:$0xff]
          %v2007 = vld [vmem:[#allocation2 + $0x250] sm:$0xff]
          %v2008 = vld [vmem:[#allocation2 + $0x258] sm:$0xff]
          %v2009 = vld [vmem:[#allocation2 + $0x260] sm:$0xff]
          %v2010 = vld [vmem:[#allocation2 + $0x268] sm:$0xff]
          %v2011 = vld [vmem:[#allocation2 + $0x270] sm:$0xff]
          %v2012 = vld [vmem:[#allocation2 + $0x278] sm:$0xff]
          %v2013 = vld [vmem:[#allocation2 + $0x280] sm:$0xff]
          %v2014 = vld [vmem:[#allocation2 + $0x288] sm:$0xff]
          %v2015 = vld [vmem:[#allocation2 + $0x290] sm:$0xff]
          %v2016 = vld [vmem:[#allocation2 + $0x298] sm:$0xff]
          %v2017 = vld [vmem:[#allocation2 + $0x2a0] sm:$0xff]
          %v2018 = vld [vmem:[#allocation2 + $0x2a8] sm:$0xff]
          %v2019 = vld [vmem:[#allocation2 + $0x2b0] sm:$0xff]
          %v2020 = vld [vmem:[#allocation2 + $0x2b8] sm:$0xff]
          %v2021 = vld [vmem:[#allocation2 + $0x2c0] sm:$0xff]
          %v2022 = vld [vmem:[#allocation2 + $0x2c8] sm:$0xff]
          %v2023 = vld [vmem:[#allocation2 + $0x2d0] sm:$0xff]
          %v2024 = vld [vmem:[#allocation2 + $0x2d8] sm:$0xff]
          %v2025 = vld [vmem:[#allocation2 + $0x2e0] sm:$0xff]
          %v2026 = vld [vmem:[#allocation2 + $0x2e8] sm:$0xff]
          %v2027 = vld [vmem:[#allocation2 + $0x2f0] sm:$0xff]
          %v2028 = vld [vmem:[#allocation2 + $0x2f8] sm:$0xff]
          %v2029 = vld [vmem:[#allocation2 + $0x300] sm:$0xff]
          %v2030 = vld [vmem:[#allocation2 + $0x308] sm:$0xff]
          %v2031 = vld [vmem:[#allocation2 + $0x310] sm:$0xff]
          %v2032 = vld [vmem:[#allocation2 + $0x318] sm:$0xff]
          %v2033 = vld [vmem:[#allocation2 + $0x320] sm:$0xff]
          %v2034 = vld [vmem:[#allocation2 + $0x328] sm:$0xff]
          %v2035 = vld [vmem:[#allocation2 + $0x330] sm:$0xff]
          %v2036 = vld [vmem:[#allocation2 + $0x338] sm:$0xff]
          %v2037 = vld [vmem:[#allocation2 + $0x340] sm:$0xff]
          %v2038 = vld [vmem:[#allocation2 + $0x348] sm:$0xff]
          %v2039 = vld [vmem:[#allocation2 + $0x350] sm:$0xff]
          %v2040 = vld [vmem:[#allocation2 + $0x358] sm:$0xff]
          %v2041 = vld [vmem:[#allocation2 + $0x360] sm:$0xff]
          %v2042 = vld [vmem:[#allocation2 + $0x368] sm:$0xff]
          %v2043 = vld [vmem:[#allocation2 + $0x370] sm:$0xff]
          %v2044 = vld [vmem:[#allocation2 + $0x378] sm:$0xff]
          %v2045 = vld [vmem:[#allocation2 + $0x380] sm:$0xff]
          %v2046 = vld [vmem:[#allocation2 + $0x388] sm:$0xff]
          %v2047 = vld [vmem:[#allocation2 + $0x390] sm:$0xff]
          %v2048 = vld [vmem:[#allocation2 + $0x398] sm:$0xff]
          %v2049 = vld [vmem:[#allocation2 + $0x3a0] sm:$0xff]
          %v2050 = vld [vmem:[#allocation2 + $0x3a8] sm:$0xff]
          %v2051 = vld [vmem:[#allocation2 + $0x3b0] sm:$0xff]
          %v2052 = vld [vmem:[#allocation2 + $0x3b8] sm:$0xff]
          %v2053 = vld [vmem:[#allocation2 + $0x3c0] sm:$0xff]
          %v2054 = vld [vmem:[#allocation2 + $0x3c8] sm:$0xff]
          %v2055 = vld [vmem:[#allocation2 + $0x3d0] sm:$0xff]
          %v2056 = vld [vmem:[#allocation2 + $0x3d8] sm:$0xff]
          %v2057 = vld [vmem:[#allocation2 + $0x3e0] sm:$0xff]
          %v2058 = vld [vmem:[#allocation2 + $0x3e8] sm:$0xff]
          %v2059 = vld [vmem:[#allocation2 + $0x3f0] sm:$0xff]
          %v2060 = vld [vmem:[#allocation2 + $0x3f8] sm:$0xff]
          %v2061 = vld [vmem:[%s2] sm:$0xff]
          %v2062 = vld [vmem:[%s2 + $0x8] sm:$0xff]
          %v2063 = vld [vmem:[%s2 + $0x10] sm:$0xff]
          %v2064 = vld [vmem:[%s2 + $0x18] sm:$0xff]
          %2066 = vset.pattern.permute.xlu0 0
          %2067 = vperm.xlu0 %2066, %v2061
          %v2068 = vpop.permute.xlu0 %2067
          %2071 = vset.pattern.permute.xlu0 0
          %2072 = vperm.xlu0 %2071, %v2062
          %v2073 = vpop.permute.xlu0 %2072
          %2076 = vset.pattern.permute.xlu0 0
          %2077 = vperm.xlu0 %2076, %v2063
          %v2078 = vpop.permute.xlu0 %2077
          %2081 = vset.pattern.permute.xlu0 0
          %2082 = vperm.xlu0 %2081, %v2064
          %v2083 = vpop.permute.xlu0 %2082
          %v2085 = vadd.f32 %v1933, %v2068
          %v2086 = vadd.f32 %v1934, %v2068
          %v2087 = vadd.f32 %v1935, %v2068
          %v2088 = vadd.f32 %v1936, %v2068
          %v2089 = vadd.f32 %v1937, %v2068
          %v2090 = vadd.f32 %v1938, %v2068
          %v2091 = vadd.f32 %v1939, %v2068
          %v2092 = vadd.f32 %v1940, %v2068
          %v2093 = vadd.f32 %v1941, %v2068
          %v2094 = vadd.f32 %v1942, %v2068
          %v2095 = vadd.f32 %v1943, %v2068
          %v2096 = vadd.f32 %v1944, %v2068
          %v2097 = vadd.f32 %v1945, %v2068
          %v2098 = vadd.f32 %v1946, %v2068
          %v2099 = vadd.f32 %v1947, %v2068
          %v2100 = vadd.f32 %v1948, %v2068
          %v2101 = vadd.f32 %v1949, %v2068
          %v2102 = vadd.f32 %v1950, %v2068
          %v2103 = vadd.f32 %v1951, %v2068
          %v2104 = vadd.f32 %v1952, %v2068
          %v2105 = vadd.f32 %v1953, %v2068
          %v2106 = vadd.f32 %v1954, %v2068
          %v2107 = vadd.f32 %v1955, %v2068
          %v2108 = vadd.f32 %v1956, %v2068
          %v2109 = vadd.f32 %v1957, %v2068
          %v2110 = vadd.f32 %v1958, %v2068
          %v2111 = vadd.f32 %v1959, %v2068
          %v2112 = vadd.f32 %v1960, %v2068
          %v2113 = vadd.f32 %v1961, %v2068
          %v2114 = vadd.f32 %v1962, %v2068
          %v2115 = vadd.f32 %v1963, %v2068
          %v2116 = vadd.f32 %v1964, %v2068
          %v2117 = vadd.f32 %v1965, %v2073
          %v2118 = vadd.f32 %v1966, %v2073
          %v2119 = vadd.f32 %v1967, %v2073
          %v2120 = vadd.f32 %v1968, %v2073
          %v2121 = vadd.f32 %v1969, %v2073
          %v2122 = vadd.f32 %v1970, %v2073
          %v2123 = vadd.f32 %v1971, %v2073
          %v2124 = vadd.f32 %v1972, %v2073
          %v2125 = vadd.f32 %v1973, %v2073
          %v2126 = vadd.f32 %v1974, %v2073
          %v2127 = vadd.f32 %v1975, %v2073
          %v2128 = vadd.f32 %v1976, %v2073
          %v2129 = vadd.f32 %v1977, %v2073
          %v2130 = vadd.f32 %v1978, %v2073
          %v2131 = vadd.f32 %v1979, %v2073
          %v2132 = vadd.f32 %v1980, %v2073
          %v2133 = vadd.f32 %v1981, %v2073
          %v2134 = vadd.f32 %v1982, %v2073
          %v2135 = vadd.f32 %v1983, %v2073
          %v2136 = vadd.f32 %v1984, %v2073
          %v2137 = vadd.f32 %v1985, %v2073
          %v2138 = vadd.f32 %v1986, %v2073
          %v2139 = vadd.f32 %v1987, %v2073
          %v2140 = vadd.f32 %v1988, %v2073
          %v2141 = vadd.f32 %v1989, %v2073
          %v2142 = vadd.f32 %v1990, %v2073
          %v2143 = vadd.f32 %v1991, %v2073
          %v2144 = vadd.f32 %v1992, %v2073
          %v2145 = vadd.f32 %v1993, %v2073
          %v2146 = vadd.f32 %v1994, %v2073
          %v2147 = vadd.f32 %v1995, %v2073
          %v2148 = vadd.f32 %v1996, %v2073
          %v2149 = vadd.f32 %v1997, %v2078
          %v2150 = vadd.f32 %v1998, %v2078
          %v2151 = vadd.f32 %v1999, %v2078
          %v2152 = vadd.f32 %v2000, %v2078
          %v2153 = vadd.f32 %v2001, %v2078
          %v2154 = vadd.f32 %v2002, %v2078
          %v2155 = vadd.f32 %v2003, %v2078
          %v2156 = vadd.f32 %v2004, %v2078
          %v2157 = vadd.f32 %v2005, %v2078
          %v2158 = vadd.f32 %v2006, %v2078
          %v2159 = vadd.f32 %v2007, %v2078
          %v2160 = vadd.f32 %v2008, %v2078
          %v2161 = vadd.f32 %v2009, %v2078
          %v2162 = vadd.f32 %v2010, %v2078
          %v2163 = vadd.f32 %v2011, %v2078
          %v2164 = vadd.f32 %v2012, %v2078
          %v2165 = vadd.f32 %v2013, %v2078
          %v2166 = vadd.f32 %v2014, %v2078
          %v2167 = vadd.f32 %v2015, %v2078
          %v2168 = vadd.f32 %v2016, %v2078
          %v2169 = vadd.f32 %v2017, %v2078
          %v2170 = vadd.f32 %v2018, %v2078
          %v2171 = vadd.f32 %v2019, %v2078
          %v2172 = vadd.f32 %v2020, %v2078
          %v2173 = vadd.f32 %v2021, %v2078
          %v2174 = vadd.f32 %v2022, %v2078
          %v2175 = vadd.f32 %v2023, %v2078
          %v2176 = vadd.f32 %v2024, %v2078
          %v2177 = vadd.f32 %v2025, %v2078
          %v2178 = vadd.f32 %v2026, %v2078
          %v2179 = vadd.f32 %v2027, %v2078
          %v2180 = vadd.f32 %v2028, %v2078
          %v2181 = vadd.f32 %v2029, %v2083
          %v2182 = vadd.f32 %v2030, %v2083
          %v2183 = vadd.f32 %v2031, %v2083
          %v2184 = vadd.f32 %v2032, %v2083
          %v2185 = vadd.f32 %v2033, %v2083
          %v2186 = vadd.f32 %v2034, %v2083
          %v2187 = vadd.f32 %v2035, %v2083
          %v2188 = vadd.f32 %v2036, %v2083
          %v2189 = vadd.f32 %v2037, %v2083
          %v2190 = vadd.f32 %v2038, %v2083
          %v2191 = vadd.f32 %v2039, %v2083
          %v2192 = vadd.f32 %v2040, %v2083
          %v2193 = vadd.f32 %v2041, %v2083
          %v2194 = vadd.f32 %v2042, %v2083
          %v2195 = vadd.f32 %v2043, %v2083
          %v2196 = vadd.f32 %v2044, %v2083
          %v2197 = vadd.f32 %v2045, %v2083
          %v2198 = vadd.f32 %v2046, %v2083
          %v2199 = vadd.f32 %v2047, %v2083
          %v2200 = vadd.f32 %v2048, %v2083
          %v2201 = vadd.f32 %v2049, %v2083
          %v2202 = vadd.f32 %v2050, %v2083
          %v2203 = vadd.f32 %v2051, %v2083
          %v2204 = vadd.f32 %v2052, %v2083
          %v2205 = vadd.f32 %v2053, %v2083
          %v2206 = vadd.f32 %v2054, %v2083
          %v2207 = vadd.f32 %v2055, %v2083
          %v2208 = vadd.f32 %v2056, %v2083
          %v2209 = vadd.f32 %v2057, %v2083
          %v2210 = vadd.f32 %v2058, %v2083
          %v2211 = vadd.f32 %v2059, %v2083
          %v2212 = vadd.f32 %v2060, %v2083
          %v2213 = vpack.c.bf16 %v2086, %v2085
          %v2214 = vpack.c.bf16 %v2088, %v2087
          %v2215 = vpack.c.bf16 %v2090, %v2089
          %v2216 = vpack.c.bf16 %v2092, %v2091
          %v2217 = vpack.c.bf16 %v2094, %v2093
          %v2218 = vpack.c.bf16 %v2096, %v2095
          %v2219 = vpack.c.bf16 %v2098, %v2097
          %v2220 = vpack.c.bf16 %v2100, %v2099
          %v2221 = vpack.c.bf16 %v2102, %v2101
          %v2222 = vpack.c.bf16 %v2104, %v2103
          %v2223 = vpack.c.bf16 %v2106, %v2105
          %v2224 = vpack.c.bf16 %v2108, %v2107
          %v2225 = vpack.c.bf16 %v2110, %v2109
          %v2226 = vpack.c.bf16 %v2112, %v2111
          %v2227 = vpack.c.bf16 %v2114, %v2113
          %v2228 = vpack.c.bf16 %v2116, %v2115
          %v2229 = vpack.c.bf16 %v2118, %v2117
          %v2230 = vpack.c.bf16 %v2120, %v2119
          %v2231 = vpack.c.bf16 %v2122, %v2121
          %v2232 = vpack.c.bf16 %v2124, %v2123
          %v2233 = vpack.c.bf16 %v2126, %v2125
          %v2234 = vpack.c.bf16 %v2128, %v2127
          %v2235 = vpack.c.bf16 %v2130, %v2129
          %v2236 = vpack.c.bf16 %v2132, %v2131
          %v2237 = vpack.c.bf16 %v2134, %v2133
          %v2238 = vpack.c.bf16 %v2136, %v2135
          %v2239 = vpack.c.bf16 %v2138, %v2137
          %v2240 = vpack.c.bf16 %v2140, %v2139
          %v2241 = vpack.c.bf16 %v2142, %v2141
          %v2242 = vpack.c.bf16 %v2144, %v2143
          %v2243 = vpack.c.bf16 %v2146, %v2145
          %v2244 = vpack.c.bf16 %v2148, %v2147
          %v2245 = vpack.c.bf16 %v2150, %v2149
          %v2246 = vpack.c.bf16 %v2152, %v2151
          %v2247 = vpack.c.bf16 %v2154, %v2153
          %v2248 = vpack.c.bf16 %v2156, %v2155
          %v2249 = vpack.c.bf16 %v2158, %v2157
          %v2250 = vpack.c.bf16 %v2160, %v2159
          %v2251 = vpack.c.bf16 %v2162, %v2161
          %v2252 = vpack.c.bf16 %v2164, %v2163
          %v2253 = vpack.c.bf16 %v2166, %v2165
          %v2254 = vpack.c.bf16 %v2168, %v2167
          %v2255 = vpack.c.bf16 %v2170, %v2169
          %v2256 = vpack.c.bf16 %v2172, %v2171
          %v2257 = vpack.c.bf16 %v2174, %v2173
          %v2258 = vpack.c.bf16 %v2176, %v2175
          %v2259 = vpack.c.bf16 %v2178, %v2177
          %v2260 = vpack.c.bf16 %v2180, %v2179
          %v2261 = vpack.c.bf16 %v2182, %v2181
          %v2262 = vpack.c.bf16 %v2184, %v2183
          %v2263 = vpack.c.bf16 %v2186, %v2185
          %v2264 = vpack.c.bf16 %v2188, %v2187
          %v2265 = vpack.c.bf16 %v2190, %v2189
          %v2266 = vpack.c.bf16 %v2192, %v2191
          %v2267 = vpack.c.bf16 %v2194, %v2193
          %v2268 = vpack.c.bf16 %v2196, %v2195
          %v2269 = vpack.c.bf16 %v2198, %v2197
          %v2270 = vpack.c.bf16 %v2200, %v2199
          %v2271 = vpack.c.bf16 %v2202, %v2201
          %v2272 = vpack.c.bf16 %v2204, %v2203
          %v2273 = vpack.c.bf16 %v2206, %v2205
          %v2274 = vpack.c.bf16 %v2208, %v2207
          %v2275 = vpack.c.bf16 %v2210, %v2209
          %v2276 = vpack.c.bf16 %v2212, %v2211
          %2277 = vst [vmem:[%s280] sm:$0xff] %v2213
          %2278 = vst [vmem:[%s280 + $0x8] sm:$0xff] %v2214
          %2279 = vst [vmem:[%s280 + $0x10] sm:$0xff] %v2215
          %2280 = vst [vmem:[%s280 + $0x18] sm:$0xff] %v2216
          %2281 = vst [vmem:[%s280 + $0x20] sm:$0xff] %v2217
          %2282 = vst [vmem:[%s280 + $0x28] sm:$0xff] %v2218
          %2283 = vst [vmem:[%s280 + $0x30] sm:$0xff] %v2219
          %2284 = vst [vmem:[%s280 + $0x38] sm:$0xff] %v2220
          %2285 = vst [vmem:[%s280 + $0x40] sm:$0xff] %v2221
          %2286 = vst [vmem:[%s280 + $0x48] sm:$0xff] %v2222
          %2287 = vst [vmem:[%s280 + $0x50] sm:$0xff] %v2223
          %2288 = vst [vmem:[%s280 + $0x58] sm:$0xff] %v2224
          %2289 = vst [vmem:[%s280 + $0x60] sm:$0xff] %v2225
          %2290 = vst [vmem:[%s280 + $0x68] sm:$0xff] %v2226
          %2291 = vst [vmem:[%s280 + $0x70] sm:$0xff] %v2227
          %2292 = vst [vmem:[%s280 + $0x78] sm:$0xff] %v2228
          %2293 = vst [vmem:[%s280 + $0x80] sm:$0xff] %v2229
          %2294 = vst [vmem:[%s280 + $0x88] sm:$0xff] %v2230
          %2295 = vst [vmem:[%s280 + $0x90] sm:$0xff] %v2231
          %2296 = vst [vmem:[%s280 + $0x98] sm:$0xff] %v2232
          %2297 = vst [vmem:[%s280 + $0xa0] sm:$0xff] %v2233
          %2298 = vst [vmem:[%s280 + $0xa8] sm:$0xff] %v2234
          %2299 = vst [vmem:[%s280 + $0xb0] sm:$0xff] %v2235
          %2300 = vst [vmem:[%s280 + $0xb8] sm:$0xff] %v2236
          %2301 = vst [vmem:[%s280 + $0xc0] sm:$0xff] %v2237
          %2302 = vst [vmem:[%s280 + $0xc8] sm:$0xff] %v2238
          %2303 = vst [vmem:[%s280 + $0xd0] sm:$0xff] %v2239
          %2304 = vst [vmem:[%s280 + $0xd8] sm:$0xff] %v2240
          %2305 = vst [vmem:[%s280 + $0xe0] sm:$0xff] %v2241
          %2306 = vst [vmem:[%s280 + $0xe8] sm:$0xff] %v2242
          %2307 = vst [vmem:[%s280 + $0xf0] sm:$0xff] %v2243
          %2308 = vst [vmem:[%s280 + $0xf8] sm:$0xff] %v2244
          %2309 = vst [vmem:[%s280 + $0x100] sm:$0xff] %v2245
          %2310 = vst [vmem:[%s280 + $0x108] sm:$0xff] %v2246
          %2311 = vst [vmem:[%s280 + $0x110] sm:$0xff] %v2247
          %2312 = vst [vmem:[%s280 + $0x118] sm:$0xff] %v2248
          %2313 = vst [vmem:[%s280 + $0x120] sm:$0xff] %v2249
          %2314 = vst [vmem:[%s280 + $0x128] sm:$0xff] %v2250
          %2315 = vst [vmem:[%s280 + $0x130] sm:$0xff] %v2251
          %2316 = vst [vmem:[%s280 + $0x138] sm:$0xff] %v2252
          %2317 = vst [vmem:[%s280 + $0x140] sm:$0xff] %v2253
          %2318 = vst [vmem:[%s280 + $0x148] sm:$0xff] %v2254
          %2319 = vst [vmem:[%s280 + $0x150] sm:$0xff] %v2255
          %2320 = vst [vmem:[%s280 + $0x158] sm:$0xff] %v2256
          %2321 = vst [vmem:[%s280 + $0x160] sm:$0xff] %v2257
          %2322 = vst [vmem:[%s280 + $0x168] sm:$0xff] %v2258
          %2323 = vst [vmem:[%s280 + $0x170] sm:$0xff] %v2259
          %2324 = vst [vmem:[%s280 + $0x178] sm:$0xff] %v2260
          %2325 = vst [vmem:[%s280 + $0x180] sm:$0xff] %v2261
          %2326 = vst [vmem:[%s280 + $0x188] sm:$0xff] %v2262
          %2327 = vst [vmem:[%s280 + $0x190] sm:$0xff] %v2263
          %2328 = vst [vmem:[%s280 + $0x198] sm:$0xff] %v2264
          %2329 = vst [vmem:[%s280 + $0x1a0] sm:$0xff] %v2265
          %2330 = vst [vmem:[%s280 + $0x1a8] sm:$0xff] %v2266
          %2331 = vst [vmem:[%s280 + $0x1b0] sm:$0xff] %v2267
          %2332 = vst [vmem:[%s280 + $0x1b8] sm:$0xff] %v2268
          %2333 = vst [vmem:[%s280 + $0x1c0] sm:$0xff] %v2269
          %2334 = vst [vmem:[%s280 + $0x1c8] sm:$0xff] %v2270
          %2335 = vst [vmem:[%s280 + $0x1d0] sm:$0xff] %v2271
          %2336 = vst [vmem:[%s280 + $0x1d8] sm:$0xff] %v2272
          %2337 = vst [vmem:[%s280 + $0x1e0] sm:$0xff] %v2273
          %2338 = vst [vmem:[%s280 + $0x1e8] sm:$0xff] %v2274
          %2339 = vst [vmem:[%s280 + $0x1f0] sm:$0xff] %v2275
          %2340 = vst [vmem:[%s280 + $0x1f8] sm:$0xff] %v2276
          %v2341 = vadd.f32 %v2085, %v2086
          %v2342 = vadd.f32 %v2341, %v2087
          %v2343 = vadd.f32 %v2342, %v2088
          %v2344 = vadd.f32 %v2343, %v2089
          %v2345 = vadd.f32 %v2344, %v2090
          %v2346 = vadd.f32 %v2345, %v2091
          %v2347 = vadd.f32 %v2346, %v2092
          %v2348 = vadd.f32 %v2347, %v2093
          %v2349 = vadd.f32 %v2348, %v2094
          %v2350 = vadd.f32 %v2349, %v2095
          %v2351 = vadd.f32 %v2350, %v2096
          %v2352 = vadd.f32 %v2351, %v2097
          %v2353 = vadd.f32 %v2352, %v2098
          %v2354 = vadd.f32 %v2353, %v2099
          %v2355 = vadd.f32 %v2354, %v2100
          %v2356 = vadd.f32 %v2355, %v2101
          %v2357 = vadd.f32 %v2356, %v2102
          %v2358 = vadd.f32 %v2357, %v2103
          %v2359 = vadd.f32 %v2358, %v2104
          %v2360 = vadd.f32 %v2359, %v2105
          %v2361 = vadd.f32 %v2360, %v2106
          %v2362 = vadd.f32 %v2361, %v2107
          %v2363 = vadd.f32 %v2362, %v2108
          %v2364 = vadd.f32 %v2363, %v2109
          %v2365 = vadd.f32 %v2364, %v2110
          %v2366 = vadd.f32 %v2365, %v2111
          %v2367 = vadd.f32 %v2366, %v2112
          %v2368 = vadd.f32 %v2367, %v2113
          %v2369 = vadd.f32 %v2368, %v2114
          %v2370 = vadd.f32 %v2369, %v2115
          %v2371 = vadd.f32 %v2370, %v2116
          %2372 = vadd.xlane.f32.xlu0 %v2371
          %v2373 = vpop.xlane.xlu0 %2372
          %v2374 = vadd.f32 %v2117, %v2118
          %v2375 = vadd.f32 %v2374, %v2119
          %v2376 = vadd.f32 %v2375, %v2120
          %v2377 = vadd.f32 %v2376, %v2121
          %v2378 = vadd.f32 %v2377, %v2122
          %v2379 = vadd.f32 %v2378, %v2123
          %v2380 = vadd.f32 %v2379, %v2124
          %v2381 = vadd.f32 %v2380, %v2125
          %v2382 = vadd.f32 %v2381, %v2126
          %v2383 = vadd.f32 %v2382, %v2127
          %v2384 = vadd.f32 %v2383, %v2128
          %v2385 = vadd.f32 %v2384, %v2129
          %v2386 = vadd.f32 %v2385, %v2130
          %v2387 = vadd.f32 %v2386, %v2131
          %v2388 = vadd.f32 %v2387, %v2132
          %v2389 = vadd.f32 %v2388, %v2133
          %v2390 = vadd.f32 %v2389, %v2134
          %v2391 = vadd.f32 %v2390, %v2135
          %v2392 = vadd.f32 %v2391, %v2136
          %v2393 = vadd.f32 %v2392, %v2137
          %v2394 = vadd.f32 %v2393, %v2138
          %v2395 = vadd.f32 %v2394, %v2139
          %v2396 = vadd.f32 %v2395, %v2140
          %v2397 = vadd.f32 %v2396, %v2141
          %v2398 = vadd.f32 %v2397, %v2142
          %v2399 = vadd.f32 %v2398, %v2143
          %v2400 = vadd.f32 %v2399, %v2144
          %v2401 = vadd.f32 %v2400, %v2145
          %v2402 = vadd.f32 %v2401, %v2146
          %v2403 = vadd.f32 %v2402, %v2147
          %v2404 = vadd.f32 %v2403, %v2148
          %2405 = vadd.xlane.f32.xlu0 %v2404
          %v2406 = vpop.xlane.xlu0 %2405
          %v2407 = vadd.f32 %v2149, %v2150
          %v2408 = vadd.f32 %v2407, %v2151
          %v2409 = vadd.f32 %v2408, %v2152
          %v2410 = vadd.f32 %v2409, %v2153
          %v2411 = vadd.f32 %v2410, %v2154
          %v2412 = vadd.f32 %v2411, %v2155
          %v2413 = vadd.f32 %v2412, %v2156
          %v2414 = vadd.f32 %v2413, %v2157
          %v2415 = vadd.f32 %v2414, %v2158
          %v2416 = vadd.f32 %v2415, %v2159
          %v2417 = vadd.f32 %v2416, %v2160
          %v2418 = vadd.f32 %v2417, %v2161
          %v2419 = vadd.f32 %v2418, %v2162
          %v2420 = vadd.f32 %v2419, %v2163
          %v2421 = vadd.f32 %v2420, %v2164
          %v2422 = vadd.f32 %v2421, %v2165
          %v2423 = vadd.f32 %v2422, %v2166
          %v2424 = vadd.f32 %v2423, %v2167
          %v2425 = vadd.f32 %v2424, %v2168
          %v2426 = vadd.f32 %v2425, %v2169
          %v2427 = vadd.f32 %v2426, %v2170
          %v2428 = vadd.f32 %v2427, %v2171
          %v2429 = vadd.f32 %v2428, %v2172
          %v2430 = vadd.f32 %v2429, %v2173
          %v2431 = vadd.f32 %v2430, %v2174
          %v2432 = vadd.f32 %v2431, %v2175
          %v2433 = vadd.f32 %v2432, %v2176
          %v2434 = vadd.f32 %v2433, %v2177
          %v2435 = vadd.f32 %v2434, %v2178
          %v2436 = vadd.f32 %v2435, %v2179
          %v2437 = vadd.f32 %v2436, %v2180
          %2438 = vadd.xlane.f32.xlu0 %v2437
          %v2439 = vpop.xlane.xlu0 %2438
          %v2440 = vadd.f32 %v2181, %v2182
          %v2441 = vadd.f32 %v2440, %v2183
          %v2442 = vadd.f32 %v2441, %v2184
          %v2443 = vadd.f32 %v2442, %v2185
          %v2444 = vadd.f32 %v2443, %v2186
          %v2445 = vadd.f32 %v2444, %v2187
          %v2446 = vadd.f32 %v2445, %v2188
          %v2447 = vadd.f32 %v2446, %v2189
          %v2448 = vadd.f32 %v2447, %v2190
          %v2449 = vadd.f32 %v2448, %v2191
          %v2450 = vadd.f32 %v2449, %v2192
          %v2451 = vadd.f32 %v2450, %v2193
          %v2452 = vadd.f32 %v2451, %v2194
          %v2453 = vadd.f32 %v2452, %v2195
          %v2454 = vadd.f32 %v2453, %v2196
          %v2455 = vadd.f32 %v2454, %v2197
          %v2456 = vadd.f32 %v2455, %v2198
          %v2457 = vadd.f32 %v2456, %v2199
          %v2458 = vadd.f32 %v2457, %v2200
          %v2459 = vadd.f32 %v2458, %v2201
          %v2460 = vadd.f32 %v2459, %v2202
          %v2461 = vadd.f32 %v2460, %v2203
          %v2462 = vadd.f32 %v2461, %v2204
          %v2463 = vadd.f32 %v2462, %v2205
          %v2464 = vadd.f32 %v2463, %v2206
          %v2465 = vadd.f32 %v2464, %v2207
          %v2466 = vadd.f32 %v2465, %v2208
          %v2467 = vadd.f32 %v2466, %v2209
          %v2468 = vadd.f32 %v2467, %v2210
          %v2469 = vadd.f32 %v2468, %v2211
          %v2470 = vadd.f32 %v2469, %v2212
          %2471 = vadd.xlane.f32.xlu0 %v2470
          %v2472 = vpop.xlane.xlu0 %2471
          %vm2473 = vcmask 7168
          %2474 = vst.msk [vmem:[%s323] sm:$0xff] %vm2473, %v2373
          %2475 = vst.msk [vmem:[%s323 + $0x8] sm:$0xff] %vm2473, %v2406
          %2476 = vst.msk [vmem:[%s323 + $0x10] sm:$0xff] %vm2473, %v2439
          %2477 = vst.msk [vmem:[%s323 + $0x18] sm:$0xff] %vm2473, %v2472
          %v2478 = vmul.f32 %v2085, %v2085
          %v2479 = vmul.f32 %v2086, %v2086
          %v2480 = vmul.f32 %v2087, %v2087
          %v2481 = vmul.f32 %v2088, %v2088
          %v2482 = vmul.f32 %v2089, %v2089
          %v2483 = vmul.f32 %v2090, %v2090
          %v2484 = vmul.f32 %v2091, %v2091
          %v2485 = vmul.f32 %v2092, %v2092
          %v2486 = vmul.f32 %v2093, %v2093
          %v2487 = vmul.f32 %v2094, %v2094
          %v2488 = vmul.f32 %v2095, %v2095
          %v2489 = vmul.f32 %v2096, %v2096
          %v2490 = vmul.f32 %v2097, %v2097
          %v2491 = vmul.f32 %v2098, %v2098
          %v2492 = vmul.f32 %v2099, %v2099
          %v2493 = vmul.f32 %v2100, %v2100
          %v2494 = vmul.f32 %v2101, %v2101
          %v2495 = vmul.f32 %v2102, %v2102
          %v2496 = vmul.f32 %v2103, %v2103
          %v2497 = vmul.f32 %v2104, %v2104
          %v2498 = vmul.f32 %v2105, %v2105
          %v2499 = vmul.f32 %v2106, %v2106
          %v2500 = vmul.f32 %v2107, %v2107
          %v2501 = vmul.f32 %v2108, %v2108
          %v2502 = vmul.f32 %v2109, %v2109
          %v2503 = vmul.f32 %v2110, %v2110
          %v2504 = vmul.f32 %v2111, %v2111
          %v2505 = vmul.f32 %v2112, %v2112
          %v2506 = vmul.f32 %v2113, %v2113
          %v2507 = vmul.f32 %v2114, %v2114
          %v2508 = vmul.f32 %v2115, %v2115
          %v2509 = vmul.f32 %v2116, %v2116
          %v2510 = vmul.f32 %v2117, %v2117
          %v2511 = vmul.f32 %v2118, %v2118
          %v2512 = vmul.f32 %v2119, %v2119
          %v2513 = vmul.f32 %v2120, %v2120
          %v2514 = vmul.f32 %v2121, %v2121
          %v2515 = vmul.f32 %v2122, %v2122
          %v2516 = vmul.f32 %v2123, %v2123
          %v2517 = vmul.f32 %v2124, %v2124
          %v2518 = vmul.f32 %v2125, %v2125
          %v2519 = vmul.f32 %v2126, %v2126
          %v2520 = vmul.f32 %v2127, %v2127
          %v2521 = vmul.f32 %v2128, %v2128
          %v2522 = vmul.f32 %v2129, %v2129
          %v2523 = vmul.f32 %v2130, %v2130
          %v2524 = vmul.f32 %v2131, %v2131
          %v2525 = vmul.f32 %v2132, %v2132
          %v2526 = vmul.f32 %v2133, %v2133
          %v2527 = vmul.f32 %v2134, %v2134
          %v2528 = vmul.f32 %v2135, %v2135
          %v2529 = vmul.f32 %v2136, %v2136
          %v2530 = vmul.f32 %v2137, %v2137
          %v2531 = vmul.f32 %v2138, %v2138
          %v2532 = vmul.f32 %v2139, %v2139
          %v2533 = vmul.f32 %v2140, %v2140
          %v2534 = vmul.f32 %v2141, %v2141
          %v2535 = vmul.f32 %v2142, %v2142
          %v2536 = vmul.f32 %v2143, %v2143
          %v2537 = vmul.f32 %v2144, %v2144
          %v2538 = vmul.f32 %v2145, %v2145
          %v2539 = vmul.f32 %v2146, %v2146
          %v2540 = vmul.f32 %v2147, %v2147
          %v2541 = vmul.f32 %v2148, %v2148
          %v2542 = vmul.f32 %v2149, %v2149
          %v2543 = vmul.f32 %v2150, %v2150
          %v2544 = vmul.f32 %v2151, %v2151
          %v2545 = vmul.f32 %v2152, %v2152
          %v2546 = vmul.f32 %v2153, %v2153
          %v2547 = vmul.f32 %v2154, %v2154
          %v2548 = vmul.f32 %v2155, %v2155
          %v2549 = vmul.f32 %v2156, %v2156
          %v2550 = vmul.f32 %v2157, %v2157
          %v2551 = vmul.f32 %v2158, %v2158
          %v2552 = vmul.f32 %v2159, %v2159
          %v2553 = vmul.f32 %v2160, %v2160
          %v2554 = vmul.f32 %v2161, %v2161
          %v2555 = vmul.f32 %v2162, %v2162
          %v2556 = vmul.f32 %v2163, %v2163
          %v2557 = vmul.f32 %v2164, %v2164
          %v2558 = vmul.f32 %v2165, %v2165
          %v2559 = vmul.f32 %v2166, %v2166
          %v2560 = vmul.f32 %v2167, %v2167
          %v2561 = vmul.f32 %v2168, %v2168
          %v2562 = vmul.f32 %v2169, %v2169
          %v2563 = vmul.f32 %v2170, %v2170
          %v2564 = vmul.f32 %v2171, %v2171
          %v2565 = vmul.f32 %v2172, %v2172
          %v2566 = vmul.f32 %v2173, %v2173
          %v2567 = vmul.f32 %v2174, %v2174
          %v2568 = vmul.f32 %v2175, %v2175
          %v2569 = vmul.f32 %v2176, %v2176
          %v2570 = vmul.f32 %v2177, %v2177
          %v2571 = vmul.f32 %v2178, %v2178
          %v2572 = vmul.f32 %v2179, %v2179
          %v2573 = vmul.f32 %v2180, %v2180
          %v2574 = vmul.f32 %v2181, %v2181
          %v2575 = vmul.f32 %v2182, %v2182
          %v2576 = vmul.f32 %v2183, %v2183
          %v2577 = vmul.f32 %v2184, %v2184
          %v2578 = vmul.f32 %v2185, %v2185
          %v2579 = vmul.f32 %v2186, %v2186
          %v2580 = vmul.f32 %v2187, %v2187
          %v2581 = vmul.f32 %v2188, %v2188
          %v2582 = vmul.f32 %v2189, %v2189
          %v2583 = vmul.f32 %v2190, %v2190
          %v2584 = vmul.f32 %v2191, %v2191
          %v2585 = vmul.f32 %v2192, %v2192
          %v2586 = vmul.f32 %v2193, %v2193
          %v2587 = vmul.f32 %v2194, %v2194
          %v2588 = vmul.f32 %v2195, %v2195
          %v2589 = vmul.f32 %v2196, %v2196
          %v2590 = vmul.f32 %v2197, %v2197
          %v2591 = vmul.f32 %v2198, %v2198
          %v2592 = vmul.f32 %v2199, %v2199
          %v2593 = vmul.f32 %v2200, %v2200
          %v2594 = vmul.f32 %v2201, %v2201
          %v2595 = vmul.f32 %v2202, %v2202
          %v2596 = vmul.f32 %v2203, %v2203
          %v2597 = vmul.f32 %v2204, %v2204
          %v2598 = vmul.f32 %v2205, %v2205
          %v2599 = vmul.f32 %v2206, %v2206
          %v2600 = vmul.f32 %v2207, %v2207
          %v2601 = vmul.f32 %v2208, %v2208
          %v2602 = vmul.f32 %v2209, %v2209
          %v2603 = vmul.f32 %v2210, %v2210
          %v2604 = vmul.f32 %v2211, %v2211
          %v2605 = vmul.f32 %v2212, %v2212
          %v2606 = vadd.f32 %v2478, %v2479
          %v2607 = vadd.f32 %v2606, %v2480
          %v2608 = vadd.f32 %v2607, %v2481
          %v2609 = vadd.f32 %v2608, %v2482
          %v2610 = vadd.f32 %v2609, %v2483
          %v2611 = vadd.f32 %v2610, %v2484
          %v2612 = vadd.f32 %v2611, %v2485
          %v2613 = vadd.f32 %v2612, %v2486
          %v2614 = vadd.f32 %v2613, %v2487
          %v2615 = vadd.f32 %v2614, %v2488
          %v2616 = vadd.f32 %v2615, %v2489
          %v2617 = vadd.f32 %v2616, %v2490
          %v2618 = vadd.f32 %v2617, %v2491
          %v2619 = vadd.f32 %v2618, %v2492
          %v2620 = vadd.f32 %v2619, %v2493
          %v2621 = vadd.f32 %v2620, %v2494
          %v2622 = vadd.f32 %v2621, %v2495
          %v2623 = vadd.f32 %v2622, %v2496
          %v2624 = vadd.f32 %v2623, %v2497
          %v2625 = vadd.f32 %v2624, %v2498
          %v2626 = vadd.f32 %v2625, %v2499
          %v2627 = vadd.f32 %v2626, %v2500
          %v2628 = vadd.f32 %v2627, %v2501
          %v2629 = vadd.f32 %v2628, %v2502
          %v2630 = vadd.f32 %v2629, %v2503
          %v2631 = vadd.f32 %v2630, %v2504
          %v2632 = vadd.f32 %v2631, %v2505
          %v2633 = vadd.f32 %v2632, %v2506
          %v2634 = vadd.f32 %v2633, %v2507
          %v2635 = vadd.f32 %v2634, %v2508
          %v2636 = vadd.f32 %v2635, %v2509
          %2637 = vadd.xlane.f32.xlu0 %v2636
          %v2638 = vpop.xlane.xlu0 %2637
          %v2639 = vadd.f32 %v2510, %v2511
          %v2640 = vadd.f32 %v2639, %v2512
          %v2641 = vadd.f32 %v2640, %v2513
          %v2642 = vadd.f32 %v2641, %v2514
          %v2643 = vadd.f32 %v2642, %v2515
          %v2644 = vadd.f32 %v2643, %v2516
          %v2645 = vadd.f32 %v2644, %v2517
          %v2646 = vadd.f32 %v2645, %v2518
          %v2647 = vadd.f32 %v2646, %v2519
          %v2648 = vadd.f32 %v2647, %v2520
          %v2649 = vadd.f32 %v2648, %v2521
          %v2650 = vadd.f32 %v2649, %v2522
          %v2651 = vadd.f32 %v2650, %v2523
          %v2652 = vadd.f32 %v2651, %v2524
          %v2653 = vadd.f32 %v2652, %v2525
          %v2654 = vadd.f32 %v2653, %v2526
          %v2655 = vadd.f32 %v2654, %v2527
          %v2656 = vadd.f32 %v2655, %v2528
          %v2657 = vadd.f32 %v2656, %v2529
          %v2658 = vadd.f32 %v2657, %v2530
          %v2659 = vadd.f32 %v2658, %v2531
          %v2660 = vadd.f32 %v2659, %v2532
          %v2661 = vadd.f32 %v2660, %v2533
          %v2662 = vadd.f32 %v2661, %v2534
          %v2663 = vadd.f32 %v2662, %v2535
          %v2664 = vadd.f32 %v2663, %v2536
          %v2665 = vadd.f32 %v2664, %v2537
          %v2666 = vadd.f32 %v2665, %v2538
          %v2667 = vadd.f32 %v2666, %v2539
          %v2668 = vadd.f32 %v2667, %v2540
          %v2669 = vadd.f32 %v2668, %v2541
          %2670 = vadd.xlane.f32.xlu0 %v2669
          %v2671 = vpop.xlane.xlu0 %2670
          %v2672 = vadd.f32 %v2542, %v2543
          %v2673 = vadd.f32 %v2672, %v2544
          %v2674 = vadd.f32 %v2673, %v2545
          %v2675 = vadd.f32 %v2674, %v2546
          %v2676 = vadd.f32 %v2675, %v2547
          %v2677 = vadd.f32 %v2676, %v2548
          %v2678 = vadd.f32 %v2677, %v2549
          %v2679 = vadd.f32 %v2678, %v2550
          %v2680 = vadd.f32 %v2679, %v2551
          %v2681 = vadd.f32 %v2680, %v2552
          %v2682 = vadd.f32 %v2681, %v2553
          %v2683 = vadd.f32 %v2682, %v2554
          %v2684 = vadd.f32 %v2683, %v2555
          %v2685 = vadd.f32 %v2684, %v2556
          %v2686 = vadd.f32 %v2685, %v2557
          %v2687 = vadd.f32 %v2686, %v2558
          %v2688 = vadd.f32 %v2687, %v2559
          %v2689 = vadd.f32 %v2688, %v2560
          %v2690 = vadd.f32 %v2689, %v2561
          %v2691 = vadd.f32 %v2690, %v2562
          %v2692 = vadd.f32 %v2691, %v2563
          %v2693 = vadd.f32 %v2692, %v2564
          %v2694 = vadd.f32 %v2693, %v2565
          %v2695 = vadd.f32 %v2694, %v2566
          %v2696 = vadd.f32 %v2695, %v2567
          %v2697 = vadd.f32 %v2696, %v2568
          %v2698 = vadd.f32 %v2697, %v2569
          %v2699 = vadd.f32 %v2698, %v2570
          %v2700 = vadd.f32 %v2699, %v2571
          %v2701 = vadd.f32 %v2700, %v2572
          %v2702 = vadd.f32 %v2701, %v2573
          %2703 = vadd.xlane.f32.xlu0 %v2702
          %v2704 = vpop.xlane.xlu0 %2703
          %v2705 = vadd.f32 %v2574, %v2575
          %v2706 = vadd.f32 %v2705, %v2576
          %v2707 = vadd.f32 %v2706, %v2577
          %v2708 = vadd.f32 %v2707, %v2578
          %v2709 = vadd.f32 %v2708, %v2579
          %v2710 = vadd.f32 %v2709, %v2580
          %v2711 = vadd.f32 %v2710, %v2581
          %v2712 = vadd.f32 %v2711, %v2582
          %v2713 = vadd.f32 %v2712, %v2583
          %v2714 = vadd.f32 %v2713, %v2584
          %v2715 = vadd.f32 %v2714, %v2585
          %v2716 = vadd.f32 %v2715, %v2586
          %v2717 = vadd.f32 %v2716, %v2587
          %v2718 = vadd.f32 %v2717, %v2588
          %v2719 = vadd.f32 %v2718, %v2589
          %v2720 = vadd.f32 %v2719, %v2590
          %v2721 = vadd.f32 %v2720, %v2591
          %v2722 = vadd.f32 %v2721, %v2592
          %v2723 = vadd.f32 %v2722, %v2593
          %v2724 = vadd.f32 %v2723, %v2594
          %v2725 = vadd.f32 %v2724, %v2595
          %v2726 = vadd.f32 %v2725, %v2596
          %v2727 = vadd.f32 %v2726, %v2597
          %v2728 = vadd.f32 %v2727, %v2598
          %v2729 = vadd.f32 %v2728, %v2599
          %v2730 = vadd.f32 %v2729, %v2600
          %v2731 = vadd.f32 %v2730, %v2601
          %v2732 = vadd.f32 %v2731, %v2602
          %v2733 = vadd.f32 %v2732, %v2603
          %v2734 = vadd.f32 %v2733, %v2604
          %v2735 = vadd.f32 %v2734, %v2605
          %2736 = vadd.xlane.f32.xlu0 %v2735
          %v2737 = vpop.xlane.xlu0 %2736
          %2738 = vst.msk [vmem:[%s330] sm:$0xff] %vm2473, %v2638
          %2739 = vst.msk [vmem:[%s330 + $0x8] sm:$0xff] %vm2473, %v2671
          %2740 = vst.msk [vmem:[%s330 + $0x10] sm:$0xff] %vm2473, %v2704
          %2741 = vst.msk [vmem:[%s330 + $0x18] sm:$0xff] %vm2473, %v2737
        $region40: #{tpu_custom_call.1} parent=31 // pred_fallthru
          _
        %s2742 = sand.u32 %s126, 1
        %s2743 = scalar_lea.sflag [#allocation4], %s2742
        %s2744 = sand.u32 %s126, 1
        %s2745 = smul.addr %s2744, 512
        %s2746 = scalar_lea.vmem [#allocation3], %s2745
        %s2747 = sadd.s32 %s25, %s26
        %p2748 = scmp.lt.s32.totalorder %s2747, 1
        %s2749 = scalar_select %p2748, %s2747, 1
        %s2750 = smul.addr %s2749, 4
        %s2751 = smul.addr %s2750, 8
        %s2752 = scalar_lea.vmem %s4, %s2751
        %s2753 = sadd.s32 %s25, %s26
        %p2754 = scmp.lt.s32.totalorder %s2753, 1
        %s2755 = scalar_select %p2754, %s2753, 1
        %s2756 = smul.addr %s2755, 4
        %s2757 = smul.addr %s2756, 8
        %s2758 = scalar_lea.vmem %s5, %s2757
        // Predicated region
        $region41: #{tpu_custom_call.1} parent=31 // pred_check
          %p2759 = pneg %p136
        $region42: #{tpu_custom_call.1} parent=31 // pred_check_branch
          %2761 = sbr.rel (%p2759) target = $region44
        $region43: #{tpu_custom_call.1} parent=31 // pred_region
          %s2762 = smul.u32 32, %s26
          %2764 = vsyncadd %s2743, 0
          %s2765 = smul.addr %s25, 128
          %s2766 = sadd.s32 %s2762, %s2765
          %s2767 = smul.addr %s2766, 4
          %s2768 = scalar_lea.hbm %s3, %s2767
          %s2769 = sshll.u32 %s2746, 4
          %s2770 = int_to_ptr.vmem [resolvable:$true] %s2769
          %s2771 = sshll.u32 %s2768, 4
          %s2772 = int_to_ptr.hbm [resolvable:$true] %s2771
          %2777 = dma.vmem_to_hbm [thread:$0]  %s2770, 8192, %s2772, %s2743, 2048, 2048, 128
        $region44: #{tpu_custom_call.1} parent=31 // pred_fallthru
          _
        // Predicated region
        $region45: #{tpu_custom_call.1} parent=31 // pred_check
          %p2778 = pneg %p164
        $region46: #{tpu_custom_call.1} parent=31 // pred_check_branch
          %2780 = sbr.rel (%p2778) target = $region48
        $region47: #{tpu_custom_call.1} parent=31 // pred_region
          %s2781 = sadd.s32 %s25, %s26
        $region48: #{tpu_custom_call.1} parent=31 // pred_fallthru
          _
        // Predicated region
        $region49: #{tpu_custom_call.1} parent=31 // pred_check
          %p2782 = pneg %p192
        $region50: #{tpu_custom_call.1} parent=31 // pred_check_branch
          %2784 = sbr.rel (%p2782) target = $region52
        $region51: #{tpu_custom_call.1} parent=31 // pred_region
          %s2785 = sadd.s32 %s25, %s26
        $region52: #{tpu_custom_call.1} parent=31 // pred_fallthru
          _
      $region32: #{tpu_custom_call.1} parent=5 // pred_fallthru
        _
      %p2786 = scmp.le.s32.totalorder 2, %s15
      // Predicated region
      $region53: #{tpu_custom_call.1} parent=5 // pred_check
        %p2787 = pneg %p2786
      $region54: #{tpu_custom_call.1} parent=5 // pred_check_branch
        %2789 = sbr.rel (%p2787) target = $region56
      $region55: #{tpu_custom_call.1} parent=5 // pred_region
        %s2790 = ssub.s32 %s15, 2
        // Predicated region
        $region57: #{tpu_custom_call.1} parent=55 // pred_check
          %p2791 = pneg %p142
        $region58: #{tpu_custom_call.1} parent=55 // pred_check_branch
          %2793 = sbr.rel (%p2791) target = $region60
        $region59: #{tpu_custom_call.1} parent=55 // pred_region
          %s2794 = sand.u32 %s127, 1
          %s2795 = scalar_lea.sflag [#allocation4], %s2794
          %s2796 = sand.u32 %s127, 1
          %s2797 = smul.addr %s2796, 512
          %s2798 = scalar_lea.vmem [#allocation3], %s2797
          %2800 = dma.done %s2795, 8192
        $region60: #{tpu_custom_call.1} parent=55 // pred_fallthru
          _
        // Predicated region
        $region61: #{tpu_custom_call.1} parent=55 // pred_check
          %p2801 = pneg %p170
        $region62: #{tpu_custom_call.1} parent=55 // pred_check_branch
          %2803 = sbr.rel (%p2801) target = $region64
        $region63: #{tpu_custom_call.1} parent=55 // pred_region
          %s2804 = sadd.s32 %s28, %s29
          %p2805 = scmp.lt.s32.totalorder %s2804, 1
          %s2806 = scalar_select %p2805, %s2804, 1
          %s2807 = smul.addr %s2806, 4
          %s2808 = smul.addr %s2807, 8
          %s2809 = scalar_lea.vmem %s4, %s2808
        $region64: #{tpu_custom_call.1} parent=55 // pred_fallthru
          _
        // Predicated region
        $region65: #{tpu_custom_call.1} parent=55 // pred_check
          %p2810 = pneg %p198
        $region66: #{tpu_custom_call.1} parent=55 // pred_check_branch
          %2812 = sbr.rel (%p2810) target = $region68
        $region67: #{tpu_custom_call.1} parent=55 // pred_region
          %s2813 = sadd.s32 %s28, %s29
          %p2814 = scmp.lt.s32.totalorder %s2813, 1
          %s2815 = scalar_select %p2814, %s2813, 1
          %s2816 = smul.addr %s2815, 4
          %s2817 = smul.addr %s2816, 8
          %s2818 = scalar_lea.vmem %s5, %s2817
        $region68: #{tpu_custom_call.1} parent=55 // pred_fallthru
          _
      $region56: #{tpu_custom_call.1} parent=5 // pred_fallthru
        _
    $region6: #{tpu_custom_call.1} parent=1 // loop_footer
      %s19 = sadd.s32 1, %s15
    $region7: #{tpu_custom_call.1} parent=1 // loop_footer_branch
      %14 = sbr.rel target = $region3
    $region8: #{tpu_custom_call.1} parent=1 // loop_exit
      _
    %2819 = vsyncpa [#allocation4], 1
    %s2820 = scalar_lea.sflag [#allocation4], 1
    %2821 = vsyncpa %s2820, 1

</llo_original>
